<compile_context>
chip_gen: v7x
topology: tpu7x:2x2x1
jax: 0.10.0
libtpu: 0.0.40
codegen_flags: <defaults>
</compile_context>

<pallas_src>
import jax
import jax.numpy as jnp
from jax.experimental import pallas as pl
from jax.experimental.pallas import tpu as pltpu

N_AGENTS = 3
N_ENT = 5            # n_entities - 1 = 2 allies + 1 enemy + 2 landmarks
IN_DIM = 9
HID = 256
N_RBF = 3
RBOUND = 10.0
OB_DIM = 20
ROWS = N_AGENTS * N_ENT     # 15 (agent, entity_i) rows per batch element


# ----------------------------------------------------------------------------
# Glue: feature construction (mirrors DeepsetMLP._build_input + rbf expansion)
# ----------------------------------------------------------------------------
def gauss_rbf(d):
    # TODO(synk): exact rbf_class_mapping['gauss'] implementation is not in the
    # reference source; using a standard Gaussian-smearing expansion over
    # [0, rbound_upper] with num_rbf centers.
    centers = jnp.linspace(0.0, RBOUND, N_RBF)
    coeff = -0.5 / (centers[1] - centers[0]) ** 2
    return jnp.exp(coeff * (d - centers) ** 2)


def build_features(ob, actions):
    bs = ob.shape[0] // N_AGENTS
    own_feats = ob[:, :4].reshape(bs, N_AGENTS, 4)
    landmark_pos = ob[:, 4:8].reshape(bs, N_AGENTS, 2, 2)
    ally_pos = ob[:, 8:12].reshape(bs, N_AGENTS, 2, 2)
    enemy_pos = ob[:, 12:14].reshape(bs, N_AGENTS, 1, 2)
    entity_pos = jnp.concatenate([ally_pos, enemy_pos, landmark_pos], axis=-2)   # (bs,3,5,2)

    ally_vel = ob[:, 14:18].reshape(bs, N_AGENTS, 2, 2)
    enemy_vel = ob[:, 18:20].reshape(bs, N_AGENTS, 1, 2)
    landmark_vel = jnp.zeros_like(landmark_pos) - own_feats[:, :, None, :2]
    entity_vel = jnp.concatenate([ally_vel, enemy_vel, landmark_vel], axis=-2)   # (bs,3,5,2)

    entity_relative_vel = entity_vel[:, :, None, :, :] - entity_vel[:, :, :, None, :]  # (bs,3,5,5,2)
    entity_vel_norm = jnp.sqrt((entity_vel ** 2).sum(-1))
    sin_alpha = entity_vel[..., 1] / (entity_vel_norm + 1e-7)
    cos_alpha = entity_vel[..., 0] / (entity_vel_norm + 1e-7)

    actions = actions.reshape(bs, N_AGENTS, 2)
    actions_norm = jnp.sqrt((actions ** 2).sum(-1))                              # (bs,3)
    sin_beta = actions[..., 1] / (actions_norm + 1e-7)
    cos_beta = actions[..., 0] / (actions_norm + 1e-7)

    ally_dist = jnp.sqrt((ally_pos ** 2).sum(-1))
    landmark_dist = jnp.sqrt((landmark_pos ** 2).sum(-1))
    enemy_dist = jnp.sqrt((enemy_pos ** 2).sum(-1))
    entity_dist = jnp.concatenate([ally_dist, enemy_dist, landmark_dist], axis=-1)  # (bs,3,5)

    sin_theta = entity_pos[..., 1] / (entity_dist + 1e-7)
    cos_theta = entity_pos[..., 0] / (entity_dist + 1e-7)

    # [i, j] pair angles: A = theta_j, B = theta_i, C = alpha_j
    sin_A = sin_theta[:, :, None, :]
    cos_A = cos_theta[:, :, None, :]
    sin_B = sin_theta[:, :, :, None]
    cos_B = cos_theta[:, :, :, None]
    sin_C = sin_alpha[:, :, None, :]
    cos_C = cos_alpha[:, :, None, :]
    sin_A_minus_B = sin_A * cos_B - cos_A * sin_B
    cos_A_minus_B = cos_A * cos_B + sin_A * sin_B
    sin_C_minus_B = sin_C * cos_B - cos_C * sin_B
    cos_C_minus_B = cos_C * cos_B + sin_C * sin_B
    angle_info = jnp.stack(
        [sin_A_minus_B, cos_A_minus_B, sin_C_minus_B, cos_C_minus_B], axis=-1)   # (bs,3,5,5,4)

    sin_D = sin_beta[:, :, None]
    cos_D = cos_beta[:, :, None]
    sin_D_minus_B = sin_D * cos_theta - cos_D * sin_theta
    cos_D_minus_B = cos_D * cos_theta + sin_D * sin_theta
    actions_angle_info = jnp.stack([sin_D_minus_B, cos_D_minus_B], axis=-1)      # (bs,3,5,2)

    feat_dist = gauss_rbf(entity_dist[..., None])                                # (bs,3,5,3)
    feat_dist = jnp.broadcast_to(feat_dist[:, :, None, :, :],
                                 (bs, N_AGENTS, N_ENT, N_ENT, N_RBF))
    feat_inputs = jnp.concatenate(
        [feat_dist, angle_info, entity_relative_vel], axis=-1)                   # (bs,3,5,5,9)
    return (feat_inputs.astype(jnp.float32),
            actions_norm.astype(jnp.float32),
            actions_angle_info.astype(jnp.float32))


# ----------------------------------------------------------------------------
# Pallas kernel: one grid step = B_TILE batch elements = M = B_TILE*15 rows.
# feat_ref holds 6 row-groups of M rows each (contiguous along the sublane
# axis): [ally0 | ally1 | enemy | landmark0 | landmark1 | extra].
# ----------------------------------------------------------------------------
def deepset_kernel(feat_ref, w1_ref, b1_ref, w2_ref, b2_ref,
                   wo1m_ref, wo1e_ref, bo1_ref, wo2_ref,
                   h_ref, q_ref):
    M = h_ref.shape[0]

    def lrelu(h):
        return jnp.maximum(h, 0.01 * h)          # LeakyReLU(0.01), 2 VALU ops

    # ---- Layer 1: 3 matmuls (ally/landmark entity pairs merged along M) ----
    ha = lrelu(jnp.dot(feat_ref[0:2 * M, :], w1_ref[0],
                       preferred_element_type=jnp.float32) + b1_ref[0])
    ha = ha[0:M] + ha[M:2 * M]                   # sum over the 2 ally entities
    he = lrelu(jnp.dot(feat_ref[2 * M:3 * M, :], w1_ref[1],
                       preferred_element_type=jnp.float32) + b1_ref[1])
    hl = lrelu(jnp.dot(feat_ref[3 * M:5 * M, :], w1_ref[2],
                       preferred_element_type=jnp.float32) + b1_ref[2])
    hl = hl[0:M] + hl[M:2 * M]                   # sum over the 2 landmark entities

    # ---- Layer 2: shared W2 within a branch -> one K=256 matmul per branch ----
    m_sum = (jnp.dot(ha.astype(jnp.bfloat16), w2_ref[0],
                     preferred_element_type=jnp.float32) + 2.0 * b2_ref[0]
             + jnp.dot(he.astype(jnp.bfloat16), w2_ref[1],
                       preferred_element_type=jnp.float32) + b2_ref[1]
             + jnp.dot(hl.astype(jnp.bfloat16), w2_ref[2],
                       preferred_element_type=jnp.float32) + 2.0 * b2_ref[2])

    # ---- out_fc1 on relu(concat([m_sum, extra])) ----
    # K=256 part on the MXU; the K=3 "extra" part as 3 VPU broadcast-FMAs.
    xin_m = jnp.maximum(m_sum, 0.0)
    fe = feat_ref[5 * M:6 * M, :]                           # extra slot (bf16)
    xin_e = jnp.maximum(fe[:, 0:3].astype(jnp.float32), 0.0)   # (M, 3)
    h = (jnp.dot(xin_m.astype(jnp.bfloat16), wo1m_ref[...],
                 preferred_element_type=jnp.float32) + bo1_ref[...])
    h = h + xin_e[:, 0:1] * wo1e_ref[0:1, :]
    h = h + xin_e[:, 1:2] * wo1e_ref[1:2, :]
    h = h + xin_e[:, 2:3] * wo1e_ref[2:3, :]
    h = jnp.maximum(h, 0.0)                                  # (M, 256) f32

    # bf16 writeback of the hidden state (dominant HBM stream halved).
    h_ref[...] = h.astype(jnp.bfloat16)
    # Fused out_fc2 head as a lane reduction (bias folded in the wrapper).
    q_ref[...] = jnp.sum(h * wo2_ref[...], axis=-1, keepdims=True)


def _pick_b_tile(bs):
    # B_TILE must be a multiple of 16 so every intra-block slice offset (k*M)
    # is aligned to the bf16 sublane tile.  Cap at 64 (M = 960); for mid-size
    # batches keep >= 2 grid steps so v7x megacore has work for both cores.
    if bs <= 16:
        return 16
    if bs <= 128:
        return min(64, ((-(-bs // 2) + 15) // 16) * 16)
    return 64


def deepset_forward(ob, actions, params):
    bs = ob.shape[0] // N_AGENTS
    feat, anorm, aang = build_features(ob, actions)

    b_tile = _pick_b_tile(bs)
    m_rows = b_tile * ROWS
    n_tiles = -(-bs // b_tile)
    bs_pad = n_tiles * b_tile
    rows_pad = bs_pad * ROWS

    # Branch-grouped, row-flattened slabs (row r = ((b*3 + agent)*5 + entity_i)),
    # plus the 3 "extra" columns folded in as a 6th slot (zero-padded to 9).
    slabs = [feat[:, :, :, j, :].reshape(bs * ROWS, IN_DIM) for j in range(N_ENT)]
    extra = jnp.concatenate(
        [jnp.broadcast_to(anorm[:, :, None, None], (bs, N_AGENTS, N_ENT, 1)), aang],
        axis=-1).reshape(bs * ROWS, 3)
    slabs.append(jnp.pad(extra, ((0, 0), (0, IN_DIM - 3))))
    feat6 = jnp.stack(slabs, axis=0).astype(jnp.bfloat16)            # (6, bs*15, 9)
    if rows_pad != bs * ROWS:
        feat6 = jnp.pad(feat6, ((0, 0), (0, rows_pad - bs * ROWS), (0, 0)))
    # Tile-major layout so each grid step reads one contiguous (6*M, 9) block.
    feat_tiled = (feat6.reshape(6, n_tiles, m_rows, IN_DIM)
                  .transpose(1, 0, 2, 3)
                  .reshape(n_tiles * 6 * m_rows, IN_DIM))

    # bf16 matmul weights (f32 biases, f32 accumulation inside the kernel).
    w1 = params["w1s"].astype(jnp.bfloat16)                          # (3, 9, 256)
    w2 = params["w2s"].astype(jnp.bfloat16)                          # (3, 256, 256)
    wo1m = params["wo1"][:HID].astype(jnp.bfloat16)                  # (256, 256)
    wo1e = params["wo1"][HID:]                                       # (3, 256) f32 (VPU FMA)
    wo2 = params["wo2"].reshape(1, HID)                              # (1, 256) f32

    in_specs = [
        pl.BlockSpec((6 * m_rows, IN_DIM), lambda b: (b, 0)),        # features
        pl.BlockSpec((3, IN_DIM, HID), lambda b: (0, 0, 0)),         # w1 [ally,enemy,landmark]
        pl.BlockSpec((3, 1, HID), lambda b: (0, 0, 0)),              # b1
        pl.BlockSpec((3, HID, HID), lambda b: (0, 0, 0)),            # w2
        pl.BlockSpec((3, 1, HID), lambda b: (0, 0, 0)),              # b2
        pl.BlockSpec((HID, HID), lambda b: (0, 0)),                  # out_fc1 W[:256]
        pl.BlockSpec((3, HID), lambda b: (0, 0)),                    # out_fc1 W[256:]
        pl.BlockSpec((1, HID), lambda b: (0, 0)),                    # out_fc1 b
        pl.BlockSpec((1, HID), lambda b: (0, 0)),                    # out_fc2 W (row vec)
    ]
    out_specs = [
        pl.BlockSpec((m_rows, HID), lambda b: (b, 0)),               # hidden (bf16)
        pl.BlockSpec((m_rows, 1), lambda b: (b, 0)),                 # per-row q (f32)
    ]
    out_shapes = [
        jax.ShapeDtypeStruct((rows_pad, HID), jnp.bfloat16),
        jax.ShapeDtypeStruct((rows_pad, 1), jnp.float32),
    ]

    hidden_flat, q_flat = pl.pallas_call(
        deepset_kernel,
        out_shape=out_shapes,
        grid_spec=pltpu.PrefetchScalarGridSpec(
            num_scalar_prefetch=0,
            grid=(n_tiles,),
            in_specs=in_specs,
            out_specs=out_specs,
        ),
        compiler_params=pltpu.CompilerParams(
            dimension_semantics=("parallel",),
            vmem_limit_bytes=32 * 1024 * 1024,   # headroom on v5e's 16 MiB default
        ),
    )(feat_tiled, w1, params["b1s"], w2, params["b2s"],
      wo1m, wo1e, params["bo1"], wo2)

    hidden = hidden_flat[: bs * ROWS].reshape(bs, N_AGENTS, N_ENT, HID)
    # Tiny entity-mean + out_fc2 bias stays in XLA (operates on bs*15 scalars).
    q = (q_flat[: bs * ROWS, 0].reshape(bs, N_AGENTS, N_ENT).mean(-1)
         + params["bo2"][0, 0]).reshape(-1, 1)
    return {"Q": q, "hidden_state": hidden}


# ----------------------------------------------------------------------------
# Deterministic parameter init (PyTorch-Linear-style uniform; weights stored
# as (in, out) so the kernel computes x @ W + b)
# ----------------------------------------------------------------------------
def init_params(key):
    def linear(k, fan_in, fan_out):
        k1, k2 = jax.random.split(k)
        bound = 1.0 / jnp.sqrt(fan_in)
        w = jax.random.uniform(k1, (fan_in, fan_out), jnp.float32, -bound, bound)
        b = jax.random.uniform(k2, (fan_out,), jnp.float32, -bound, bound)
        return w, b

    keys = jax.random.split(key, 8)
    w1s, b1s, w2s, b2s = [], [], [], []
    for i in range(3):                       # 0=ally_fc, 1=enemy_fc, 2=landmark_fc
        w1, b1 = linear(keys[2 * i], IN_DIM, HID)
        w2, b2 = linear(keys[2 * i + 1], HID, HID)
        w1s.append(w1); b1s.append(b1[None, :])
        w2s.append(w2); b2s.append(b2[None, :])
    wo1, bo1 = linear(keys[6], HID + 3, HID)
    wo2, bo2 = linear(keys[7], HID, 1)
    return dict(
        w1s=jnp.stack(w1s), b1s=jnp.stack(b1s),
        w2s=jnp.stack(w2s), b2s=jnp.stack(b2s),
        wo1=wo1, bo1=bo1[None, :], wo2=wo2, bo2=bo2[None, :],
    )


# ----------------------------------------------------------------------------
# Pure-JAX reference (mirrors the PyTorch forward, f32 weights)
# ----------------------------------------------------------------------------
def reference_forward(ob, actions, params):
    feat, anorm, aang = build_features(ob, actions)
    bs = feat.shape[0]

    def branch(x, i):
        h = x @ params["w1s"][i] + params["b1s"][i, 0]
        h = jnp.where(h >= 0, h, 0.01 * h)
        return h @ params["w2s"][i] + params["b2s"][i, 0]

    ally = branch(feat, 0)
    enemy = branch(feat, 1)
    landmark = branch(feat, 2)
    m = jnp.concatenate(
        [ally[:, :, :, :2], enemy[:, :, :, 2:3], landmark[:, :, :, 3:]], axis=3)
    m_sum = m.sum(axis=3)                                                  # (bs,3,5,256)
    anorm_b = jnp.broadcast_to(anorm[:, :, None, None], (bs, N_AGENTS, N_ENT, 1))
    final_in = jnp.concatenate([m_sum, anorm_b, aang], axis=-1)
    x = jnp.maximum(final_in, 0.0)
    x = jnp.maximum(x @ params["wo1"] + params["bo1"][0], 0.0)
    q = (x @ params["wo2"] + params["bo2"][0]).mean(-2).reshape(-1, 1)
    return {"Q": q, "hidden_state": x}


if __name__ == "__main__":
    key = jax.random.PRNGKey(0)
    k_ob, k_act, k_par = jax.random.split(key, 3)

    bs = 2                                        # -> inputs has bs * n_agents = 6 rows
    ob = jax.random.normal(k_ob, (bs * N_AGENTS, OB_DIM), jnp.float32)
    actions = jax.random.normal(k_act, (bs * N_AGENTS, 2), jnp.float32)
    hidden_state = jnp.zeros((1, 64), jnp.float32)  # unused by forward (parity with PyTorch)

    params = init_params(k_par)

    out = deepset_forward(ob, actions, params)
    jax.block_until_ready(out["Q"])
    jax.block_until_ready(out["hidden_state"])

    ref = reference_forward(ob, actions, params)
    assert out["Q"].shape == (bs * N_AGENTS, 1)
    assert out["hidden_state"].shape == (bs, N_AGENTS, N_ENT, HID)
    # bf16 matmul operands + bf16 hidden writeback (f32 accumulation) vs f32 reference
    assert jnp.allclose(out["Q"], ref["Q"], atol=2e-2, rtol=2e-2)
    assert jnp.allclose(out["hidden_state"].astype(jnp.float32),
                        ref["hidden_state"], atol=2e-2, rtol=2e-2)

    print("KERNEL_OK")
</pallas_src>

<mosaic_0001>
module attributes {stable_mosaic.version = 11 : i64} {
  func.func @deepset_kernel(%arg0: i32, %arg1: memref<1440x9xbf16, #tpu.memory_space<vmem>>, %arg2: memref<3x9x256xbf16, #tpu.memory_space<vmem>>, %arg3: memref<3x1x256xf32, #tpu.memory_space<vmem>>, %arg4: memref<3x256x256xbf16, #tpu.memory_space<vmem>>, %arg5: memref<3x1x256xf32, #tpu.memory_space<vmem>>, %arg6: memref<256x256xbf16, #tpu.memory_space<vmem>>, %arg7: memref<3x256xf32, #tpu.memory_space<vmem>>, %arg8: memref<1x256xf32, #tpu.memory_space<vmem>>, %arg9: memref<1x256xf32, #tpu.memory_space<vmem>>, %arg10: memref<240x256xbf16, #tpu.memory_space<vmem>>, %arg11: memref<240x1xf32, #tpu.memory_space<vmem>>) attributes {dimension_semantics = [#tpu.dimension_semantics<parallel>], iteration_bounds = array<i64: 1>, scalar_prefetch = 0 : i64, scratch_operands = 0 : i64, tpu.core_type = #tpu.core_type<tc>, window_params = [{transform_indices = @transform_0, window_bounds = array<i64: 1440, 9>}, {pipeline_mode = #tpu.pipeline_mode<synchronous>, transform_indices = @transform_1, window_bounds = array<i64: 3, 9, 256>}, {pipeline_mode = #tpu.pipeline_mode<synchronous>, transform_indices = @transform_2, window_bounds = array<i64: 3, 1, 256>}, {pipeline_mode = #tpu.pipeline_mode<synchronous>, transform_indices = @transform_3, window_bounds = array<i64: 3, 256, 256>}, {pipeline_mode = #tpu.pipeline_mode<synchronous>, transform_indices = @transform_4, window_bounds = array<i64: 3, 1, 256>}, {pipeline_mode = #tpu.pipeline_mode<synchronous>, transform_indices = @transform_5, window_bounds = array<i64: 256, 256>}, {pipeline_mode = #tpu.pipeline_mode<synchronous>, transform_indices = @transform_6, window_bounds = array<i64: 3, 256>}, {pipeline_mode = #tpu.pipeline_mode<synchronous>, transform_indices = @transform_7, window_bounds = array<i64: 1, 256>}, {pipeline_mode = #tpu.pipeline_mode<synchronous>, transform_indices = @transform_8, window_bounds = array<i64: 1, 256>}, {transform_indices = @transform_9, window_bounds = array<i64: 240, 256>}, {transform_indices = @transform_10, window_bounds = array<i64: 240, 1>}]} {
    %c0 = arith.constant 0 : index
    %c0_0 = arith.constant 0 : index
    %0 = vector.load %arg1[%c0, %c0_0] : memref<1440x9xbf16, #tpu.memory_space<vmem>>, vector<480x9xbf16>
    %c0_1 = arith.constant 0 : index
    %c0_2 = arith.constant 0 : index
    %c0_3 = arith.constant 0 : index
    %1 = vector.load %arg2[%c0_1, %c0_2, %c0_3] : memref<3x9x256xbf16, #tpu.memory_space<vmem>>, vector<1x9x256xbf16>
    %2 = vector.shape_cast %1 : vector<1x9x256xbf16> to vector<9x256xbf16>
    %cst = arith.constant dense<0.000000e+00> : vector<480x256xf32>
    %3 = tpu.matmul %0, %2, %cst {dimension_numbers = #tpu.dot_dimension_numbers<[1], [0], [0], [1], [0, 0, 1, 1], [], []>} : vector<480x9xbf16>, vector<9x256xbf16>, vector<480x256xf32> -> vector<480x256xf32>
    %c0_4 = arith.constant 0 : index
    %c0_5 = arith.constant 0 : index
    %c0_6 = arith.constant 0 : index
    %4 = vector.load %arg3[%c0_4, %c0_5, %c0_6] : memref<3x1x256xf32, #tpu.memory_space<vmem>>, vector<1x1x256xf32>
    %5 = vector.shape_cast %4 : vector<1x1x256xf32> to vector<1x256xf32>
    %6 = vector.broadcast %5 : vector<1x256xf32> to vector<480x256xf32>
    %7 = arith.addf %3, %6 : vector<480x256xf32>
    %cst_7 = arith.constant 0.00999999977 : f32
    %8 = vector.broadcast %cst_7 : f32 to vector<480x256xf32>
    %9 = arith.mulf %8, %7 : vector<480x256xf32>
    %10 = arith.maximumf %7, %9 : vector<480x256xf32>
    %11 = vector.extract_strided_slice %10 {offsets = [0, 0], sizes = [240, 256], strides = [1, 1]} : vector<480x256xf32> to vector<240x256xf32>
    %12 = vector.extract_strided_slice %10 {offsets = [240, 0], sizes = [240, 256], strides = [1, 1]} : vector<480x256xf32> to vector<240x256xf32>
    %13 = arith.addf %11, %12 : vector<240x256xf32>
    %c480 = arith.constant 480 : index
    %c0_8 = arith.constant 0 : index
    %14 = vector.load %arg1[%c480, %c0_8] : memref<1440x9xbf16, #tpu.memory_space<vmem>>, vector<240x9xbf16>
    %c1 = arith.constant 1 : index
    %c0_9 = arith.constant 0 : index
    %c0_10 = arith.constant 0 : index
    %15 = vector.load %arg2[%c1, %c0_9, %c0_10] : memref<3x9x256xbf16, #tpu.memory_space<vmem>>, vector<1x9x256xbf16>
    %16 = vector.shape_cast %15 : vector<1x9x256xbf16> to vector<9x256xbf16>
    %cst_11 = arith.constant dense<0.000000e+00> : vector<240x256xf32>
    %17 = tpu.matmul %14, %16, %cst_11 {dimension_numbers = #tpu.dot_dimension_numbers<[1], [0], [0], [1], [0, 0, 1, 1], [], []>} : vector<240x9xbf16>, vector<9x256xbf16>, vector<240x256xf32> -> vector<240x256xf32>
    %c1_12 = arith.constant 1 : index
    %c0_13 = arith.constant 0 : index
    %c0_14 = arith.constant 0 : index
    %18 = vector.load %arg3[%c1_12, %c0_13, %c0_14] : memref<3x1x256xf32, #tpu.memory_space<vmem>>, vector<1x1x256xf32>
    %19 = vector.shape_cast %18 : vector<1x1x256xf32> to vector<1x256xf32>
    %20 = vector.broadcast %19 : vector<1x256xf32> to vector<240x256xf32>
    %21 = arith.addf %17, %20 : vector<240x256xf32>
    %cst_15 = arith.constant 0.00999999977 : f32
    %22 = vector.broadcast %cst_15 : f32 to vector<240x256xf32>
    %23 = arith.mulf %22, %21 : vector<240x256xf32>
    %24 = arith.maximumf %21, %23 : vector<240x256xf32>
    %c720 = arith.constant 720 : index
    %c0_16 = arith.constant 0 : index
    %25 = vector.load %arg1[%c720, %c0_16] : memref<1440x9xbf16, #tpu.memory_space<vmem>>, vector<480x9xbf16>
    %c2 = arith.constant 2 : index
    %c0_17 = arith.constant 0 : index
    %c0_18 = arith.constant 0 : index
    %26 = vector.load %arg2[%c2, %c0_17, %c0_18] : memref<3x9x256xbf16, #tpu.memory_space<vmem>>, vector<1x9x256xbf16>
    %27 = vector.shape_cast %26 : vector<1x9x256xbf16> to vector<9x256xbf16>
    %cst_19 = arith.constant dense<0.000000e+00> : vector<480x256xf32>
    %28 = tpu.matmul %25, %27, %cst_19 {dimension_numbers = #tpu.dot_dimension_numbers<[1], [0], [0], [1], [0, 0, 1, 1], [], []>} : vector<480x9xbf16>, vector<9x256xbf16>, vector<480x256xf32> -> vector<480x256xf32>
    %c2_20 = arith.constant 2 : index
    %c0_21 = arith.constant 0 : index
    %c0_22 = arith.constant 0 : index
    %29 = vector.load %arg3[%c2_20, %c0_21, %c0_22] : memref<3x1x256xf32, #tpu.memory_space<vmem>>, vector<1x1x256xf32>
    %30 = vector.shape_cast %29 : vector<1x1x256xf32> to vector<1x256xf32>
    %31 = vector.broadcast %30 : vector<1x256xf32> to vector<480x256xf32>
    %32 = arith.addf %28, %31 : vector<480x256xf32>
    %cst_23 = arith.constant 0.00999999977 : f32
    %33 = vector.broadcast %cst_23 : f32 to vector<480x256xf32>
    %34 = arith.mulf %33, %32 : vector<480x256xf32>
    %35 = arith.maximumf %32, %34 : vector<480x256xf32>
    %36 = vector.extract_strided_slice %35 {offsets = [0, 0], sizes = [240, 256], strides = [1, 1]} : vector<480x256xf32> to vector<240x256xf32>
    %37 = vector.extract_strided_slice %35 {offsets = [240, 0], sizes = [240, 256], strides = [1, 1]} : vector<480x256xf32> to vector<240x256xf32>
    %38 = arith.addf %36, %37 : vector<240x256xf32>
    %39 = arith.truncf %13 : vector<240x256xf32> to vector<240x256xbf16>
    %c0_24 = arith.constant 0 : index
    %c0_25 = arith.constant 0 : index
    %c0_26 = arith.constant 0 : index
    %40 = vector.load %arg4[%c0_24, %c0_25, %c0_26] : memref<3x256x256xbf16, #tpu.memory_space<vmem>>, vector<1x256x256xbf16>
    %41 = vector.shape_cast %40 : vector<1x256x256xbf16> to vector<256x256xbf16>
    %cst_27 = arith.constant dense<0.000000e+00> : vector<240x256xf32>
    %42 = tpu.matmul %39, %41, %cst_27 {dimension_numbers = #tpu.dot_dimension_numbers<[1], [0], [0], [1], [0, 0, 1, 1], [], []>} : vector<240x256xbf16>, vector<256x256xbf16>, vector<240x256xf32> -> vector<240x256xf32>
    %c0_28 = arith.constant 0 : index
    %c0_29 = arith.constant 0 : index
    %c0_30 = arith.constant 0 : index
    %43 = vector.load %arg5[%c0_28, %c0_29, %c0_30] : memref<3x1x256xf32, #tpu.memory_space<vmem>>, vector<1x1x256xf32>
    %44 = vector.shape_cast %43 : vector<1x1x256xf32> to vector<1x256xf32>
    %cst_31 = arith.constant 2.000000e+00 : f32
    %45 = vector.broadcast %cst_31 : f32 to vector<1x256xf32>
    %46 = arith.mulf %45, %44 : vector<1x256xf32>
    %47 = vector.broadcast %46 : vector<1x256xf32> to vector<240x256xf32>
    %48 = arith.addf %42, %47 : vector<240x256xf32>
    %49 = arith.truncf %24 : vector<240x256xf32> to vector<240x256xbf16>
    %c1_32 = arith.constant 1 : index
    %c0_33 = arith.constant 0 : index
    %c0_34 = arith.constant 0 : index
    %50 = vector.load %arg4[%c1_32, %c0_33, %c0_34] : memref<3x256x256xbf16, #tpu.memory_space<vmem>>, vector<1x256x256xbf16>
    %51 = vector.shape_cast %50 : vector<1x256x256xbf16> to vector<256x256xbf16>
    %cst_35 = arith.constant dense<0.000000e+00> : vector<240x256xf32>
    %52 = tpu.matmul %49, %51, %cst_35 {dimension_numbers = #tpu.dot_dimension_numbers<[1], [0], [0], [1], [0, 0, 1, 1], [], []>} : vector<240x256xbf16>, vector<256x256xbf16>, vector<240x256xf32> -> vector<240x256xf32>
    %53 = arith.addf %48, %52 : vector<240x256xf32>
    %c1_36 = arith.constant 1 : index
    %c0_37 = arith.constant 0 : index
    %c0_38 = arith.constant 0 : index
    %54 = vector.load %arg5[%c1_36, %c0_37, %c0_38] : memref<3x1x256xf32, #tpu.memory_space<vmem>>, vector<1x1x256xf32>
    %55 = vector.shape_cast %54 : vector<1x1x256xf32> to vector<1x256xf32>
    %56 = vector.broadcast %55 : vector<1x256xf32> to vector<240x256xf32>
    %57 = arith.addf %53, %56 : vector<240x256xf32>
    %58 = arith.truncf %38 : vector<240x256xf32> to vector<240x256xbf16>
    %c2_39 = arith.constant 2 : index
    %c0_40 = arith.constant 0 : index
    %c0_41 = arith.constant 0 : index
    %59 = vector.load %arg4[%c2_39, %c0_40, %c0_41] : memref<3x256x256xbf16, #tpu.memory_space<vmem>>, vector<1x256x256xbf16>
    %60 = vector.shape_cast %59 : vector<1x256x256xbf16> to vector<256x256xbf16>
    %cst_42 = arith.constant dense<0.000000e+00> : vector<240x256xf32>
    %61 = tpu.matmul %58, %60, %cst_42 {dimension_numbers = #tpu.dot_dimension_numbers<[1], [0], [0], [1], [0, 0, 1, 1], [], []>} : vector<240x256xbf16>, vector<256x256xbf16>, vector<240x256xf32> -> vector<240x256xf32>
    %62 = arith.addf %57, %61 : vector<240x256xf32>
    %c2_43 = arith.constant 2 : index
    %c0_44 = arith.constant 0 : index
    %c0_45 = arith.constant 0 : index
    %63 = vector.load %arg5[%c2_43, %c0_44, %c0_45] : memref<3x1x256xf32, #tpu.memory_space<vmem>>, vector<1x1x256xf32>
    %64 = vector.shape_cast %63 : vector<1x1x256xf32> to vector<1x256xf32>
    %cst_46 = arith.constant 2.000000e+00 : f32
    %65 = vector.broadcast %cst_46 : f32 to vector<1x256xf32>
    %66 = arith.mulf %65, %64 : vector<1x256xf32>
    %67 = vector.broadcast %66 : vector<1x256xf32> to vector<240x256xf32>
    %68 = arith.addf %62, %67 : vector<240x256xf32>
    %cst_47 = arith.constant 0.000000e+00 : f32
    %69 = vector.broadcast %cst_47 : f32 to vector<240x256xf32>
    %70 = arith.maximumf %68, %69 : vector<240x256xf32>
    %c1200 = arith.constant 1200 : index
    %c0_48 = arith.constant 0 : index
    %71 = vector.load %arg1[%c1200, %c0_48] : memref<1440x9xbf16, #tpu.memory_space<vmem>>, vector<240x9xbf16>
    %72 = vector.extract_strided_slice %71 {offsets = [0, 0], sizes = [240, 3], strides = [1, 1]} : vector<240x9xbf16> to vector<240x3xbf16>
    %73 = arith.extf %72 : vector<240x3xbf16> to vector<240x3xf32>
    %cst_49 = arith.constant 0.000000e+00 : f32
    %74 = vector.broadcast %cst_49 : f32 to vector<240x3xf32>
    %75 = arith.maximumf %73, %74 : vector<240x3xf32>
    %76 = arith.truncf %70 : vector<240x256xf32> to vector<240x256xbf16>
    %c0_50 = arith.constant 0 : index
    %c0_51 = arith.constant 0 : index
    %77 = vector.load %arg6[%c0_50, %c0_51] : memref<256x256xbf16, #tpu.memory_space<vmem>>, vector<256x256xbf16>
    %cst_52 = arith.constant dense<0.000000e+00> : vector<240x256xf32>
    %78 = tpu.matmul %76, %77, %cst_52 {dimension_numbers = #tpu.dot_dimension_numbers<[1], [0], [0], [1], [0, 0, 1, 1], [], []>} : vector<240x256xbf16>, vector<256x256xbf16>, vector<240x256xf32> -> vector<240x256xf32>
    %c0_53 = arith.constant 0 : index
    %c0_54 = arith.constant 0 : index
    %79 = vector.load %arg8[%c0_53, %c0_54] : memref<1x256xf32, #tpu.memory_space<vmem>>, vector<1x256xf32>
    %80 = vector.broadcast %79 : vector<1x256xf32> to vector<240x256xf32>
    %81 = arith.addf %78, %80 : vector<240x256xf32>
    %82 = vector.extract_strided_slice %75 {offsets = [0, 0], sizes = [240, 1], strides = [1, 1]} : vector<240x3xf32> to vector<240x1xf32>
    %c0_55 = arith.constant 0 : index
    %c0_56 = arith.constant 0 : index
    %83 = vector.load %arg7[%c0_55, %c0_56] : memref<3x256xf32, #tpu.memory_space<vmem>>, vector<1x256xf32>
    %84 = vector.broadcast %82 : vector<240x1xf32> to vector<240x256xf32>
    %85 = vector.broadcast %83 : vector<1x256xf32> to vector<240x256xf32>
    %86 = arith.mulf %84, %85 : vector<240x256xf32>
    %87 = arith.addf %81, %86 : vector<240x256xf32>
    %88 = vector.extract_strided_slice %75 {offsets = [0, 1], sizes = [240, 1], strides = [1, 1]} : vector<240x3xf32> to vector<240x1xf32>
    %c1_57 = arith.constant 1 : index
    %c0_58 = arith.constant 0 : index
    %89 = vector.load %arg7[%c1_57, %c0_58] : memref<3x256xf32, #tpu.memory_space<vmem>>, vector<1x256xf32>
    %90 = vector.broadcast %88 : vector<240x1xf32> to vector<240x256xf32>
    %91 = vector.broadcast %89 : vector<1x256xf32> to vector<240x256xf32>
    %92 = arith.mulf %90, %91 : vector<240x256xf32>
    %93 = arith.addf %87, %92 : vector<240x256xf32>
    %94 = vector.extract_strided_slice %75 {offsets = [0, 2], sizes = [240, 1], strides = [1, 1]} : vector<240x3xf32> to vector<240x1xf32>
    %c2_59 = arith.constant 2 : index
    %c0_60 = arith.constant 0 : index
    %95 = vector.load %arg7[%c2_59, %c0_60] : memref<3x256xf32, #tpu.memory_space<vmem>>, vector<1x256xf32>
    %96 = vector.broadcast %94 : vector<240x1xf32> to vector<240x256xf32>
    %97 = vector.broadcast %95 : vector<1x256xf32> to vector<240x256xf32>
    %98 = arith.mulf %96, %97 : vector<240x256xf32>
    %99 = arith.addf %93, %98 : vector<240x256xf32>
    %cst_61 = arith.constant 0.000000e+00 : f32
    %100 = vector.broadcast %cst_61 : f32 to vector<240x256xf32>
    %101 = arith.maximumf %99, %100 : vector<240x256xf32>
    %102 = arith.truncf %101 : vector<240x256xf32> to vector<240x256xbf16>
    %c0_62 = arith.constant 0 : index
    %c0_63 = arith.constant 0 : index
    %103 = vector.load %arg10[%c0_62, %c0_63] : memref<240x256xbf16, #tpu.memory_space<vmem>>, vector<240x256xbf16>
    tpu.vector_store %arg10[%c0_62, %c0_63], %102 {strides = array<i32>} : memref<240x256xbf16, #tpu.memory_space<vmem>>, vector<240x256xbf16>,
    %c0_64 = arith.constant 0 : index
    %c0_65 = arith.constant 0 : index
    %104 = vector.load %arg9[%c0_64, %c0_65] : memref<1x256xf32, #tpu.memory_space<vmem>>, vector<1x256xf32>
    %105 = vector.broadcast %104 : vector<1x256xf32> to vector<240x256xf32>
    %106 = arith.mulf %101, %105 : vector<240x256xf32>
    %cst_66 = arith.constant dense<0.000000e+00> : vector<240xf32>
    %107 = vector.multi_reduction <add>, %106, %cst_66 [1] : vector<240x256xf32> to vector<240xf32>
    %108 = vector.shape_cast %107 : vector<240xf32> to vector<240x1xf32>
    %c0_67 = arith.constant 0 : index
    %c0_68 = arith.constant 0 : index
    %109 = vector.load %arg11[%c0_67, %c0_68] : memref<240x1xf32, #tpu.memory_space<vmem>>, vector<240x1xf32>
    tpu.vector_store %arg11[%c0_67, %c0_68], %108 {strides = array<i32>} : memref<240x1xf32, #tpu.memory_space<vmem>>, vector<240x1xf32>,
    return
  }
  func.func @transform_0(%arg0: i32) -> (i32, i32) {
    %c0_i32 = arith.constant 0 : i32
    %c0_i32_0 = arith.constant 0 : i32
    return %arg0, %c0_i32 : i32, i32
  }
  func.func @transform_1(%arg0: i32) -> (i32, i32, i32) {
    %c0_i32 = arith.constant 0 : i32
    %c0_i32_0 = arith.constant 0 : i32
    %c0_i32_1 = arith.constant 0 : i32
    %c0_i32_2 = arith.constant 0 : i32
    return %c0_i32, %c0_i32_0, %c0_i32_1 : i32, i32, i32
  }
  func.func @transform_2(%arg0: i32) -> (i32, i32, i32) {
    %c0_i32 = arith.constant 0 : i32
    %c0_i32_0 = arith.constant 0 : i32
    %c0_i32_1 = arith.constant 0 : i32
    %c0_i32_2 = arith.constant 0 : i32
    return %c0_i32, %c0_i32_0, %c0_i32_1 : i32, i32, i32
  }
  func.func @transform_3(%arg0: i32) -> (i32, i32, i32) {
    %c0_i32 = arith.constant 0 : i32
    %c0_i32_0 = arith.constant 0 : i32
    %c0_i32_1 = arith.constant 0 : i32
    %c0_i32_2 = arith.constant 0 : i32
    return %c0_i32, %c0_i32_0, %c0_i32_1 : i32, i32, i32
  }
  func.func @transform_4(%arg0: i32) -> (i32, i32, i32) {
    %c0_i32 = arith.constant 0 : i32
    %c0_i32_0 = arith.constant 0 : i32
    %c0_i32_1 = arith.constant 0 : i32
    %c0_i32_2 = arith.constant 0 : i32
    return %c0_i32, %c0_i32_0, %c0_i32_1 : i32, i32, i32
  }
  func.func @transform_5(%arg0: i32) -> (i32, i32) {
    %c0_i32 = arith.constant 0 : i32
    %c0_i32_0 = arith.constant 0 : i32
    %c0_i32_1 = arith.constant 0 : i32
    return %c0_i32, %c0_i32_0 : i32, i32
  }
  func.func @transform_6(%arg0: i32) -> (i32, i32) {
    %c0_i32 = arith.constant 0 : i32
    %c0_i32_0 = arith.constant 0 : i32
    %c0_i32_1 = arith.constant 0 : i32
    return %c0_i32, %c0_i32_0 : i32, i32
  }
  func.func @transform_7(%arg0: i32) -> (i32, i32) {
    %c0_i32 = arith.constant 0 : i32
    %c0_i32_0 = arith.constant 0 : i32
    %c0_i32_1 = arith.constant 0 : i32
    return %c0_i32, %c0_i32_0 : i32, i32
  }
  func.func @transform_8(%arg0: i32) -> (i32, i32) {
    %c0_i32 = arith.constant 0 : i32
    %c0_i32_0 = arith.constant 0 : i32
    %c0_i32_1 = arith.constant 0 : i32
    return %c0_i32, %c0_i32_0 : i32, i32
  }
  func.func @transform_9(%arg0: i32) -> (i32, i32) {
    %c0_i32 = arith.constant 0 : i32
    %c0_i32_0 = arith.constant 0 : i32
    return %arg0, %c0_i32 : i32, i32
  }
  func.func @transform_10(%arg0: i32) -> (i32, i32) {
    %c0_i32 = arith.constant 0 : i32
    %c0_i32_0 = arith.constant 0 : i32
    return %arg0, %c0_i32 : i32, i32
  }
}

</mosaic_0001>

<llo_original>
// kernel: tpu_custom_call.1
$region0: #{tpu_custom_call.1}
  #allocation0 [shape = 'u32[]', space=smem, size = 0x4, offset = 0x4, fixed_abs, tag = 'smem constant byte address 0x4 - core index']
  #allocation1 [shape = 'u32[144,128]{1,0:T(1,128)}', space=vmem, size = 0x12000, scoped, tag = 'internal scratch']
  %s0 = inlined_call_operand.vmem [shape: bf16[1440,9], index: 0, kind: input, shape index: {}]
  %s1 = inlined_call_operand.vmem [shape: bf16[3,9,256], index: 1, kind: input, shape index: {}]
  %s2 = inlined_call_operand.vmem [shape: f32[3,1,256], index: 2, kind: input, shape index: {}]
  %s3 = inlined_call_operand.vmem [shape: bf16[3,256,256], index: 3, kind: input, shape index: {}]
  %s4 = inlined_call_operand.vmem [shape: f32[3,1,256], index: 4, kind: input, shape index: {}]
  %s5 = inlined_call_operand.hbm [shape: bf16[256,256], index: 5, kind: input, shape index: {}]
  %s6 = inlined_call_operand.vmem [shape: f32[3,256], index: 6, kind: input, shape index: {}]
  %s7 = inlined_call_operand.vmem [shape: f32[1,256], index: 7, kind: input, shape index: {}]
  %s8 = inlined_call_operand.vmem [shape: f32[1,256], index: 8, kind: input, shape index: {}]
  %s9 = inlined_call_operand.hbm [shape: bf16[240,256], index: 9, kind: output, shape index: {0}]
  %s10 = inlined_call_operand.vmem [shape: f32[240,1], index: 10, kind: output, shape index: {1}]
  %11 = xla_tuple %s9, %s10
  %s12 = sld [smem:[#allocation0]]
  $region58: #{tpu_custom_call.1} parent=0
    _
  %s14 = ssub.s32 1, %s12
  %s15 = scalar_select 0, %s14, %s12
  $region1: #{tpu_custom_call.1} parent=0
    #allocation2 [shape = 'u8[131072]{0}', space=vmem, size = 0x20000, scoped, tag = 'input window, operand 5, single buffered']
    #allocation3 [shape = 's32[1]{0}', space=sflag, size = 0x4, scoped, tag = 'scoped memory for tpu_custom_call.1']
    #allocation4 [shape = 's32[1]{0}', space=sflag, size = 0x4, scoped, tag = 'scoped memory for tpu_custom_call.1']
    #allocation5 [shape = 'u8[122880]{0}', space=vmem, size = 0x1e000, scoped, tag = 'output window, operand 0, single buffered']
    %16 = vsyncpa [#allocation3], 0
    %17 = vsyncpa [#allocation4], 0
    // Predicated region
    $region2: #{tpu_custom_call.1} parent=1 // pred_check
      _
    $region3: #{tpu_custom_call.1} parent=1 // pred_check_branch
      %19 = sbr.rel (0) target = $region5
    $region4: #{tpu_custom_call.1} parent=1 // pred_region
      _
    $region5: #{tpu_custom_call.1} parent=1 // pred_fallthru
      _
    // Predicated region
    $region6: #{tpu_custom_call.1} parent=1 // pred_check
      _
    $region7: #{tpu_custom_call.1} parent=1 // pred_check_branch
      %21 = sbr.rel (0) target = $region9
    $region8: #{tpu_custom_call.1} parent=1 // pred_region
      _
    $region9: #{tpu_custom_call.1} parent=1 // pred_fallthru
      _
    // Predicated region
    $region10: #{tpu_custom_call.1} parent=1 // pred_check
      _
    $region11: #{tpu_custom_call.1} parent=1 // pred_check_branch
      %23 = sbr.rel (0) target = $region13
    $region12: #{tpu_custom_call.1} parent=1 // pred_region
      _
    $region13: #{tpu_custom_call.1} parent=1 // pred_fallthru
      _
    // Predicated region
    $region14: #{tpu_custom_call.1} parent=1 // pred_check
      _
    $region15: #{tpu_custom_call.1} parent=1 // pred_check_branch
      %25 = sbr.rel (0) target = $region17
    $region16: #{tpu_custom_call.1} parent=1 // pred_region
      _
    $region17: #{tpu_custom_call.1} parent=1 // pred_fallthru
      _
    // Predicated region
    $region18: #{tpu_custom_call.1} parent=1 // pred_check
      _
    $region19: #{tpu_custom_call.1} parent=1 // pred_check_branch
      %27 = sbr.rel (0) target = $region21
    $region20: #{tpu_custom_call.1} parent=1 // pred_region
      _
    $region21: #{tpu_custom_call.1} parent=1 // pred_fallthru
      _
    // Predicated region
    $region22: #{tpu_custom_call.1} parent=1 // pred_check
      _
    $region23: #{tpu_custom_call.1} parent=1 // pred_check_branch
      %29 = sbr.rel (0) target = $region25
    $region24: #{tpu_custom_call.1} parent=1 // pred_region
      %s31 = ssub.s32 4096, 4096
      %32 = vsyncadd [#allocation3], %s31
      %s33 = sshll.u32 [#allocation2], 4
      %s34 = int_to_ptr.vmem [resolvable:$true] %s33
      %39 = dma.hbm_to_vmem [thread:$0]  %s5, 4096, %s34, [#allocation3], 128, 128, 8
    $region25: #{tpu_custom_call.1} parent=1 // pred_fallthru
      _
    // Predicated region
    $region26: #{tpu_custom_call.1} parent=1 // pred_check
      _
    $region27: #{tpu_custom_call.1} parent=1 // pred_check_branch
      %41 = sbr.rel (0) target = $region29
    $region28: #{tpu_custom_call.1} parent=1 // pred_region
      _
    $region29: #{tpu_custom_call.1} parent=1 // pred_fallthru
      _
    // Predicated region
    $region30: #{tpu_custom_call.1} parent=1 // pred_check
      _
    $region31: #{tpu_custom_call.1} parent=1 // pred_check_branch
      %43 = sbr.rel (0) target = $region33
    $region32: #{tpu_custom_call.1} parent=1 // pred_region
      _
    $region33: #{tpu_custom_call.1} parent=1 // pred_fallthru
      _
    // Predicated region
    $region34: #{tpu_custom_call.1} parent=1 // pred_check
      _
    $region35: #{tpu_custom_call.1} parent=1 // pred_check_branch
      %45 = sbr.rel (0) target = $region37
    $region36: #{tpu_custom_call.1} parent=1 // pred_region
      _
    $region37: #{tpu_custom_call.1} parent=1 // pred_fallthru
      _
    // Predicated region
    $region38: #{tpu_custom_call.1} parent=1 // pred_check
      _
    $region39: #{tpu_custom_call.1} parent=1 // pred_check_branch
      %47 = sbr.rel (0) target = $region41
    $region40: #{tpu_custom_call.1} parent=1 // pred_region
      %48 = dma.done [#allocation3], 4096
    $region41: #{tpu_custom_call.1} parent=1 // pred_fallthru
      _
    %v50 = vld [vmem:[%s0] sm:$0xf]
    %v51 = vld [vmem:[%s0 + $0x4] sm:$0xf]
    %v52 = vld [vmem:[%s0 + $0x8] sm:$0xf]
    %v53 = vld [vmem:[%s0 + $0xc] sm:$0xf]
    %v54 = vld [vmem:[%s0 + $0x10] sm:$0xf]
    %v55 = vld [vmem:[%s0 + $0x14] sm:$0xf]
    %v56 = vld [vmem:[%s0 + $0x18] sm:$0xf]
    %v57 = vld [vmem:[%s0 + $0x1c] sm:$0xf]
    %v58 = vld [vmem:[%s0 + $0x20] sm:$0xf]
    %v59 = vld [vmem:[%s0 + $0x24] sm:$0xf]
    %v60 = vld [vmem:[%s0 + $0x28] sm:$0xf]
    %v61 = vld [vmem:[%s0 + $0x2c] sm:$0xf]
    %v62 = vld [vmem:[%s0 + $0x30] sm:$0xf]
    %v63 = vld [vmem:[%s0 + $0x34] sm:$0xf]
    %v64 = vld [vmem:[%s0 + $0x38] sm:$0xf]
    %v65 = vld [vmem:[%s0 + $0x3c] sm:$0xf]
    %v66 = vld [vmem:[%s0 + $0x40] sm:$0xf]
    %v67 = vld [vmem:[%s0 + $0x44] sm:$0xf]
    %v68 = vld [vmem:[%s0 + $0x48] sm:$0xf]
    %v69 = vld [vmem:[%s0 + $0x4c] sm:$0xf]
    %v70 = vld [vmem:[%s0 + $0x50] sm:$0xf]
    %v71 = vld [vmem:[%s0 + $0x54] sm:$0xf]
    %v72 = vld [vmem:[%s0 + $0x58] sm:$0xf]
    %v73 = vld [vmem:[%s0 + $0x5c] sm:$0xf]
    %v74 = vld [vmem:[%s0 + $0x60] sm:$0xf]
    %v75 = vld [vmem:[%s0 + $0x64] sm:$0xf]
    %v76 = vld [vmem:[%s0 + $0x68] sm:$0xf]
    %v77 = vld [vmem:[%s0 + $0x6c] sm:$0xf]
    %v78 = vld [vmem:[%s0 + $0x70] sm:$0xf]
    %v79 = vld [vmem:[%s0 + $0x74] sm:$0xf]
    %v80 = vld [vmem:[%s0 + $0x78] sm:$0xf]
    %v81 = vld [vmem:[%s0 + $0x7c] sm:$0xf]
    %v82 = vld [vmem:[%s0 + $0x80] sm:$0xf]
    %v83 = vld [vmem:[%s0 + $0x84] sm:$0xf]
    %v84 = vld [vmem:[%s0 + $0x88] sm:$0xf]
    %v85 = vld [vmem:[%s0 + $0x8c] sm:$0xf]
    %v86 = vld [vmem:[%s0 + $0x90] sm:$0xf]
    %v87 = vld [vmem:[%s0 + $0x94] sm:$0xf]
    %v88 = vld [vmem:[%s0 + $0x98] sm:$0xf]
    %v89 = vld [vmem:[%s0 + $0x9c] sm:$0xf]
    %v90 = vld [vmem:[%s0 + $0xa0] sm:$0xf]
    %v91 = vld [vmem:[%s0 + $0xa4] sm:$0xf]
    %v92 = vld [vmem:[%s0 + $0xa8] sm:$0xf]
    %v93 = vld [vmem:[%s0 + $0xac] sm:$0xf]
    %v94 = vld [vmem:[%s0 + $0xb0] sm:$0xf]
    %v95 = vld [vmem:[%s0 + $0xb4] sm:$0xf]
    %v96 = vld [vmem:[%s0 + $0xb8] sm:$0xf]
    %v97 = vld [vmem:[%s0 + $0xbc] sm:$0xf]
    %v98 = vld [vmem:[%s0 + $0xc0] sm:$0xf]
    %v99 = vld [vmem:[%s0 + $0xc4] sm:$0xf]
    %v100 = vld [vmem:[%s0 + $0xc8] sm:$0xf]
    %v101 = vld [vmem:[%s0 + $0xcc] sm:$0xf]
    %v102 = vld [vmem:[%s0 + $0xd0] sm:$0xf]
    %v103 = vld [vmem:[%s0 + $0xd4] sm:$0xf]
    %v104 = vld [vmem:[%s0 + $0xd8] sm:$0xf]
    %v105 = vld [vmem:[%s0 + $0xdc] sm:$0xf]
    %v106 = vld [vmem:[%s0 + $0xe0] sm:$0xf]
    %v107 = vld [vmem:[%s0 + $0xe4] sm:$0xf]
    %v108 = vld [vmem:[%s0 + $0xe8] sm:$0xf]
    %v109 = vld [vmem:[%s0 + $0xec] sm:$0xf]
    %v110 = vld [vmem:[%s1] sm:$0xff]
    %v111 = vld [vmem:[%s1 + $0x8] sm:$0x11]
    %v112 = vld [vmem:[%s2] sm:$0x3]
    %v114 = vlaneseq
    %v115 = vshrl.u32 %v114, 7
    %v116 = vsub.s32 0, %v115
    %v117 = vrot.slane %v112, %v116
    %v118 = vlaneseq
    %v119 = vshrl.u32 %v118, 7
    %v120 = vsub.s32 1, %v119
    %v121 = vrot.slane %v112, %v120
    %v184 = vunpack.c.l.b16 %v50
    %v185 = vunpack.c.l.b16 %v51
    %v186 = vunpack.c.l.b16 %v52
    %v187 = vunpack.c.l.b16 %v53
    %v188 = vunpack.c.l.b16 %v54
    %v189 = vunpack.c.l.b16 %v55
    %v190 = vunpack.c.l.b16 %v56
    %v191 = vunpack.c.l.b16 %v57
    %v192 = vunpack.c.l.b16 %v58
    %v193 = vunpack.c.l.b16 %v59
    %v194 = vunpack.c.l.b16 %v60
    %v195 = vunpack.c.l.b16 %v61
    %v196 = vunpack.c.l.b16 %v62
    %v197 = vunpack.c.l.b16 %v63
    %v198 = vunpack.c.l.b16 %v64
    %v199 = vunpack.c.l.b16 %v65
    %v200 = vunpack.c.l.b16 %v66
    %v201 = vunpack.c.l.b16 %v67
    %v202 = vunpack.c.l.b16 %v68
    %v203 = vunpack.c.l.b16 %v69
    %v204 = vunpack.c.l.b16 %v70
    %v205 = vunpack.c.l.b16 %v71
    %v206 = vunpack.c.l.b16 %v72
    %v207 = vunpack.c.l.b16 %v73
    %v208 = vunpack.c.l.b16 %v74
    %v209 = vunpack.c.l.b16 %v75
    %v210 = vunpack.c.l.b16 %v76
    %v211 = vunpack.c.l.b16 %v77
    %v212 = vunpack.c.l.b16 %v78
    %v213 = vunpack.c.l.b16 %v79
    %v214 = vunpack.c.l.b16 %v80
    %v215 = vunpack.c.l.b16 %v81
    %v216 = vunpack.c.l.b16 %v82
    %v217 = vunpack.c.l.b16 %v83
    %v218 = vunpack.c.l.b16 %v84
    %v219 = vunpack.c.l.b16 %v85
    %v220 = vunpack.c.l.b16 %v86
    %v221 = vunpack.c.l.b16 %v87
    %v222 = vunpack.c.l.b16 %v88
    %v223 = vunpack.c.l.b16 %v89
    %v224 = vunpack.c.l.b16 %v90
    %v225 = vunpack.c.l.b16 %v91
    %v226 = vunpack.c.l.b16 %v92
    %v227 = vunpack.c.l.b16 %v93
    %v228 = vunpack.c.l.b16 %v94
    %v229 = vunpack.c.l.b16 %v95
    %v230 = vunpack.c.l.b16 %v96
    %v231 = vunpack.c.l.b16 %v97
    %v232 = vunpack.c.l.b16 %v98
    %v233 = vunpack.c.l.b16 %v99
    %v234 = vunpack.c.l.b16 %v100
    %v235 = vunpack.c.l.b16 %v101
    %v236 = vunpack.c.l.b16 %v102
    %v237 = vunpack.c.l.b16 %v103
    %v238 = vunpack.c.l.b16 %v104
    %v239 = vunpack.c.l.b16 %v105
    %v240 = vunpack.c.l.b16 %v106
    %v241 = vunpack.c.l.b16 %v107
    %v242 = vunpack.c.l.b16 %v108
    %v243 = vunpack.c.l.b16 %v109
    %v244 = vpack.c.b16 %v185, %v184
    %v245 = vpack.c.b16 %v187, %v186
    %v246 = vpack.c.b16 %v189, %v188
    %v247 = vpack.c.b16 %v191, %v190
    %v248 = vpack.c.b16 %v193, %v192
    %v249 = vpack.c.b16 %v195, %v194
    %v250 = vpack.c.b16 %v197, %v196
    %v251 = vpack.c.b16 %v199, %v198
    %v252 = vpack.c.b16 %v201, %v200
    %v253 = vpack.c.b16 %v203, %v202
    %v254 = vpack.c.b16 %v205, %v204
    %v255 = vpack.c.b16 %v207, %v206
    %v256 = vpack.c.b16 %v209, %v208
    %v257 = vpack.c.b16 %v211, %v210
    %v258 = vpack.c.b16 %v213, %v212
    %v259 = vpack.c.b16 %v215, %v214
    %v260 = vpack.c.b16 %v217, %v216
    %v261 = vpack.c.b16 %v219, %v218
    %v262 = vpack.c.b16 %v221, %v220
    %v263 = vpack.c.b16 %v223, %v222
    %v264 = vpack.c.b16 %v225, %v224
    %v265 = vpack.c.b16 %v227, %v226
    %v266 = vpack.c.b16 %v229, %v228
    %v267 = vpack.c.b16 %v231, %v230
    %v268 = vpack.c.b16 %v233, %v232
    %v269 = vpack.c.b16 %v235, %v234
    %v270 = vpack.c.b16 %v237, %v236
    %v271 = vpack.c.b16 %v239, %v238
    %v272 = vpack.c.b16 %v241, %v240
    %v273 = vpack.c.b16 %v243, %v242
    %v276 = vunpack.c.l.b16 %v110
    %v277 = vunpack.c.h.b16 %v110
    %v278 = vunpack.c.l.b16 %v111
    %v279 = vunpack.c.h.b16 %v111
    %v280 = vpack.c.b16 %v278, %v276
    %v281 = vpack.c.b16 %v279, %v277
    %vm282 = vcmask 72704
    %v284 = vsel %vm282, %v244, 0
    %v287 = vsel %vm282, %v245, 0
    %v290 = vsel %vm282, %v246, 0
    %v293 = vsel %vm282, %v247, 0
    %v296 = vsel %vm282, %v248, 0
    %v299 = vsel %vm282, %v249, 0
    %v302 = vsel %vm282, %v250, 0
    %v305 = vsel %vm282, %v251, 0
    %v308 = vsel %vm282, %v252, 0
    %v311 = vsel %vm282, %v253, 0
    %v314 = vsel %vm282, %v254, 0
    %v317 = vsel %vm282, %v255, 0
    %v320 = vsel %vm282, %v256, 0
    %v323 = vsel %vm282, %v257, 0
    %v326 = vsel %vm282, %v258, 0
    %v329 = vsel %vm282, %v259, 0
    %v332 = vsel %vm282, %v260, 0
    %v335 = vsel %vm282, %v261, 0
    %v338 = vsel %vm282, %v262, 0
    %v341 = vsel %vm282, %v263, 0
    %v344 = vsel %vm282, %v264, 0
    %v347 = vsel %vm282, %v265, 0
    %v350 = vsel %vm282, %v266, 0
    %v353 = vsel %vm282, %v267, 0
    %v356 = vsel %vm282, %v268, 0
    %v359 = vsel %vm282, %v269, 0
    %v362 = vsel %vm282, %v270, 0
    %v365 = vsel %vm282, %v271, 0
    %v368 = vsel %vm282, %v272, 0
    %v371 = vsel %vm282, %v273, 0
    %vm373 = vcmask 1043456
    %vm374 = vcmask 1044480
    %v375 = vsel %vm373, 4294967295, 65535
    %v376 = vsel %vm374, %v375, 0
    %v378 = vand.u32 %v280, %v376
    %v381 = vand.u32 %v281, %v376
    %383 = vmatprep.subr.bf16.mxu0 %v381
    %384 = vmatpush1.bf16.msra.mxu0 %v378
    %385 = vmatprep.subr.bf16.mxu0 0
    %386 = vmatpush1.bf16.msra.mxu0 0
    %387 = vmatprep.subr.bf16.mxu0 0
    %388 = vmatpush1.bf16.msra.mxu0 0
    %389 = vmatprep.subr.bf16.mxu0 0
    %390 = vmatpush1.bf16.msra.mxu0 0
    %391 = vmatprep.subr.bf16.mxu0 0
    %392 = vmatpush1.bf16.msra.mxu0 0
    %393 = vmatprep.subr.bf16.mxu0 0
    %394 = vmatpush1.bf16.msra.mxu0 0
    %395 = vmatprep.subr.bf16.mxu0 0
    %396 = vmatpush1.bf16.msra.mxu0 0
    %397 = vmatprep.subr.bf16.mxu0 0
    %398 = vmatpush1.bf16.msra.mxu0 0
    %399 = vmatprep.subr.bf16.mxu0 0
    %400 = vmatpush1.bf16.msra.mxu0 0
    %401 = vmatprep.subr.bf16.mxu0 0
    %402 = vmatpush1.bf16.msra.mxu0 0
    %403 = vmatprep.subr.bf16.mxu0 0
    %404 = vmatpush1.bf16.msra.mxu0 0
    %405 = vmatprep.subr.bf16.mxu0 0
    %406 = vmatpush1.bf16.msra.mxu0 0
    %407 = vmatprep.subr.bf16.mxu0 0
    %408 = vmatpush1.bf16.msra.mxu0 0
    %409 = vmatprep.subr.bf16.mxu0 0
    %410 = vmatpush1.bf16.msra.mxu0 0
    %411 = vmatprep.subr.bf16.mxu0 0
    %412 = vmatpush1.bf16.msra.mxu0 0
    %413 = vmatprep.subr.bf16.mxu0 0
    %414 = vmatpush1.bf16.msra.mxu0 0
    %415 = vmatprep.mubr.bf16.mxu0 0
    %416 = vmatmul.mubr.bf16.gmra.mrb[0].mxu0 %v284
    %v417 = vpop.f32.mrb[0].mxu0
    %v418 = vadd.f32 %v117, %v417
    %v419 = vpop.f32.mrb[0].mxu0
    %v420 = vadd.f32 %v121, %v419
    %v421 = vpop.f32.mrb[0].mxu0
    %v422 = vadd.f32 %v117, %v421
    %v423 = vpop.f32.mrb[0].mxu0
    %v424 = vadd.f32 %v121, %v423
    %425 = vmatprep.mubr.bf16.mxu0 0
    %426 = vmatmul.mubr.bf16.gmra.mrb[0].mxu0 %v287
    %v427 = vpop.f32.mrb[0].mxu0
    %v428 = vadd.f32 %v117, %v427
    %v429 = vpop.f32.mrb[0].mxu0
    %v430 = vadd.f32 %v121, %v429
    %v431 = vpop.f32.mrb[0].mxu0
    %v432 = vadd.f32 %v117, %v431
    %v433 = vpop.f32.mrb[0].mxu0
    %v434 = vadd.f32 %v121, %v433
    %435 = vmatprep.mubr.bf16.mxu0 0
    %436 = vmatmul.mubr.bf16.gmra.mrb[0].mxu0 %v290
    %v437 = vpop.f32.mrb[0].mxu0
    %v438 = vadd.f32 %v117, %v437
    %v439 = vpop.f32.mrb[0].mxu0
    %v440 = vadd.f32 %v121, %v439
    %v441 = vpop.f32.mrb[0].mxu0
    %v442 = vadd.f32 %v117, %v441
    %v443 = vpop.f32.mrb[0].mxu0
    %v444 = vadd.f32 %v121, %v443
    %445 = vmatprep.mubr.bf16.mxu0 0
    %446 = vmatmul.mubr.bf16.gmra.mrb[0].mxu0 %v293
    %v447 = vpop.f32.mrb[0].mxu0
    %v448 = vadd.f32 %v117, %v447
    %v449 = vpop.f32.mrb[0].mxu0
    %v450 = vadd.f32 %v121, %v449
    %v451 = vpop.f32.mrb[0].mxu0
    %v452 = vadd.f32 %v117, %v451
    %v453 = vpop.f32.mrb[0].mxu0
    %v454 = vadd.f32 %v121, %v453
    %455 = vmatprep.mubr.bf16.mxu0 0
    %456 = vmatmul.mubr.bf16.gmra.mrb[0].mxu0 %v296
    %v457 = vpop.f32.mrb[0].mxu0
    %v458 = vadd.f32 %v117, %v457
    %v459 = vpop.f32.mrb[0].mxu0
    %v460 = vadd.f32 %v121, %v459
    %v461 = vpop.f32.mrb[0].mxu0
    %v462 = vadd.f32 %v117, %v461
    %v463 = vpop.f32.mrb[0].mxu0
    %v464 = vadd.f32 %v121, %v463
    %465 = vmatprep.mubr.bf16.mxu0 0
    %466 = vmatmul.mubr.bf16.gmra.mrb[0].mxu0 %v299
    %v467 = vpop.f32.mrb[0].mxu0
    %v468 = vadd.f32 %v117, %v467
    %v469 = vpop.f32.mrb[0].mxu0
    %v470 = vadd.f32 %v121, %v469
    %v471 = vpop.f32.mrb[0].mxu0
    %v472 = vadd.f32 %v117, %v471
    %v473 = vpop.f32.mrb[0].mxu0
    %v474 = vadd.f32 %v121, %v473
    %475 = vmatprep.mubr.bf16.mxu0 0
    %476 = vmatmul.mubr.bf16.gmra.mrb[0].mxu0 %v302
    %v477 = vpop.f32.mrb[0].mxu0
    %v478 = vadd.f32 %v117, %v477
    %v479 = vpop.f32.mrb[0].mxu0
    %v480 = vadd.f32 %v121, %v479
    %v481 = vpop.f32.mrb[0].mxu0
    %v482 = vadd.f32 %v117, %v481
    %v483 = vpop.f32.mrb[0].mxu0
    %v484 = vadd.f32 %v121, %v483
    %485 = vmatprep.mubr.bf16.mxu0 0
    %486 = vmatmul.mubr.bf16.gmra.mrb[0].mxu0 %v305
    %v487 = vpop.f32.mrb[0].mxu0
    %v488 = vadd.f32 %v117, %v487
    %v489 = vpop.f32.mrb[0].mxu0
    %v490 = vadd.f32 %v121, %v489
    %v491 = vpop.f32.mrb[0].mxu0
    %v492 = vadd.f32 %v117, %v491
    %v493 = vpop.f32.mrb[0].mxu0
    %v494 = vadd.f32 %v121, %v493
    %495 = vmatprep.mubr.bf16.mxu0 0
    %496 = vmatmul.mubr.bf16.gmra.mrb[0].mxu0 %v308
    %v497 = vpop.f32.mrb[0].mxu0
    %v498 = vadd.f32 %v117, %v497
    %v499 = vpop.f32.mrb[0].mxu0
    %v500 = vadd.f32 %v121, %v499
    %v501 = vpop.f32.mrb[0].mxu0
    %v502 = vadd.f32 %v117, %v501
    %v503 = vpop.f32.mrb[0].mxu0
    %v504 = vadd.f32 %v121, %v503
    %505 = vmatprep.mubr.bf16.mxu0 0
    %506 = vmatmul.mubr.bf16.gmra.mrb[0].mxu0 %v311
    %v507 = vpop.f32.mrb[0].mxu0
    %v508 = vadd.f32 %v117, %v507
    %v509 = vpop.f32.mrb[0].mxu0
    %v510 = vadd.f32 %v121, %v509
    %v511 = vpop.f32.mrb[0].mxu0
    %v512 = vadd.f32 %v117, %v511
    %v513 = vpop.f32.mrb[0].mxu0
    %v514 = vadd.f32 %v121, %v513
    %515 = vmatprep.mubr.bf16.mxu0 0
    %516 = vmatmul.mubr.bf16.gmra.mrb[0].mxu0 %v314
    %v517 = vpop.f32.mrb[0].mxu0
    %v518 = vadd.f32 %v117, %v517
    %v519 = vpop.f32.mrb[0].mxu0
    %v520 = vadd.f32 %v121, %v519
    %v521 = vpop.f32.mrb[0].mxu0
    %v522 = vadd.f32 %v117, %v521
    %v523 = vpop.f32.mrb[0].mxu0
    %v524 = vadd.f32 %v121, %v523
    %525 = vmatprep.mubr.bf16.mxu0 0
    %526 = vmatmul.mubr.bf16.gmra.mrb[0].mxu0 %v317
    %v527 = vpop.f32.mrb[0].mxu0
    %v528 = vadd.f32 %v117, %v527
    %v529 = vpop.f32.mrb[0].mxu0
    %v530 = vadd.f32 %v121, %v529
    %v531 = vpop.f32.mrb[0].mxu0
    %v532 = vadd.f32 %v117, %v531
    %v533 = vpop.f32.mrb[0].mxu0
    %v534 = vadd.f32 %v121, %v533
    %535 = vmatprep.mubr.bf16.mxu0 0
    %536 = vmatmul.mubr.bf16.gmra.mrb[0].mxu0 %v320
    %v537 = vpop.f32.mrb[0].mxu0
    %v538 = vadd.f32 %v117, %v537
    %v539 = vpop.f32.mrb[0].mxu0
    %v540 = vadd.f32 %v121, %v539
    %v541 = vpop.f32.mrb[0].mxu0
    %v542 = vadd.f32 %v117, %v541
    %v543 = vpop.f32.mrb[0].mxu0
    %v544 = vadd.f32 %v121, %v543
    %545 = vmatprep.mubr.bf16.mxu0 0
    %546 = vmatmul.mubr.bf16.gmra.mrb[0].mxu0 %v323
    %v547 = vpop.f32.mrb[0].mxu0
    %v548 = vadd.f32 %v117, %v547
    %v549 = vpop.f32.mrb[0].mxu0
    %v550 = vadd.f32 %v121, %v549
    %v551 = vpop.f32.mrb[0].mxu0
    %v552 = vadd.f32 %v117, %v551
    %v553 = vpop.f32.mrb[0].mxu0
    %v554 = vadd.f32 %v121, %v553
    %555 = vmatprep.mubr.bf16.mxu0 0
    %556 = vmatmul.mubr.bf16.gmra.mrb[0].mxu0 %v326
    %v557 = vpop.f32.mrb[0].mxu0
    %v558 = vadd.f32 %v117, %v557
    %v559 = vpop.f32.mrb[0].mxu0
    %v560 = vadd.f32 %v121, %v559
    %v561 = vpop.f32.mrb[0].mxu0
    %v562 = vadd.f32 %v117, %v561
    %v563 = vpop.f32.mrb[0].mxu0
    %v564 = vadd.f32 %v121, %v563
    %565 = vmatprep.mubr.bf16.mxu0 0
    %566 = vmatmul.mubr.bf16.gmra.mrb[0].mxu0 %v329
    %v567 = vpop.f32.mrb[0].mxu0
    %v568 = vadd.f32 %v117, %v567
    %v569 = vpop.f32.mrb[0].mxu0
    %v570 = vadd.f32 %v121, %v569
    %v571 = vpop.f32.mrb[0].mxu0
    %v572 = vadd.f32 %v117, %v571
    %v573 = vpop.f32.mrb[0].mxu0
    %v574 = vadd.f32 %v121, %v573
    %575 = vmatprep.mubr.bf16.mxu0 0
    %576 = vmatmul.mubr.bf16.gmra.mrb[0].mxu0 %v332
    %v577 = vpop.f32.mrb[0].mxu0
    %v578 = vadd.f32 %v117, %v577
    %v579 = vpop.f32.mrb[0].mxu0
    %v580 = vadd.f32 %v121, %v579
    %v581 = vpop.f32.mrb[0].mxu0
    %v582 = vadd.f32 %v117, %v581
    %v583 = vpop.f32.mrb[0].mxu0
    %v584 = vadd.f32 %v121, %v583
    %585 = vmatprep.mubr.bf16.mxu0 0
    %586 = vmatmul.mubr.bf16.gmra.mrb[0].mxu0 %v335
    %v587 = vpop.f32.mrb[0].mxu0
    %v588 = vadd.f32 %v117, %v587
    %v589 = vpop.f32.mrb[0].mxu0
    %v590 = vadd.f32 %v121, %v589
    %v591 = vpop.f32.mrb[0].mxu0
    %v592 = vadd.f32 %v117, %v591
    %v593 = vpop.f32.mrb[0].mxu0
    %v594 = vadd.f32 %v121, %v593
    %595 = vmatprep.mubr.bf16.mxu0 0
    %596 = vmatmul.mubr.bf16.gmra.mrb[0].mxu0 %v338
    %v597 = vpop.f32.mrb[0].mxu0
    %v598 = vadd.f32 %v117, %v597
    %v599 = vpop.f32.mrb[0].mxu0
    %v600 = vadd.f32 %v121, %v599
    %v601 = vpop.f32.mrb[0].mxu0
    %v602 = vadd.f32 %v117, %v601
    %v603 = vpop.f32.mrb[0].mxu0
    %v604 = vadd.f32 %v121, %v603
    %605 = vmatprep.mubr.bf16.mxu0 0
    %606 = vmatmul.mubr.bf16.gmra.mrb[0].mxu0 %v341
    %v607 = vpop.f32.mrb[0].mxu0
    %v608 = vadd.f32 %v117, %v607
    %v609 = vpop.f32.mrb[0].mxu0
    %v610 = vadd.f32 %v121, %v609
    %v611 = vpop.f32.mrb[0].mxu0
    %v612 = vadd.f32 %v117, %v611
    %v613 = vpop.f32.mrb[0].mxu0
    %v614 = vadd.f32 %v121, %v613
    %615 = vmatprep.mubr.bf16.mxu0 0
    %616 = vmatmul.mubr.bf16.gmra.mrb[0].mxu0 %v344
    %v617 = vpop.f32.mrb[0].mxu0
    %v618 = vadd.f32 %v117, %v617
    %v619 = vpop.f32.mrb[0].mxu0
    %v620 = vadd.f32 %v121, %v619
    %v621 = vpop.f32.mrb[0].mxu0
    %v622 = vadd.f32 %v117, %v621
    %v623 = vpop.f32.mrb[0].mxu0
    %v624 = vadd.f32 %v121, %v623
    %625 = vmatprep.mubr.bf16.mxu0 0
    %626 = vmatmul.mubr.bf16.gmra.mrb[0].mxu0 %v347
    %v627 = vpop.f32.mrb[0].mxu0
    %v628 = vadd.f32 %v117, %v627
    %v629 = vpop.f32.mrb[0].mxu0
    %v630 = vadd.f32 %v121, %v629
    %v631 = vpop.f32.mrb[0].mxu0
    %v632 = vadd.f32 %v117, %v631
    %v633 = vpop.f32.mrb[0].mxu0
    %v634 = vadd.f32 %v121, %v633
    %635 = vmatprep.mubr.bf16.mxu0 0
    %636 = vmatmul.mubr.bf16.gmra.mrb[0].mxu0 %v350
    %v637 = vpop.f32.mrb[0].mxu0
    %v638 = vadd.f32 %v117, %v637
    %v639 = vpop.f32.mrb[0].mxu0
    %v640 = vadd.f32 %v121, %v639
    %v641 = vpop.f32.mrb[0].mxu0
    %v642 = vadd.f32 %v117, %v641
    %v643 = vpop.f32.mrb[0].mxu0
    %v644 = vadd.f32 %v121, %v643
    %645 = vmatprep.mubr.bf16.mxu0 0
    %646 = vmatmul.mubr.bf16.gmra.mrb[0].mxu0 %v353
    %v647 = vpop.f32.mrb[0].mxu0
    %v648 = vadd.f32 %v117, %v647
    %v649 = vpop.f32.mrb[0].mxu0
    %v650 = vadd.f32 %v121, %v649
    %v651 = vpop.f32.mrb[0].mxu0
    %v652 = vadd.f32 %v117, %v651
    %v653 = vpop.f32.mrb[0].mxu0
    %v654 = vadd.f32 %v121, %v653
    %655 = vmatprep.mubr.bf16.mxu0 0
    %656 = vmatmul.mubr.bf16.gmra.mrb[0].mxu0 %v356
    %v657 = vpop.f32.mrb[0].mxu0
    %v658 = vadd.f32 %v117, %v657
    %v659 = vpop.f32.mrb[0].mxu0
    %v660 = vadd.f32 %v121, %v659
    %v661 = vpop.f32.mrb[0].mxu0
    %v662 = vadd.f32 %v117, %v661
    %v663 = vpop.f32.mrb[0].mxu0
    %v664 = vadd.f32 %v121, %v663
    %665 = vmatprep.mubr.bf16.mxu0 0
    %666 = vmatmul.mubr.bf16.gmra.mrb[0].mxu0 %v359
    %v667 = vpop.f32.mrb[0].mxu0
    %v668 = vadd.f32 %v117, %v667
    %v669 = vpop.f32.mrb[0].mxu0
    %v670 = vadd.f32 %v121, %v669
    %v671 = vpop.f32.mrb[0].mxu0
    %v672 = vadd.f32 %v117, %v671
    %v673 = vpop.f32.mrb[0].mxu0
    %v674 = vadd.f32 %v121, %v673
    %675 = vmatprep.mubr.bf16.mxu0 0
    %676 = vmatmul.mubr.bf16.gmra.mrb[0].mxu0 %v362
    %v677 = vpop.f32.mrb[0].mxu0
    %v678 = vadd.f32 %v117, %v677
    %v679 = vpop.f32.mrb[0].mxu0
    %v680 = vadd.f32 %v121, %v679
    %v681 = vpop.f32.mrb[0].mxu0
    %v682 = vadd.f32 %v117, %v681
    %v683 = vpop.f32.mrb[0].mxu0
    %v684 = vadd.f32 %v121, %v683
    %685 = vmatprep.mubr.bf16.mxu0 0
    %686 = vmatmul.mubr.bf16.gmra.mrb[0].mxu0 %v365
    %v687 = vpop.f32.mrb[0].mxu0
    %v688 = vadd.f32 %v117, %v687
    %v689 = vpop.f32.mrb[0].mxu0
    %v690 = vadd.f32 %v121, %v689
    %v691 = vpop.f32.mrb[0].mxu0
    %v692 = vadd.f32 %v117, %v691
    %v693 = vpop.f32.mrb[0].mxu0
    %v694 = vadd.f32 %v121, %v693
    %695 = vmatprep.mubr.bf16.mxu0 0
    %696 = vmatmul.mubr.bf16.gmra.mrb[0].mxu0 %v368
    %v697 = vpop.f32.mrb[0].mxu0
    %v698 = vadd.f32 %v117, %v697
    %v699 = vpop.f32.mrb[0].mxu0
    %v700 = vadd.f32 %v121, %v699
    %v701 = vpop.f32.mrb[0].mxu0
    %v702 = vadd.f32 %v117, %v701
    %v703 = vpop.f32.mrb[0].mxu0
    %v704 = vadd.f32 %v121, %v703
    %705 = vmatprep.mubr.bf16.mxu0 0
    %706 = vmatmul.mubr.bf16.gmra.mrb[0].mxu0 %v371
    %v707 = vpop.f32.mrb[0].mxu0
    %v708 = vadd.f32 %v117, %v707
    %v709 = vpop.f32.mrb[0].mxu0
    %v710 = vadd.f32 %v121, %v709
    %v711 = vpop.f32.mrb[0].mxu0
    %v712 = vadd.f32 %v117, %v711
    %v713 = vpop.f32.mrb[0].mxu0
    %v714 = vadd.f32 %v121, %v713
    %715 = vdwg.mxu0
    %v716 = vmul.f32 %v418, 0.01
    %v717 = vmul.f32 %v420, 0.01
    %v718 = vmul.f32 %v422, 0.01
    %v719 = vmul.f32 %v424, 0.01
    %v720 = vmul.f32 %v428, 0.01
    %v721 = vmul.f32 %v430, 0.01
    %v722 = vmul.f32 %v432, 0.01
    %v723 = vmul.f32 %v434, 0.01
    %v724 = vmul.f32 %v438, 0.01
    %v725 = vmul.f32 %v440, 0.01
    %v726 = vmul.f32 %v442, 0.01
    %v727 = vmul.f32 %v444, 0.01
    %v728 = vmul.f32 %v448, 0.01
    %v729 = vmul.f32 %v450, 0.01
    %v730 = vmul.f32 %v452, 0.01
    %v731 = vmul.f32 %v454, 0.01
    %v732 = vmul.f32 %v458, 0.01
    %v733 = vmul.f32 %v460, 0.01
    %v734 = vmul.f32 %v462, 0.01
    %v735 = vmul.f32 %v464, 0.01
    %v736 = vmul.f32 %v468, 0.01
    %v737 = vmul.f32 %v470, 0.01
    %v738 = vmul.f32 %v472, 0.01
    %v739 = vmul.f32 %v474, 0.01
    %v740 = vmul.f32 %v478, 0.01
    %v741 = vmul.f32 %v480, 0.01
    %v742 = vmul.f32 %v482, 0.01
    %v743 = vmul.f32 %v484, 0.01
    %v744 = vmul.f32 %v488, 0.01
    %v745 = vmul.f32 %v490, 0.01
    %v746 = vmul.f32 %v492, 0.01
    %v747 = vmul.f32 %v494, 0.01
    %v748 = vmul.f32 %v498, 0.01
    %v749 = vmul.f32 %v500, 0.01
    %v750 = vmul.f32 %v502, 0.01
    %v751 = vmul.f32 %v504, 0.01
    %v752 = vmul.f32 %v508, 0.01
    %v753 = vmul.f32 %v510, 0.01
    %v754 = vmul.f32 %v512, 0.01
    %v755 = vmul.f32 %v514, 0.01
    %v756 = vmul.f32 %v518, 0.01
    %v757 = vmul.f32 %v520, 0.01
    %v758 = vmul.f32 %v522, 0.01
    %v759 = vmul.f32 %v524, 0.01
    %v760 = vmul.f32 %v528, 0.01
    %v761 = vmul.f32 %v530, 0.01
    %v762 = vmul.f32 %v532, 0.01
    %v763 = vmul.f32 %v534, 0.01
    %v764 = vmul.f32 %v538, 0.01
    %v765 = vmul.f32 %v540, 0.01
    %v766 = vmul.f32 %v542, 0.01
    %v767 = vmul.f32 %v544, 0.01
    %v768 = vmul.f32 %v548, 0.01
    %v769 = vmul.f32 %v550, 0.01
    %v770 = vmul.f32 %v552, 0.01
    %v771 = vmul.f32 %v554, 0.01
    %v772 = vmul.f32 %v558, 0.01
    %v773 = vmul.f32 %v560, 0.01
    %v774 = vmul.f32 %v562, 0.01
    %v775 = vmul.f32 %v564, 0.01
    %v776 = vmul.f32 %v568, 0.01
    %v777 = vmul.f32 %v570, 0.01
    %v778 = vmul.f32 %v572, 0.01
    %v779 = vmul.f32 %v574, 0.01
    %v780 = vmul.f32 %v578, 0.01
    %v781 = vmul.f32 %v580, 0.01
    %v782 = vmul.f32 %v582, 0.01
    %v783 = vmul.f32 %v584, 0.01
    %v784 = vmul.f32 %v588, 0.01
    %v785 = vmul.f32 %v590, 0.01
    %v786 = vmul.f32 %v592, 0.01
    %v787 = vmul.f32 %v594, 0.01
    %v788 = vmul.f32 %v598, 0.01
    %v789 = vmul.f32 %v600, 0.01
    %v790 = vmul.f32 %v602, 0.01
    %v791 = vmul.f32 %v604, 0.01
    %v792 = vmul.f32 %v608, 0.01
    %v793 = vmul.f32 %v610, 0.01
    %v794 = vmul.f32 %v612, 0.01
    %v795 = vmul.f32 %v614, 0.01
    %v796 = vmul.f32 %v618, 0.01
    %v797 = vmul.f32 %v620, 0.01
    %v798 = vmul.f32 %v622, 0.01
    %v799 = vmul.f32 %v624, 0.01
    %v800 = vmul.f32 %v628, 0.01
    %v801 = vmul.f32 %v630, 0.01
    %v802 = vmul.f32 %v632, 0.01
    %v803 = vmul.f32 %v634, 0.01
    %v804 = vmul.f32 %v638, 0.01
    %v805 = vmul.f32 %v640, 0.01
    %v806 = vmul.f32 %v642, 0.01
    %v807 = vmul.f32 %v644, 0.01
    %v808 = vmul.f32 %v648, 0.01
    %v809 = vmul.f32 %v650, 0.01
    %v810 = vmul.f32 %v652, 0.01
    %v811 = vmul.f32 %v654, 0.01
    %v812 = vmul.f32 %v658, 0.01
    %v813 = vmul.f32 %v660, 0.01
    %v814 = vmul.f32 %v662, 0.01
    %v815 = vmul.f32 %v664, 0.01
    %v816 = vmul.f32 %v668, 0.01
    %v817 = vmul.f32 %v670, 0.01
    %v818 = vmul.f32 %v672, 0.01
    %v819 = vmul.f32 %v674, 0.01
    %v820 = vmul.f32 %v678, 0.01
    %v821 = vmul.f32 %v680, 0.01
    %v822 = vmul.f32 %v682, 0.01
    %v823 = vmul.f32 %v684, 0.01
    %v824 = vmul.f32 %v688, 0.01
    %v825 = vmul.f32 %v690, 0.01
    %v826 = vmul.f32 %v692, 0.01
    %v827 = vmul.f32 %v694, 0.01
    %v828 = vmul.f32 %v698, 0.01
    %v829 = vmul.f32 %v700, 0.01
    %v830 = vmul.f32 %v702, 0.01
    %v831 = vmul.f32 %v704, 0.01
    %v832 = vmul.f32 %v708, 0.01
    %v833 = vmul.f32 %v710, 0.01
    %v834 = vmul.f32 %v712, 0.01
    %v835 = vmul.f32 %v714, 0.01
    %v836 = vmax.f32 %v418, %v716
    %v837 = vmax.f32 %v420, %v717
    %v838 = vmax.f32 %v422, %v718
    %v839 = vmax.f32 %v424, %v719
    %v840 = vmax.f32 %v428, %v720
    %v841 = vmax.f32 %v430, %v721
    %v842 = vmax.f32 %v432, %v722
    %v843 = vmax.f32 %v434, %v723
    %v844 = vmax.f32 %v438, %v724
    %v845 = vmax.f32 %v440, %v725
    %v846 = vmax.f32 %v442, %v726
    %v847 = vmax.f32 %v444, %v727
    %v848 = vmax.f32 %v448, %v728
    %v849 = vmax.f32 %v450, %v729
    %v850 = vmax.f32 %v452, %v730
    %v851 = vmax.f32 %v454, %v731
    %v852 = vmax.f32 %v458, %v732
    %v853 = vmax.f32 %v460, %v733
    %v854 = vmax.f32 %v462, %v734
    %v855 = vmax.f32 %v464, %v735
    %v856 = vmax.f32 %v468, %v736
    %v857 = vmax.f32 %v470, %v737
    %v858 = vmax.f32 %v472, %v738
    %v859 = vmax.f32 %v474, %v739
    %v860 = vmax.f32 %v478, %v740
    %v861 = vmax.f32 %v480, %v741
    %v862 = vmax.f32 %v482, %v742
    %v863 = vmax.f32 %v484, %v743
    %v864 = vmax.f32 %v488, %v744
    %v865 = vmax.f32 %v490, %v745
    %v866 = vmax.f32 %v492, %v746
    %v867 = vmax.f32 %v494, %v747
    %v868 = vmax.f32 %v498, %v748
    %v869 = vmax.f32 %v500, %v749
    %v870 = vmax.f32 %v502, %v750
    %v871 = vmax.f32 %v504, %v751
    %v872 = vmax.f32 %v508, %v752
    %v873 = vmax.f32 %v510, %v753
    %v874 = vmax.f32 %v512, %v754
    %v875 = vmax.f32 %v514, %v755
    %v876 = vmax.f32 %v518, %v756
    %v877 = vmax.f32 %v520, %v757
    %v878 = vmax.f32 %v522, %v758
    %v879 = vmax.f32 %v524, %v759
    %v880 = vmax.f32 %v528, %v760
    %v881 = vmax.f32 %v530, %v761
    %v882 = vmax.f32 %v532, %v762
    %v883 = vmax.f32 %v534, %v763
    %v884 = vmax.f32 %v538, %v764
    %v885 = vmax.f32 %v540, %v765
    %v886 = vmax.f32 %v542, %v766
    %v887 = vmax.f32 %v544, %v767
    %v888 = vmax.f32 %v548, %v768
    %v889 = vmax.f32 %v550, %v769
    %v890 = vmax.f32 %v552, %v770
    %v891 = vmax.f32 %v554, %v771
    %v892 = vmax.f32 %v558, %v772
    %v893 = vmax.f32 %v560, %v773
    %v894 = vmax.f32 %v562, %v774
    %v895 = vmax.f32 %v564, %v775
    %v896 = vmax.f32 %v568, %v776
    %v897 = vmax.f32 %v570, %v777
    %v898 = vmax.f32 %v572, %v778
    %v899 = vmax.f32 %v574, %v779
    %v900 = vmax.f32 %v578, %v780
    %v901 = vmax.f32 %v580, %v781
    %v902 = vmax.f32 %v582, %v782
    %v903 = vmax.f32 %v584, %v783
    %v904 = vmax.f32 %v588, %v784
    %v905 = vmax.f32 %v590, %v785
    %v906 = vmax.f32 %v592, %v786
    %v907 = vmax.f32 %v594, %v787
    %v908 = vmax.f32 %v598, %v788
    %v909 = vmax.f32 %v600, %v789
    %v910 = vmax.f32 %v602, %v790
    %v911 = vmax.f32 %v604, %v791
    %v912 = vmax.f32 %v608, %v792
    %v913 = vmax.f32 %v610, %v793
    %v914 = vmax.f32 %v612, %v794
    %v915 = vmax.f32 %v614, %v795
    %v916 = vmax.f32 %v618, %v796
    %v917 = vmax.f32 %v620, %v797
    %v918 = vmax.f32 %v622, %v798
    %v919 = vmax.f32 %v624, %v799
    %v920 = vmax.f32 %v628, %v800
    %v921 = vmax.f32 %v630, %v801
    %v922 = vmax.f32 %v632, %v802
    %v923 = vmax.f32 %v634, %v803
    %v924 = vmax.f32 %v638, %v804
    %v925 = vmax.f32 %v640, %v805
    %v926 = vmax.f32 %v642, %v806
    %v927 = vmax.f32 %v644, %v807
    %v928 = vmax.f32 %v648, %v808
    %v929 = vmax.f32 %v650, %v809
    %v930 = vmax.f32 %v652, %v810
    %v931 = vmax.f32 %v654, %v811
    %v932 = vmax.f32 %v658, %v812
    %v933 = vmax.f32 %v660, %v813
    %v934 = vmax.f32 %v662, %v814
    %v935 = vmax.f32 %v664, %v815
    %v936 = vmax.f32 %v668, %v816
    %v937 = vmax.f32 %v670, %v817
    %v938 = vmax.f32 %v672, %v818
    %v939 = vmax.f32 %v674, %v819
    %v940 = vmax.f32 %v678, %v820
    %v941 = vmax.f32 %v680, %v821
    %v942 = vmax.f32 %v682, %v822
    %v943 = vmax.f32 %v684, %v823
    %v944 = vmax.f32 %v688, %v824
    %v945 = vmax.f32 %v690, %v825
    %v946 = vmax.f32 %v692, %v826
    %v947 = vmax.f32 %v694, %v827
    %v948 = vmax.f32 %v698, %v828
    %v949 = vmax.f32 %v700, %v829
    %v950 = vmax.f32 %v702, %v830
    %v951 = vmax.f32 %v704, %v831
    %v952 = vmax.f32 %v708, %v832
    %v953 = vmax.f32 %v710, %v833
    %v954 = vmax.f32 %v712, %v834
    %v955 = vmax.f32 %v714, %v835
    %v956 = vadd.f32 %v836, %v896
    %v957 = vadd.f32 %v837, %v897
    %v958 = vadd.f32 %v838, %v898
    %v959 = vadd.f32 %v839, %v899
    %v960 = vadd.f32 %v840, %v900
    %v961 = vadd.f32 %v841, %v901
    %v962 = vadd.f32 %v842, %v902
    %v963 = vadd.f32 %v843, %v903
    %v964 = vadd.f32 %v844, %v904
    %v965 = vadd.f32 %v845, %v905
    %v966 = vadd.f32 %v846, %v906
    %v967 = vadd.f32 %v847, %v907
    %v968 = vadd.f32 %v848, %v908
    %v969 = vadd.f32 %v849, %v909
    %v970 = vadd.f32 %v850, %v910
    %v971 = vadd.f32 %v851, %v911
    %v972 = vadd.f32 %v852, %v912
    %v973 = vadd.f32 %v853, %v913
    %v974 = vadd.f32 %v854, %v914
    %v975 = vadd.f32 %v855, %v915
    %v976 = vadd.f32 %v856, %v916
    %v977 = vadd.f32 %v857, %v917
    %v978 = vadd.f32 %v858, %v918
    %v979 = vadd.f32 %v859, %v919
    %v980 = vadd.f32 %v860, %v920
    %v981 = vadd.f32 %v861, %v921
    %v982 = vadd.f32 %v862, %v922
    %v983 = vadd.f32 %v863, %v923
    %v984 = vadd.f32 %v864, %v924
    %v985 = vadd.f32 %v865, %v925
    %v986 = vadd.f32 %v866, %v926
    %v987 = vadd.f32 %v867, %v927
    %v988 = vadd.f32 %v868, %v928
    %v989 = vadd.f32 %v869, %v929
    %v990 = vadd.f32 %v870, %v930
    %v991 = vadd.f32 %v871, %v931
    %v992 = vadd.f32 %v872, %v932
    %v993 = vadd.f32 %v873, %v933
    %v994 = vadd.f32 %v874, %v934
    %v995 = vadd.f32 %v875, %v935
    %v996 = vadd.f32 %v876, %v936
    %v997 = vadd.f32 %v877, %v937
    %v998 = vadd.f32 %v878, %v938
    %v999 = vadd.f32 %v879, %v939
    %v1000 = vadd.f32 %v880, %v940
    %v1001 = vadd.f32 %v881, %v941
    %v1002 = vadd.f32 %v882, %v942
    %v1003 = vadd.f32 %v883, %v943
    %v1004 = vadd.f32 %v884, %v944
    %v1005 = vadd.f32 %v885, %v945
    %v1006 = vadd.f32 %v886, %v946
    %v1007 = vadd.f32 %v887, %v947
    %v1008 = vadd.f32 %v888, %v948
    %v1009 = vadd.f32 %v889, %v949
    %v1010 = vadd.f32 %v890, %v950
    %v1011 = vadd.f32 %v891, %v951
    %v1012 = vadd.f32 %v892, %v952
    %v1013 = vadd.f32 %v893, %v953
    %v1014 = vadd.f32 %v894, %v954
    %v1015 = vadd.f32 %v895, %v955
    %v1016 = vld [vmem:[%s0 + $0xf0] sm:$0xf]
    %v1017 = vld [vmem:[%s0 + $0xf4] sm:$0xf]
    %v1018 = vld [vmem:[%s0 + $0xf8] sm:$0xf]
    %v1019 = vld [vmem:[%s0 + $0xfc] sm:$0xf]
    %v1020 = vld [vmem:[%s0 + $0x100] sm:$0xf]
    %v1021 = vld [vmem:[%s0 + $0x104] sm:$0xf]
    %v1022 = vld [vmem:[%s0 + $0x108] sm:$0xf]
    %v1023 = vld [vmem:[%s0 + $0x10c] sm:$0xf]
    %v1024 = vld [vmem:[%s0 + $0x110] sm:$0xf]
    %v1025 = vld [vmem:[%s0 + $0x114] sm:$0xf]
    %v1026 = vld [vmem:[%s0 + $0x118] sm:$0xf]
    %v1027 = vld [vmem:[%s0 + $0x11c] sm:$0xf]
    %v1028 = vld [vmem:[%s0 + $0x120] sm:$0xf]
    %v1029 = vld [vmem:[%s0 + $0x124] sm:$0xf]
    %v1030 = vld [vmem:[%s0 + $0x128] sm:$0xf]
    %v1031 = vld [vmem:[%s0 + $0x12c] sm:$0xf]
    %v1032 = vld [vmem:[%s0 + $0x130] sm:$0xf]
    %v1033 = vld [vmem:[%s0 + $0x134] sm:$0xf]
    %v1034 = vld [vmem:[%s0 + $0x138] sm:$0xf]
    %v1035 = vld [vmem:[%s0 + $0x13c] sm:$0xf]
    %v1036 = vld [vmem:[%s0 + $0x140] sm:$0xf]
    %v1037 = vld [vmem:[%s0 + $0x144] sm:$0xf]
    %v1038 = vld [vmem:[%s0 + $0x148] sm:$0xf]
    %v1039 = vld [vmem:[%s0 + $0x14c] sm:$0xf]
    %v1040 = vld [vmem:[%s0 + $0x150] sm:$0xf]
    %v1041 = vld [vmem:[%s0 + $0x154] sm:$0xf]
    %v1042 = vld [vmem:[%s0 + $0x158] sm:$0xf]
    %v1043 = vld [vmem:[%s0 + $0x15c] sm:$0xf]
    %v1044 = vld [vmem:[%s0 + $0x160] sm:$0xf]
    %v1045 = vld [vmem:[%s0 + $0x164] sm:$0xf]
    %s1046 = scalar_lea.vmem %s1, 16
    %v1047 = vld [vmem:[%s1046] sm:$0xff]
    %v1048 = vld [vmem:[%s1046 + $0x8] sm:$0x11]
    %s1049 = scalar_lea.vmem %s2, 2
    %v1050 = vld [vmem:[%s1049] sm:$0x3]
    %v1052 = vlaneseq
    %v1053 = vshrl.u32 %v1052, 7
    %v1054 = vsub.s32 0, %v1053
    %v1055 = vrot.slane %v1050, %v1054
    %v1056 = vlaneseq
    %v1057 = vshrl.u32 %v1056, 7
    %v1058 = vsub.s32 1, %v1057
    %v1059 = vrot.slane %v1050, %v1058
    %v1092 = vunpack.c.l.b16 %v1016
    %v1093 = vunpack.c.l.b16 %v1017
    %v1094 = vunpack.c.l.b16 %v1018
    %v1095 = vunpack.c.l.b16 %v1019
    %v1096 = vunpack.c.l.b16 %v1020
    %v1097 = vunpack.c.l.b16 %v1021
    %v1098 = vunpack.c.l.b16 %v1022
    %v1099 = vunpack.c.l.b16 %v1023
    %v1100 = vunpack.c.l.b16 %v1024
    %v1101 = vunpack.c.l.b16 %v1025
    %v1102 = vunpack.c.l.b16 %v1026
    %v1103 = vunpack.c.l.b16 %v1027
    %v1104 = vunpack.c.l.b16 %v1028
    %v1105 = vunpack.c.l.b16 %v1029
    %v1106 = vunpack.c.l.b16 %v1030
    %v1107 = vunpack.c.l.b16 %v1031
    %v1108 = vunpack.c.l.b16 %v1032
    %v1109 = vunpack.c.l.b16 %v1033
    %v1110 = vunpack.c.l.b16 %v1034
    %v1111 = vunpack.c.l.b16 %v1035
    %v1112 = vunpack.c.l.b16 %v1036
    %v1113 = vunpack.c.l.b16 %v1037
    %v1114 = vunpack.c.l.b16 %v1038
    %v1115 = vunpack.c.l.b16 %v1039
    %v1116 = vunpack.c.l.b16 %v1040
    %v1117 = vunpack.c.l.b16 %v1041
    %v1118 = vunpack.c.l.b16 %v1042
    %v1119 = vunpack.c.l.b16 %v1043
    %v1120 = vunpack.c.l.b16 %v1044
    %v1121 = vunpack.c.l.b16 %v1045
    %v1122 = vpack.c.b16 %v1093, %v1092
    %v1123 = vpack.c.b16 %v1095, %v1094
    %v1124 = vpack.c.b16 %v1097, %v1096
    %v1125 = vpack.c.b16 %v1099, %v1098
    %v1126 = vpack.c.b16 %v1101, %v1100
    %v1127 = vpack.c.b16 %v1103, %v1102
    %v1128 = vpack.c.b16 %v1105, %v1104
    %v1129 = vpack.c.b16 %v1107, %v1106
    %v1130 = vpack.c.b16 %v1109, %v1108
    %v1131 = vpack.c.b16 %v1111, %v1110
    %v1132 = vpack.c.b16 %v1113, %v1112
    %v1133 = vpack.c.b16 %v1115, %v1114
    %v1134 = vpack.c.b16 %v1117, %v1116
    %v1135 = vpack.c.b16 %v1119, %v1118
    %v1136 = vpack.c.b16 %v1121, %v1120
    %v1139 = vunpack.c.l.b16 %v1047
    %v1140 = vunpack.c.h.b16 %v1047
    %v1141 = vunpack.c.l.b16 %v1048
    %v1142 = vunpack.c.h.b16 %v1048
    %v1143 = vpack.c.b16 %v1141, %v1139
    %v1144 = vpack.c.b16 %v1142, %v1140
    %v1146 = vsel %vm282, %v1122, 0
    %v1149 = vsel %vm282, %v1123, 0
    %v1152 = vsel %vm282, %v1124, 0
    %v1155 = vsel %vm282, %v1125, 0
    %v1158 = vsel %vm282, %v1126, 0
    %v1161 = vsel %vm282, %v1127, 0
    %v1164 = vsel %vm282, %v1128, 0
    %v1167 = vsel %vm282, %v1129, 0
    %v1170 = vsel %vm282, %v1130, 0
    %v1173 = vsel %vm282, %v1131, 0
    %v1176 = vsel %vm282, %v1132, 0
    %v1179 = vsel %vm282, %v1133, 0
    %v1182 = vsel %vm282, %v1134, 0
    %v1185 = vsel %vm282, %v1135, 0
    %v1188 = vsel %vm282, %v1136, 0
    %v1191 = vand.u32 %v1143, %v376
    %v1194 = vand.u32 %v1144, %v376
    %1196 = vmatprep.subr.bf16.mxu0 %v1194
    %1197 = vmatpush1.bf16.msra.mxu0 %v1191
    %1198 = vmatprep.subr.bf16.mxu0 0
    %1199 = vmatpush1.bf16.msra.mxu0 0
    %1200 = vmatprep.subr.bf16.mxu0 0
    %1201 = vmatpush1.bf16.msra.mxu0 0
    %1202 = vmatprep.subr.bf16.mxu0 0
    %1203 = vmatpush1.bf16.msra.mxu0 0
    %1204 = vmatprep.subr.bf16.mxu0 0
    %1205 = vmatpush1.bf16.msra.mxu0 0
    %1206 = vmatprep.subr.bf16.mxu0 0
    %1207 = vmatpush1.bf16.msra.mxu0 0
    %1208 = vmatprep.subr.bf16.mxu0 0
    %1209 = vmatpush1.bf16.msra.mxu0 0
    %1210 = vmatprep.subr.bf16.mxu0 0
    %1211 = vmatpush1.bf16.msra.mxu0 0
    %1212 = vmatprep.subr.bf16.mxu0 0
    %1213 = vmatpush1.bf16.msra.mxu0 0
    %1214 = vmatprep.subr.bf16.mxu0 0
    %1215 = vmatpush1.bf16.msra.mxu0 0
    %1216 = vmatprep.subr.bf16.mxu0 0
    %1217 = vmatpush1.bf16.msra.mxu0 0
    %1218 = vmatprep.subr.bf16.mxu0 0
    %1219 = vmatpush1.bf16.msra.mxu0 0
    %1220 = vmatprep.subr.bf16.mxu0 0
    %1221 = vmatpush1.bf16.msra.mxu0 0
    %1222 = vmatprep.subr.bf16.mxu0 0
    %1223 = vmatpush1.bf16.msra.mxu0 0
    %1224 = vmatprep.subr.bf16.mxu0 0
    %1225 = vmatpush1.bf16.msra.mxu0 0
    %1226 = vmatprep.subr.bf16.mxu0 0
    %1227 = vmatpush1.bf16.msra.mxu0 0
    %1228 = vmatprep.mubr.bf16.mxu0 0
    %1229 = vmatmul.mubr.bf16.gmra.mrb[0].mxu0 %v1146
    %v1230 = vpop.f32.mrb[0].mxu0
    %v1231 = vadd.f32 %v1055, %v1230
    %v1232 = vpop.f32.mrb[0].mxu0
    %v1233 = vadd.f32 %v1059, %v1232
    %v1234 = vpop.f32.mrb[0].mxu0
    %v1235 = vadd.f32 %v1055, %v1234
    %v1236 = vpop.f32.mrb[0].mxu0
    %v1237 = vadd.f32 %v1059, %v1236
    %1238 = vmatprep.mubr.bf16.mxu0 0
    %1239 = vmatmul.mubr.bf16.gmra.mrb[0].mxu0 %v1149
    %v1240 = vpop.f32.mrb[0].mxu0
    %v1241 = vadd.f32 %v1055, %v1240
    %v1242 = vpop.f32.mrb[0].mxu0
    %v1243 = vadd.f32 %v1059, %v1242
    %v1244 = vpop.f32.mrb[0].mxu0
    %v1245 = vadd.f32 %v1055, %v1244
    %v1246 = vpop.f32.mrb[0].mxu0
    %v1247 = vadd.f32 %v1059, %v1246
    %1248 = vmatprep.mubr.bf16.mxu0 0
    %1249 = vmatmul.mubr.bf16.gmra.mrb[0].mxu0 %v1152
    %v1250 = vpop.f32.mrb[0].mxu0
    %v1251 = vadd.f32 %v1055, %v1250
    %v1252 = vpop.f32.mrb[0].mxu0
    %v1253 = vadd.f32 %v1059, %v1252
    %v1254 = vpop.f32.mrb[0].mxu0
    %v1255 = vadd.f32 %v1055, %v1254
    %v1256 = vpop.f32.mrb[0].mxu0
    %v1257 = vadd.f32 %v1059, %v1256
    %1258 = vmatprep.mubr.bf16.mxu0 0
    %1259 = vmatmul.mubr.bf16.gmra.mrb[0].mxu0 %v1155
    %v1260 = vpop.f32.mrb[0].mxu0
    %v1261 = vadd.f32 %v1055, %v1260
    %v1262 = vpop.f32.mrb[0].mxu0
    %v1263 = vadd.f32 %v1059, %v1262
    %v1264 = vpop.f32.mrb[0].mxu0
    %v1265 = vadd.f32 %v1055, %v1264
    %v1266 = vpop.f32.mrb[0].mxu0
    %v1267 = vadd.f32 %v1059, %v1266
    %1268 = vmatprep.mubr.bf16.mxu0 0
    %1269 = vmatmul.mubr.bf16.gmra.mrb[0].mxu0 %v1158
    %v1270 = vpop.f32.mrb[0].mxu0
    %v1271 = vadd.f32 %v1055, %v1270
    %v1272 = vpop.f32.mrb[0].mxu0
    %v1273 = vadd.f32 %v1059, %v1272
    %v1274 = vpop.f32.mrb[0].mxu0
    %v1275 = vadd.f32 %v1055, %v1274
    %v1276 = vpop.f32.mrb[0].mxu0
    %v1277 = vadd.f32 %v1059, %v1276
    %1278 = vmatprep.mubr.bf16.mxu0 0
    %1279 = vmatmul.mubr.bf16.gmra.mrb[0].mxu0 %v1161
    %v1280 = vpop.f32.mrb[0].mxu0
    %v1281 = vadd.f32 %v1055, %v1280
    %v1282 = vpop.f32.mrb[0].mxu0
    %v1283 = vadd.f32 %v1059, %v1282
    %v1284 = vpop.f32.mrb[0].mxu0
    %v1285 = vadd.f32 %v1055, %v1284
    %v1286 = vpop.f32.mrb[0].mxu0
    %v1287 = vadd.f32 %v1059, %v1286
    %1288 = vmatprep.mubr.bf16.mxu0 0
    %1289 = vmatmul.mubr.bf16.gmra.mrb[0].mxu0 %v1164
    %v1290 = vpop.f32.mrb[0].mxu0
    %v1291 = vadd.f32 %v1055, %v1290
    %v1292 = vpop.f32.mrb[0].mxu0
    %v1293 = vadd.f32 %v1059, %v1292
    %v1294 = vpop.f32.mrb[0].mxu0
    %v1295 = vadd.f32 %v1055, %v1294
    %v1296 = vpop.f32.mrb[0].mxu0
    %v1297 = vadd.f32 %v1059, %v1296
    %1298 = vmatprep.mubr.bf16.mxu0 0
    %1299 = vmatmul.mubr.bf16.gmra.mrb[0].mxu0 %v1167
    %v1300 = vpop.f32.mrb[0].mxu0
    %v1301 = vadd.f32 %v1055, %v1300
    %v1302 = vpop.f32.mrb[0].mxu0
    %v1303 = vadd.f32 %v1059, %v1302
    %v1304 = vpop.f32.mrb[0].mxu0
    %v1305 = vadd.f32 %v1055, %v1304
    %v1306 = vpop.f32.mrb[0].mxu0
    %v1307 = vadd.f32 %v1059, %v1306
    %1308 = vmatprep.mubr.bf16.mxu0 0
    %1309 = vmatmul.mubr.bf16.gmra.mrb[0].mxu0 %v1170
    %v1310 = vpop.f32.mrb[0].mxu0
    %v1311 = vadd.f32 %v1055, %v1310
    %v1312 = vpop.f32.mrb[0].mxu0
    %v1313 = vadd.f32 %v1059, %v1312
    %v1314 = vpop.f32.mrb[0].mxu0
    %v1315 = vadd.f32 %v1055, %v1314
    %v1316 = vpop.f32.mrb[0].mxu0
    %v1317 = vadd.f32 %v1059, %v1316
    %1318 = vmatprep.mubr.bf16.mxu0 0
    %1319 = vmatmul.mubr.bf16.gmra.mrb[0].mxu0 %v1173
    %v1320 = vpop.f32.mrb[0].mxu0
    %v1321 = vadd.f32 %v1055, %v1320
    %v1322 = vpop.f32.mrb[0].mxu0
    %v1323 = vadd.f32 %v1059, %v1322
    %v1324 = vpop.f32.mrb[0].mxu0
    %v1325 = vadd.f32 %v1055, %v1324
    %v1326 = vpop.f32.mrb[0].mxu0
    %v1327 = vadd.f32 %v1059, %v1326
    %1328 = vmatprep.mubr.bf16.mxu0 0
    %1329 = vmatmul.mubr.bf16.gmra.mrb[0].mxu0 %v1176
    %v1330 = vpop.f32.mrb[0].mxu0
    %v1331 = vadd.f32 %v1055, %v1330
    %v1332 = vpop.f32.mrb[0].mxu0
    %v1333 = vadd.f32 %v1059, %v1332
    %v1334 = vpop.f32.mrb[0].mxu0
    %v1335 = vadd.f32 %v1055, %v1334
    %v1336 = vpop.f32.mrb[0].mxu0
    %v1337 = vadd.f32 %v1059, %v1336
    %1338 = vmatprep.mubr.bf16.mxu0 0
    %1339 = vmatmul.mubr.bf16.gmra.mrb[0].mxu0 %v1179
    %v1340 = vpop.f32.mrb[0].mxu0
    %v1341 = vadd.f32 %v1055, %v1340
    %v1342 = vpop.f32.mrb[0].mxu0
    %v1343 = vadd.f32 %v1059, %v1342
    %v1344 = vpop.f32.mrb[0].mxu0
    %v1345 = vadd.f32 %v1055, %v1344
    %v1346 = vpop.f32.mrb[0].mxu0
    %v1347 = vadd.f32 %v1059, %v1346
    %1348 = vmatprep.mubr.bf16.mxu0 0
    %1349 = vmatmul.mubr.bf16.gmra.mrb[0].mxu0 %v1182
    %v1350 = vpop.f32.mrb[0].mxu0
    %v1351 = vadd.f32 %v1055, %v1350
    %v1352 = vpop.f32.mrb[0].mxu0
    %v1353 = vadd.f32 %v1059, %v1352
    %v1354 = vpop.f32.mrb[0].mxu0
    %v1355 = vadd.f32 %v1055, %v1354
    %v1356 = vpop.f32.mrb[0].mxu0
    %v1357 = vadd.f32 %v1059, %v1356
    %1358 = vmatprep.mubr.bf16.mxu0 0
    %1359 = vmatmul.mubr.bf16.gmra.mrb[0].mxu0 %v1185
    %v1360 = vpop.f32.mrb[0].mxu0
    %v1361 = vadd.f32 %v1055, %v1360
    %v1362 = vpop.f32.mrb[0].mxu0
    %v1363 = vadd.f32 %v1059, %v1362
    %v1364 = vpop.f32.mrb[0].mxu0
    %v1365 = vadd.f32 %v1055, %v1364
    %v1366 = vpop.f32.mrb[0].mxu0
    %v1367 = vadd.f32 %v1059, %v1366
    %1368 = vmatprep.mubr.bf16.mxu0 0
    %1369 = vmatmul.mubr.bf16.gmra.mrb[0].mxu0 %v1188
    %v1370 = vpop.f32.mrb[0].mxu0
    %v1371 = vadd.f32 %v1055, %v1370
    %v1372 = vpop.f32.mrb[0].mxu0
    %v1373 = vadd.f32 %v1059, %v1372
    %v1374 = vpop.f32.mrb[0].mxu0
    %v1375 = vadd.f32 %v1055, %v1374
    %v1376 = vpop.f32.mrb[0].mxu0
    %v1377 = vadd.f32 %v1059, %v1376
    %1378 = vdwg.mxu0
    %v1379 = vmul.f32 %v1231, 0.01
    %v1380 = vmul.f32 %v1233, 0.01
    %v1381 = vmul.f32 %v1235, 0.01
    %v1382 = vmul.f32 %v1237, 0.01
    %v1383 = vmul.f32 %v1241, 0.01
    %v1384 = vmul.f32 %v1243, 0.01
    %v1385 = vmul.f32 %v1245, 0.01
    %v1386 = vmul.f32 %v1247, 0.01
    %v1387 = vmul.f32 %v1251, 0.01
    %v1388 = vmul.f32 %v1253, 0.01
    %v1389 = vmul.f32 %v1255, 0.01
    %v1390 = vmul.f32 %v1257, 0.01
    %v1391 = vmul.f32 %v1261, 0.01
    %v1392 = vmul.f32 %v1263, 0.01
    %v1393 = vmul.f32 %v1265, 0.01
    %v1394 = vmul.f32 %v1267, 0.01
    %v1395 = vmul.f32 %v1271, 0.01
    %v1396 = vmul.f32 %v1273, 0.01
    %v1397 = vmul.f32 %v1275, 0.01
    %v1398 = vmul.f32 %v1277, 0.01
    %v1399 = vmul.f32 %v1281, 0.01
    %v1400 = vmul.f32 %v1283, 0.01
    %v1401 = vmul.f32 %v1285, 0.01
    %v1402 = vmul.f32 %v1287, 0.01
    %v1403 = vmul.f32 %v1291, 0.01
    %v1404 = vmul.f32 %v1293, 0.01
    %v1405 = vmul.f32 %v1295, 0.01
    %v1406 = vmul.f32 %v1297, 0.01
    %v1407 = vmul.f32 %v1301, 0.01
    %v1408 = vmul.f32 %v1303, 0.01
    %v1409 = vmul.f32 %v1305, 0.01
    %v1410 = vmul.f32 %v1307, 0.01
    %v1411 = vmul.f32 %v1311, 0.01
    %v1412 = vmul.f32 %v1313, 0.01
    %v1413 = vmul.f32 %v1315, 0.01
    %v1414 = vmul.f32 %v1317, 0.01
    %v1415 = vmul.f32 %v1321, 0.01
    %v1416 = vmul.f32 %v1323, 0.01
    %v1417 = vmul.f32 %v1325, 0.01
    %v1418 = vmul.f32 %v1327, 0.01
    %v1419 = vmul.f32 %v1331, 0.01
    %v1420 = vmul.f32 %v1333, 0.01
    %v1421 = vmul.f32 %v1335, 0.01
    %v1422 = vmul.f32 %v1337, 0.01
    %v1423 = vmul.f32 %v1341, 0.01
    %v1424 = vmul.f32 %v1343, 0.01
    %v1425 = vmul.f32 %v1345, 0.01
    %v1426 = vmul.f32 %v1347, 0.01
    %v1427 = vmul.f32 %v1351, 0.01
    %v1428 = vmul.f32 %v1353, 0.01
    %v1429 = vmul.f32 %v1355, 0.01
    %v1430 = vmul.f32 %v1357, 0.01
    %v1431 = vmul.f32 %v1361, 0.01
    %v1432 = vmul.f32 %v1363, 0.01
    %v1433 = vmul.f32 %v1365, 0.01
    %v1434 = vmul.f32 %v1367, 0.01
    %v1435 = vmul.f32 %v1371, 0.01
    %v1436 = vmul.f32 %v1373, 0.01
    %v1437 = vmul.f32 %v1375, 0.01
    %v1438 = vmul.f32 %v1377, 0.01
    %v1439 = vmax.f32 %v1231, %v1379
    %v1440 = vmax.f32 %v1233, %v1380
    %v1441 = vmax.f32 %v1235, %v1381
    %v1442 = vmax.f32 %v1237, %v1382
    %v1443 = vmax.f32 %v1241, %v1383
    %v1444 = vmax.f32 %v1243, %v1384
    %v1445 = vmax.f32 %v1245, %v1385
    %v1446 = vmax.f32 %v1247, %v1386
    %v1447 = vmax.f32 %v1251, %v1387
    %v1448 = vmax.f32 %v1253, %v1388
    %v1449 = vmax.f32 %v1255, %v1389
    %v1450 = vmax.f32 %v1257, %v1390
    %v1451 = vmax.f32 %v1261, %v1391
    %v1452 = vmax.f32 %v1263, %v1392
    %v1453 = vmax.f32 %v1265, %v1393
    %v1454 = vmax.f32 %v1267, %v1394
    %v1455 = vmax.f32 %v1271, %v1395
    %v1456 = vmax.f32 %v1273, %v1396
    %v1457 = vmax.f32 %v1275, %v1397
    %v1458 = vmax.f32 %v1277, %v1398
    %v1459 = vmax.f32 %v1281, %v1399
    %v1460 = vmax.f32 %v1283, %v1400
    %v1461 = vmax.f32 %v1285, %v1401
    %v1462 = vmax.f32 %v1287, %v1402
    %v1463 = vmax.f32 %v1291, %v1403
    %v1464 = vmax.f32 %v1293, %v1404
    %v1465 = vmax.f32 %v1295, %v1405
    %v1466 = vmax.f32 %v1297, %v1406
    %v1467 = vmax.f32 %v1301, %v1407
    %v1468 = vmax.f32 %v1303, %v1408
    %v1469 = vmax.f32 %v1305, %v1409
    %v1470 = vmax.f32 %v1307, %v1410
    %v1471 = vmax.f32 %v1311, %v1411
    %v1472 = vmax.f32 %v1313, %v1412
    %v1473 = vmax.f32 %v1315, %v1413
    %v1474 = vmax.f32 %v1317, %v1414
    %v1475 = vmax.f32 %v1321, %v1415
    %v1476 = vmax.f32 %v1323, %v1416
    %v1477 = vmax.f32 %v1325, %v1417
    %v1478 = vmax.f32 %v1327, %v1418
    %v1479 = vmax.f32 %v1331, %v1419
    %v1480 = vmax.f32 %v1333, %v1420
    %v1481 = vmax.f32 %v1335, %v1421
    %v1482 = vmax.f32 %v1337, %v1422
    %v1483 = vmax.f32 %v1341, %v1423
    %v1484 = vmax.f32 %v1343, %v1424
    %v1485 = vmax.f32 %v1345, %v1425
    %v1486 = vmax.f32 %v1347, %v1426
    %v1487 = vmax.f32 %v1351, %v1427
    %v1488 = vmax.f32 %v1353, %v1428
    %v1489 = vmax.f32 %v1355, %v1429
    %v1490 = vmax.f32 %v1357, %v1430
    %v1491 = vmax.f32 %v1361, %v1431
    %v1492 = vmax.f32 %v1363, %v1432
    %v1493 = vmax.f32 %v1365, %v1433
    %v1494 = vmax.f32 %v1367, %v1434
    %v1495 = vmax.f32 %v1371, %v1435
    %v1496 = vmax.f32 %v1373, %v1436
    %v1497 = vmax.f32 %v1375, %v1437
    %v1498 = vmax.f32 %v1377, %v1438
    %v1499 = vld [vmem:[%s0 + $0x168] sm:$0xf]
    %v1500 = vld [vmem:[%s0 + $0x16c] sm:$0xf]
    %v1501 = vld [vmem:[%s0 + $0x170] sm:$0xf]
    %v1502 = vld [vmem:[%s0 + $0x174] sm:$0xf]
    %v1503 = vld [vmem:[%s0 + $0x178] sm:$0xf]
    %v1504 = vld [vmem:[%s0 + $0x17c] sm:$0xf]
    %v1505 = vld [vmem:[%s0 + $0x180] sm:$0xf]
    %v1506 = vld [vmem:[%s0 + $0x184] sm:$0xf]
    %v1507 = vld [vmem:[%s0 + $0x188] sm:$0xf]
    %v1508 = vld [vmem:[%s0 + $0x18c] sm:$0xf]
    %v1509 = vld [vmem:[%s0 + $0x190] sm:$0xf]
    %v1510 = vld [vmem:[%s0 + $0x194] sm:$0xf]
    %v1511 = vld [vmem:[%s0 + $0x198] sm:$0xf]
    %v1512 = vld [vmem:[%s0 + $0x19c] sm:$0xf]
    %v1513 = vld [vmem:[%s0 + $0x1a0] sm:$0xf]
    %v1514 = vld [vmem:[%s0 + $0x1a4] sm:$0xf]
    %v1515 = vld [vmem:[%s0 + $0x1a8] sm:$0xf]
    %v1516 = vld [vmem:[%s0 + $0x1ac] sm:$0xf]
    %v1517 = vld [vmem:[%s0 + $0x1b0] sm:$0xf]
    %v1518 = vld [vmem:[%s0 + $0x1b4] sm:$0xf]
    %v1519 = vld [vmem:[%s0 + $0x1b8] sm:$0xf]
    %v1520 = vld [vmem:[%s0 + $0x1bc] sm:$0xf]
    %v1521 = vld [vmem:[%s0 + $0x1c0] sm:$0xf]
    %v1522 = vld [vmem:[%s0 + $0x1c4] sm:$0xf]
    %v1523 = vld [vmem:[%s0 + $0x1c8] sm:$0xf]
    %v1524 = vld [vmem:[%s0 + $0x1cc] sm:$0xf]
    %v1525 = vld [vmem:[%s0 + $0x1d0] sm:$0xf]
    %v1526 = vld [vmem:[%s0 + $0x1d4] sm:$0xf]
    %v1527 = vld [vmem:[%s0 + $0x1d8] sm:$0xf]
    %v1528 = vld [vmem:[%s0 + $0x1dc] sm:$0xf]
    %v1529 = vld [vmem:[%s0 + $0x1e0] sm:$0xf]
    %v1530 = vld [vmem:[%s0 + $0x1e4] sm:$0xf]
    %v1531 = vld [vmem:[%s0 + $0x1e8] sm:$0xf]
    %v1532 = vld [vmem:[%s0 + $0x1ec] sm:$0xf]
    %v1533 = vld [vmem:[%s0 + $0x1f0] sm:$0xf]
    %v1534 = vld [vmem:[%s0 + $0x1f4] sm:$0xf]
    %v1535 = vld [vmem:[%s0 + $0x1f8] sm:$0xf]
    %v1536 = vld [vmem:[%s0 + $0x1fc] sm:$0xf]
    %v1537 = vld [vmem:[%s0 + $0x200] sm:$0xf]
    %v1538 = vld [vmem:[%s0 + $0x204] sm:$0xf]
    %v1539 = vld [vmem:[%s0 + $0x208] sm:$0xf]
    %v1540 = vld [vmem:[%s0 + $0x20c] sm:$0xf]
    %v1541 = vld [vmem:[%s0 + $0x210] sm:$0xf]
    %v1542 = vld [vmem:[%s0 + $0x214] sm:$0xf]
    %v1543 = vld [vmem:[%s0 + $0x218] sm:$0xf]
    %v1544 = vld [vmem:[%s0 + $0x21c] sm:$0xf]
    %v1545 = vld [vmem:[%s0 + $0x220] sm:$0xf]
    %v1546 = vld [vmem:[%s0 + $0x224] sm:$0xf]
    %v1547 = vld [vmem:[%s0 + $0x228] sm:$0xf]
    %v1548 = vld [vmem:[%s0 + $0x22c] sm:$0xf]
    %v1549 = vld [vmem:[%s0 + $0x230] sm:$0xf]
    %v1550 = vld [vmem:[%s0 + $0x234] sm:$0xf]
    %v1551 = vld [vmem:[%s0 + $0x238] sm:$0xf]
    %v1552 = vld [vmem:[%s0 + $0x23c] sm:$0xf]
    %v1553 = vld [vmem:[%s0 + $0x240] sm:$0xf]
    %v1554 = vld [vmem:[%s0 + $0x244] sm:$0xf]
    %v1555 = vld [vmem:[%s0 + $0x248] sm:$0xf]
    %v1556 = vld [vmem:[%s0 + $0x24c] sm:$0xf]
    %v1557 = vld [vmem:[%s0 + $0x250] sm:$0xf]
    %v1558 = vld [vmem:[%s0 + $0x254] sm:$0xf]
    %s1559 = scalar_lea.vmem %s1, 32
    %v1560 = vld [vmem:[%s1559] sm:$0xff]
    %v1561 = vld [vmem:[%s1559 + $0x8] sm:$0x11]
    %s1562 = scalar_lea.vmem %s2, 4
    %v1563 = vld [vmem:[%s1562] sm:$0x3]
    %v1565 = vlaneseq
    %v1566 = vshrl.u32 %v1565, 7
    %v1567 = vsub.s32 0, %v1566
    %v1568 = vrot.slane %v1563, %v1567
    %v1569 = vlaneseq
    %v1570 = vshrl.u32 %v1569, 7
    %v1571 = vsub.s32 1, %v1570
    %v1572 = vrot.slane %v1563, %v1571
    %v1635 = vunpack.c.l.b16 %v1499
    %v1636 = vunpack.c.l.b16 %v1500
    %v1637 = vunpack.c.l.b16 %v1501
    %v1638 = vunpack.c.l.b16 %v1502
    %v1639 = vunpack.c.l.b16 %v1503
    %v1640 = vunpack.c.l.b16 %v1504
    %v1641 = vunpack.c.l.b16 %v1505
    %v1642 = vunpack.c.l.b16 %v1506
    %v1643 = vunpack.c.l.b16 %v1507
    %v1644 = vunpack.c.l.b16 %v1508
    %v1645 = vunpack.c.l.b16 %v1509
    %v1646 = vunpack.c.l.b16 %v1510
    %v1647 = vunpack.c.l.b16 %v1511
    %v1648 = vunpack.c.l.b16 %v1512
    %v1649 = vunpack.c.l.b16 %v1513
    %v1650 = vunpack.c.l.b16 %v1514
    %v1651 = vunpack.c.l.b16 %v1515
    %v1652 = vunpack.c.l.b16 %v1516
    %v1653 = vunpack.c.l.b16 %v1517
    %v1654 = vunpack.c.l.b16 %v1518
    %v1655 = vunpack.c.l.b16 %v1519
    %v1656 = vunpack.c.l.b16 %v1520
    %v1657 = vunpack.c.l.b16 %v1521
    %v1658 = vunpack.c.l.b16 %v1522
    %v1659 = vunpack.c.l.b16 %v1523
    %v1660 = vunpack.c.l.b16 %v1524
    %v1661 = vunpack.c.l.b16 %v1525
    %v1662 = vunpack.c.l.b16 %v1526
    %v1663 = vunpack.c.l.b16 %v1527
    %v1664 = vunpack.c.l.b16 %v1528
    %v1665 = vunpack.c.l.b16 %v1529
    %v1666 = vunpack.c.l.b16 %v1530
    %v1667 = vunpack.c.l.b16 %v1531
    %v1668 = vunpack.c.l.b16 %v1532
    %v1669 = vunpack.c.l.b16 %v1533
    %v1670 = vunpack.c.l.b16 %v1534
    %v1671 = vunpack.c.l.b16 %v1535
    %v1672 = vunpack.c.l.b16 %v1536
    %v1673 = vunpack.c.l.b16 %v1537
    %v1674 = vunpack.c.l.b16 %v1538
    %v1675 = vunpack.c.l.b16 %v1539
    %v1676 = vunpack.c.l.b16 %v1540
    %v1677 = vunpack.c.l.b16 %v1541
    %v1678 = vunpack.c.l.b16 %v1542
    %v1679 = vunpack.c.l.b16 %v1543
    %v1680 = vunpack.c.l.b16 %v1544
    %v1681 = vunpack.c.l.b16 %v1545
    %v1682 = vunpack.c.l.b16 %v1546
    %v1683 = vunpack.c.l.b16 %v1547
    %v1684 = vunpack.c.l.b16 %v1548
    %v1685 = vunpack.c.l.b16 %v1549
    %v1686 = vunpack.c.l.b16 %v1550
    %v1687 = vunpack.c.l.b16 %v1551
    %v1688 = vunpack.c.l.b16 %v1552
    %v1689 = vunpack.c.l.b16 %v1553
    %v1690 = vunpack.c.l.b16 %v1554
    %v1691 = vunpack.c.l.b16 %v1555
    %v1692 = vunpack.c.l.b16 %v1556
    %v1693 = vunpack.c.l.b16 %v1557
    %v1694 = vunpack.c.l.b16 %v1558
    %v1695 = vpack.c.b16 %v1636, %v1635
    %v1696 = vpack.c.b16 %v1638, %v1637
    %v1697 = vpack.c.b16 %v1640, %v1639
    %v1698 = vpack.c.b16 %v1642, %v1641
    %v1699 = vpack.c.b16 %v1644, %v1643
    %v1700 = vpack.c.b16 %v1646, %v1645
    %v1701 = vpack.c.b16 %v1648, %v1647
    %v1702 = vpack.c.b16 %v1650, %v1649
    %v1703 = vpack.c.b16 %v1652, %v1651
    %v1704 = vpack.c.b16 %v1654, %v1653
    %v1705 = vpack.c.b16 %v1656, %v1655
    %v1706 = vpack.c.b16 %v1658, %v1657
    %v1707 = vpack.c.b16 %v1660, %v1659
    %v1708 = vpack.c.b16 %v1662, %v1661
    %v1709 = vpack.c.b16 %v1664, %v1663
    %v1710 = vpack.c.b16 %v1666, %v1665
    %v1711 = vpack.c.b16 %v1668, %v1667
    %v1712 = vpack.c.b16 %v1670, %v1669
    %v1713 = vpack.c.b16 %v1672, %v1671
    %v1714 = vpack.c.b16 %v1674, %v1673
    %v1715 = vpack.c.b16 %v1676, %v1675
    %v1716 = vpack.c.b16 %v1678, %v1677
    %v1717 = vpack.c.b16 %v1680, %v1679
    %v1718 = vpack.c.b16 %v1682, %v1681
    %v1719 = vpack.c.b16 %v1684, %v1683
    %v1720 = vpack.c.b16 %v1686, %v1685
    %v1721 = vpack.c.b16 %v1688, %v1687
    %v1722 = vpack.c.b16 %v1690, %v1689
    %v1723 = vpack.c.b16 %v1692, %v1691
    %v1724 = vpack.c.b16 %v1694, %v1693
    %v1727 = vunpack.c.l.b16 %v1560
    %v1728 = vunpack.c.h.b16 %v1560
    %v1729 = vunpack.c.l.b16 %v1561
    %v1730 = vunpack.c.h.b16 %v1561
    %v1731 = vpack.c.b16 %v1729, %v1727
    %v1732 = vpack.c.b16 %v1730, %v1728
    %v1734 = vsel %vm282, %v1695, 0
    %v1737 = vsel %vm282, %v1696, 0
    %v1740 = vsel %vm282, %v1697, 0
    %v1743 = vsel %vm282, %v1698, 0
    %v1746 = vsel %vm282, %v1699, 0
    %v1749 = vsel %vm282, %v1700, 0
    %v1752 = vsel %vm282, %v1701, 0
    %v1755 = vsel %vm282, %v1702, 0
    %v1758 = vsel %vm282, %v1703, 0
    %v1761 = vsel %vm282, %v1704, 0
    %v1764 = vsel %vm282, %v1705, 0
    %v1767 = vsel %vm282, %v1706, 0
    %v1770 = vsel %vm282, %v1707, 0
    %v1773 = vsel %vm282, %v1708, 0
    %v1776 = vsel %vm282, %v1709, 0
    %v1779 = vsel %vm282, %v1710, 0
    %v1782 = vsel %vm282, %v1711, 0
    %v1785 = vsel %vm282, %v1712, 0
    %v1788 = vsel %vm282, %v1713, 0
    %v1791 = vsel %vm282, %v1714, 0
    %v1794 = vsel %vm282, %v1715, 0
    %v1797 = vsel %vm282, %v1716, 0
    %v1800 = vsel %vm282, %v1717, 0
    %v1803 = vsel %vm282, %v1718, 0
    %v1806 = vsel %vm282, %v1719, 0
    %v1809 = vsel %vm282, %v1720, 0
    %v1812 = vsel %vm282, %v1721, 0
    %v1815 = vsel %vm282, %v1722, 0
    %v1818 = vsel %vm282, %v1723, 0
    %v1821 = vsel %vm282, %v1724, 0
    %v1824 = vand.u32 %v1731, %v376
    %v1827 = vand.u32 %v1732, %v376
    %1829 = vmatprep.subr.bf16.mxu0 %v1827
    %1830 = vmatpush1.bf16.msra.mxu0 %v1824
    %1831 = vmatprep.subr.bf16.mxu0 0
    %1832 = vmatpush1.bf16.msra.mxu0 0
    %1833 = vmatprep.subr.bf16.mxu0 0
    %1834 = vmatpush1.bf16.msra.mxu0 0
    %1835 = vmatprep.subr.bf16.mxu0 0
    %1836 = vmatpush1.bf16.msra.mxu0 0
    %1837 = vmatprep.subr.bf16.mxu0 0
    %1838 = vmatpush1.bf16.msra.mxu0 0
    %1839 = vmatprep.subr.bf16.mxu0 0
    %1840 = vmatpush1.bf16.msra.mxu0 0
    %1841 = vmatprep.subr.bf16.mxu0 0
    %1842 = vmatpush1.bf16.msra.mxu0 0
    %1843 = vmatprep.subr.bf16.mxu0 0
    %1844 = vmatpush1.bf16.msra.mxu0 0
    %1845 = vmatprep.subr.bf16.mxu0 0
    %1846 = vmatpush1.bf16.msra.mxu0 0
    %1847 = vmatprep.subr.bf16.mxu0 0
    %1848 = vmatpush1.bf16.msra.mxu0 0
    %1849 = vmatprep.subr.bf16.mxu0 0
    %1850 = vmatpush1.bf16.msra.mxu0 0
    %1851 = vmatprep.subr.bf16.mxu0 0
    %1852 = vmatpush1.bf16.msra.mxu0 0
    %1853 = vmatprep.subr.bf16.mxu0 0
    %1854 = vmatpush1.bf16.msra.mxu0 0
    %1855 = vmatprep.subr.bf16.mxu0 0
    %1856 = vmatpush1.bf16.msra.mxu0 0
    %1857 = vmatprep.subr.bf16.mxu0 0
    %1858 = vmatpush1.bf16.msra.mxu0 0
    %1859 = vmatprep.subr.bf16.mxu0 0
    %1860 = vmatpush1.bf16.msra.mxu0 0
    %1861 = vmatprep.mubr.bf16.mxu0 0
    %1862 = vmatmul.mubr.bf16.gmra.mrb[0].mxu0 %v1734
    %v1863 = vpop.f32.mrb[0].mxu0
    %v1864 = vadd.f32 %v1568, %v1863
    %v1865 = vpop.f32.mrb[0].mxu0
    %v1866 = vadd.f32 %v1572, %v1865
    %v1867 = vpop.f32.mrb[0].mxu0
    %v1868 = vadd.f32 %v1568, %v1867
    %v1869 = vpop.f32.mrb[0].mxu0
    %v1870 = vadd.f32 %v1572, %v1869
    %1871 = vmatprep.mubr.bf16.mxu0 0
    %1872 = vmatmul.mubr.bf16.gmra.mrb[0].mxu0 %v1737
    %v1873 = vpop.f32.mrb[0].mxu0
    %v1874 = vadd.f32 %v1568, %v1873
    %v1875 = vpop.f32.mrb[0].mxu0
    %v1876 = vadd.f32 %v1572, %v1875
    %v1877 = vpop.f32.mrb[0].mxu0
    %v1878 = vadd.f32 %v1568, %v1877
    %v1879 = vpop.f32.mrb[0].mxu0
    %v1880 = vadd.f32 %v1572, %v1879
    %1881 = vmatprep.mubr.bf16.mxu0 0
    %1882 = vmatmul.mubr.bf16.gmra.mrb[0].mxu0 %v1740
    %v1883 = vpop.f32.mrb[0].mxu0
    %v1884 = vadd.f32 %v1568, %v1883
    %v1885 = vpop.f32.mrb[0].mxu0
    %v1886 = vadd.f32 %v1572, %v1885
    %v1887 = vpop.f32.mrb[0].mxu0
    %v1888 = vadd.f32 %v1568, %v1887
    %v1889 = vpop.f32.mrb[0].mxu0
    %v1890 = vadd.f32 %v1572, %v1889
    %1891 = vmatprep.mubr.bf16.mxu0 0
    %1892 = vmatmul.mubr.bf16.gmra.mrb[0].mxu0 %v1743
    %v1893 = vpop.f32.mrb[0].mxu0
    %v1894 = vadd.f32 %v1568, %v1893
    %v1895 = vpop.f32.mrb[0].mxu0
    %v1896 = vadd.f32 %v1572, %v1895
    %v1897 = vpop.f32.mrb[0].mxu0
    %v1898 = vadd.f32 %v1568, %v1897
    %v1899 = vpop.f32.mrb[0].mxu0
    %v1900 = vadd.f32 %v1572, %v1899
    %1901 = vmatprep.mubr.bf16.mxu0 0
    %1902 = vmatmul.mubr.bf16.gmra.mrb[0].mxu0 %v1746
    %v1903 = vpop.f32.mrb[0].mxu0
    %v1904 = vadd.f32 %v1568, %v1903
    %v1905 = vpop.f32.mrb[0].mxu0
    %v1906 = vadd.f32 %v1572, %v1905
    %v1907 = vpop.f32.mrb[0].mxu0
    %v1908 = vadd.f32 %v1568, %v1907
    %v1909 = vpop.f32.mrb[0].mxu0
    %v1910 = vadd.f32 %v1572, %v1909
    %1911 = vmatprep.mubr.bf16.mxu0 0
    %1912 = vmatmul.mubr.bf16.gmra.mrb[0].mxu0 %v1749
    %v1913 = vpop.f32.mrb[0].mxu0
    %v1914 = vadd.f32 %v1568, %v1913
    %v1915 = vpop.f32.mrb[0].mxu0
    %v1916 = vadd.f32 %v1572, %v1915
    %v1917 = vpop.f32.mrb[0].mxu0
    %v1918 = vadd.f32 %v1568, %v1917
    %v1919 = vpop.f32.mrb[0].mxu0
    %v1920 = vadd.f32 %v1572, %v1919
    %1921 = vmatprep.mubr.bf16.mxu0 0
    %1922 = vmatmul.mubr.bf16.gmra.mrb[0].mxu0 %v1752
    %v1923 = vpop.f32.mrb[0].mxu0
    %v1924 = vadd.f32 %v1568, %v1923
    %v1925 = vpop.f32.mrb[0].mxu0
    %v1926 = vadd.f32 %v1572, %v1925
    %v1927 = vpop.f32.mrb[0].mxu0
    %v1928 = vadd.f32 %v1568, %v1927
    %v1929 = vpop.f32.mrb[0].mxu0
    %v1930 = vadd.f32 %v1572, %v1929
    %1931 = vmatprep.mubr.bf16.mxu0 0
    %1932 = vmatmul.mubr.bf16.gmra.mrb[0].mxu0 %v1755
    %v1933 = vpop.f32.mrb[0].mxu0
    %v1934 = vadd.f32 %v1568, %v1933
    %v1935 = vpop.f32.mrb[0].mxu0
    %v1936 = vadd.f32 %v1572, %v1935
    %v1937 = vpop.f32.mrb[0].mxu0
    %v1938 = vadd.f32 %v1568, %v1937
    %v1939 = vpop.f32.mrb[0].mxu0
    %v1940 = vadd.f32 %v1572, %v1939
    %1941 = vmatprep.mubr.bf16.mxu0 0
    %1942 = vmatmul.mubr.bf16.gmra.mrb[0].mxu0 %v1758
    %v1943 = vpop.f32.mrb[0].mxu0
    %v1944 = vadd.f32 %v1568, %v1943
    %v1945 = vpop.f32.mrb[0].mxu0
    %v1946 = vadd.f32 %v1572, %v1945
    %v1947 = vpop.f32.mrb[0].mxu0
    %v1948 = vadd.f32 %v1568, %v1947
    %v1949 = vpop.f32.mrb[0].mxu0
    %v1950 = vadd.f32 %v1572, %v1949
    %1951 = vmatprep.mubr.bf16.mxu0 0
    %1952 = vmatmul.mubr.bf16.gmra.mrb[0].mxu0 %v1761
    %v1953 = vpop.f32.mrb[0].mxu0
    %v1954 = vadd.f32 %v1568, %v1953
    %v1955 = vpop.f32.mrb[0].mxu0
    %v1956 = vadd.f32 %v1572, %v1955
    %v1957 = vpop.f32.mrb[0].mxu0
    %v1958 = vadd.f32 %v1568, %v1957
    %v1959 = vpop.f32.mrb[0].mxu0
    %v1960 = vadd.f32 %v1572, %v1959
    %1961 = vmatprep.mubr.bf16.mxu0 0
    %1962 = vmatmul.mubr.bf16.gmra.mrb[0].mxu0 %v1764
    %v1963 = vpop.f32.mrb[0].mxu0
    %v1964 = vadd.f32 %v1568, %v1963
    %v1965 = vpop.f32.mrb[0].mxu0
    %v1966 = vadd.f32 %v1572, %v1965
    %v1967 = vpop.f32.mrb[0].mxu0
    %v1968 = vadd.f32 %v1568, %v1967
    %v1969 = vpop.f32.mrb[0].mxu0
    %v1970 = vadd.f32 %v1572, %v1969
    %1971 = vmatprep.mubr.bf16.mxu0 0
    %1972 = vmatmul.mubr.bf16.gmra.mrb[0].mxu0 %v1767
    %v1973 = vpop.f32.mrb[0].mxu0
    %v1974 = vadd.f32 %v1568, %v1973
    %v1975 = vpop.f32.mrb[0].mxu0
    %v1976 = vadd.f32 %v1572, %v1975
    %v1977 = vpop.f32.mrb[0].mxu0
    %v1978 = vadd.f32 %v1568, %v1977
    %v1979 = vpop.f32.mrb[0].mxu0
    %v1980 = vadd.f32 %v1572, %v1979
    %1981 = vmatprep.mubr.bf16.mxu0 0
    %1982 = vmatmul.mubr.bf16.gmra.mrb[0].mxu0 %v1770
    %v1983 = vpop.f32.mrb[0].mxu0
    %v1984 = vadd.f32 %v1568, %v1983
    %v1985 = vpop.f32.mrb[0].mxu0
    %v1986 = vadd.f32 %v1572, %v1985
    %v1987 = vpop.f32.mrb[0].mxu0
    %v1988 = vadd.f32 %v1568, %v1987
    %v1989 = vpop.f32.mrb[0].mxu0
    %v1990 = vadd.f32 %v1572, %v1989
    %1991 = vmatprep.mubr.bf16.mxu0 0
    %1992 = vmatmul.mubr.bf16.gmra.mrb[0].mxu0 %v1773
    %v1993 = vpop.f32.mrb[0].mxu0
    %v1994 = vadd.f32 %v1568, %v1993
    %v1995 = vpop.f32.mrb[0].mxu0
    %v1996 = vadd.f32 %v1572, %v1995
    %v1997 = vpop.f32.mrb[0].mxu0
    %v1998 = vadd.f32 %v1568, %v1997
    %v1999 = vpop.f32.mrb[0].mxu0
    %v2000 = vadd.f32 %v1572, %v1999
    %2001 = vmatprep.mubr.bf16.mxu0 0
    %2002 = vmatmul.mubr.bf16.gmra.mrb[0].mxu0 %v1776
    %v2003 = vpop.f32.mrb[0].mxu0
    %v2004 = vadd.f32 %v1568, %v2003
    %v2005 = vpop.f32.mrb[0].mxu0
    %v2006 = vadd.f32 %v1572, %v2005
    %v2007 = vpop.f32.mrb[0].mxu0
    %v2008 = vadd.f32 %v1568, %v2007
    %v2009 = vpop.f32.mrb[0].mxu0
    %v2010 = vadd.f32 %v1572, %v2009
    %2011 = vmatprep.mubr.bf16.mxu0 0
    %2012 = vmatmul.mubr.bf16.gmra.mrb[0].mxu0 %v1779
    %v2013 = vpop.f32.mrb[0].mxu0
    %v2014 = vadd.f32 %v1568, %v2013
    %v2015 = vpop.f32.mrb[0].mxu0
    %v2016 = vadd.f32 %v1572, %v2015
    %v2017 = vpop.f32.mrb[0].mxu0
    %v2018 = vadd.f32 %v1568, %v2017
    %v2019 = vpop.f32.mrb[0].mxu0
    %v2020 = vadd.f32 %v1572, %v2019
    %2021 = vmatprep.mubr.bf16.mxu0 0
    %2022 = vmatmul.mubr.bf16.gmra.mrb[0].mxu0 %v1782
    %v2023 = vpop.f32.mrb[0].mxu0
    %v2024 = vadd.f32 %v1568, %v2023
    %v2025 = vpop.f32.mrb[0].mxu0
    %v2026 = vadd.f32 %v1572, %v2025
    %v2027 = vpop.f32.mrb[0].mxu0
    %v2028 = vadd.f32 %v1568, %v2027
    %v2029 = vpop.f32.mrb[0].mxu0
    %v2030 = vadd.f32 %v1572, %v2029
    %2031 = vmatprep.mubr.bf16.mxu0 0
    %2032 = vmatmul.mubr.bf16.gmra.mrb[0].mxu0 %v1785
    %v2033 = vpop.f32.mrb[0].mxu0
    %v2034 = vadd.f32 %v1568, %v2033
    %v2035 = vpop.f32.mrb[0].mxu0
    %v2036 = vadd.f32 %v1572, %v2035
    %v2037 = vpop.f32.mrb[0].mxu0
    %v2038 = vadd.f32 %v1568, %v2037
    %v2039 = vpop.f32.mrb[0].mxu0
    %v2040 = vadd.f32 %v1572, %v2039
    %2041 = vmatprep.mubr.bf16.mxu0 0
    %2042 = vmatmul.mubr.bf16.gmra.mrb[0].mxu0 %v1788
    %v2043 = vpop.f32.mrb[0].mxu0
    %v2044 = vadd.f32 %v1568, %v2043
    %v2045 = vpop.f32.mrb[0].mxu0
    %v2046 = vadd.f32 %v1572, %v2045
    %v2047 = vpop.f32.mrb[0].mxu0
    %v2048 = vadd.f32 %v1568, %v2047
    %v2049 = vpop.f32.mrb[0].mxu0
    %v2050 = vadd.f32 %v1572, %v2049
    %2051 = vmatprep.mubr.bf16.mxu0 0
    %2052 = vmatmul.mubr.bf16.gmra.mrb[0].mxu0 %v1791
    %v2053 = vpop.f32.mrb[0].mxu0
    %v2054 = vadd.f32 %v1568, %v2053
    %v2055 = vpop.f32.mrb[0].mxu0
    %v2056 = vadd.f32 %v1572, %v2055
    %v2057 = vpop.f32.mrb[0].mxu0
    %v2058 = vadd.f32 %v1568, %v2057
    %v2059 = vpop.f32.mrb[0].mxu0
    %v2060 = vadd.f32 %v1572, %v2059
    %2061 = vmatprep.mubr.bf16.mxu0 0
    %2062 = vmatmul.mubr.bf16.gmra.mrb[0].mxu0 %v1794
    %v2063 = vpop.f32.mrb[0].mxu0
    %v2064 = vadd.f32 %v1568, %v2063
    %v2065 = vpop.f32.mrb[0].mxu0
    %v2066 = vadd.f32 %v1572, %v2065
    %v2067 = vpop.f32.mrb[0].mxu0
    %v2068 = vadd.f32 %v1568, %v2067
    %v2069 = vpop.f32.mrb[0].mxu0
    %v2070 = vadd.f32 %v1572, %v2069
    %2071 = vmatprep.mubr.bf16.mxu0 0
    %2072 = vmatmul.mubr.bf16.gmra.mrb[0].mxu0 %v1797
    %v2073 = vpop.f32.mrb[0].mxu0
    %v2074 = vadd.f32 %v1568, %v2073
    %v2075 = vpop.f32.mrb[0].mxu0
    %v2076 = vadd.f32 %v1572, %v2075
    %v2077 = vpop.f32.mrb[0].mxu0
    %v2078 = vadd.f32 %v1568, %v2077
    %v2079 = vpop.f32.mrb[0].mxu0
    %v2080 = vadd.f32 %v1572, %v2079
    %2081 = vmatprep.mubr.bf16.mxu0 0
    %2082 = vmatmul.mubr.bf16.gmra.mrb[0].mxu0 %v1800
    %v2083 = vpop.f32.mrb[0].mxu0
    %v2084 = vadd.f32 %v1568, %v2083
    %v2085 = vpop.f32.mrb[0].mxu0
    %v2086 = vadd.f32 %v1572, %v2085
    %v2087 = vpop.f32.mrb[0].mxu0
    %v2088 = vadd.f32 %v1568, %v2087
    %v2089 = vpop.f32.mrb[0].mxu0
    %v2090 = vadd.f32 %v1572, %v2089
    %2091 = vmatprep.mubr.bf16.mxu0 0
    %2092 = vmatmul.mubr.bf16.gmra.mrb[0].mxu0 %v1803
    %v2093 = vpop.f32.mrb[0].mxu0
    %v2094 = vadd.f32 %v1568, %v2093
    %v2095 = vpop.f32.mrb[0].mxu0
    %v2096 = vadd.f32 %v1572, %v2095
    %v2097 = vpop.f32.mrb[0].mxu0
    %v2098 = vadd.f32 %v1568, %v2097
    %v2099 = vpop.f32.mrb[0].mxu0
    %v2100 = vadd.f32 %v1572, %v2099
    %2101 = vmatprep.mubr.bf16.mxu0 0
    %2102 = vmatmul.mubr.bf16.gmra.mrb[0].mxu0 %v1806
    %v2103 = vpop.f32.mrb[0].mxu0
    %v2104 = vadd.f32 %v1568, %v2103
    %v2105 = vpop.f32.mrb[0].mxu0
    %v2106 = vadd.f32 %v1572, %v2105
    %v2107 = vpop.f32.mrb[0].mxu0
    %v2108 = vadd.f32 %v1568, %v2107
    %v2109 = vpop.f32.mrb[0].mxu0
    %v2110 = vadd.f32 %v1572, %v2109
    %2111 = vmatprep.mubr.bf16.mxu0 0
    %2112 = vmatmul.mubr.bf16.gmra.mrb[0].mxu0 %v1809
    %v2113 = vpop.f32.mrb[0].mxu0
    %v2114 = vadd.f32 %v1568, %v2113
    %v2115 = vpop.f32.mrb[0].mxu0
    %v2116 = vadd.f32 %v1572, %v2115
    %v2117 = vpop.f32.mrb[0].mxu0
    %v2118 = vadd.f32 %v1568, %v2117
    %v2119 = vpop.f32.mrb[0].mxu0
    %v2120 = vadd.f32 %v1572, %v2119
    %2121 = vmatprep.mubr.bf16.mxu0 0
    %2122 = vmatmul.mubr.bf16.gmra.mrb[0].mxu0 %v1812
    %v2123 = vpop.f32.mrb[0].mxu0
    %v2124 = vadd.f32 %v1568, %v2123
    %v2125 = vpop.f32.mrb[0].mxu0
    %v2126 = vadd.f32 %v1572, %v2125
    %v2127 = vpop.f32.mrb[0].mxu0
    %v2128 = vadd.f32 %v1568, %v2127
    %v2129 = vpop.f32.mrb[0].mxu0
    %v2130 = vadd.f32 %v1572, %v2129
    %2131 = vmatprep.mubr.bf16.mxu0 0
    %2132 = vmatmul.mubr.bf16.gmra.mrb[0].mxu0 %v1815
    %v2133 = vpop.f32.mrb[0].mxu0
    %v2134 = vadd.f32 %v1568, %v2133
    %v2135 = vpop.f32.mrb[0].mxu0
    %v2136 = vadd.f32 %v1572, %v2135
    %v2137 = vpop.f32.mrb[0].mxu0
    %v2138 = vadd.f32 %v1568, %v2137
    %v2139 = vpop.f32.mrb[0].mxu0
    %v2140 = vadd.f32 %v1572, %v2139
    %2141 = vmatprep.mubr.bf16.mxu0 0
    %2142 = vmatmul.mubr.bf16.gmra.mrb[0].mxu0 %v1818
    %v2143 = vpop.f32.mrb[0].mxu0
    %v2144 = vadd.f32 %v1568, %v2143
    %v2145 = vpop.f32.mrb[0].mxu0
    %v2146 = vadd.f32 %v1572, %v2145
    %v2147 = vpop.f32.mrb[0].mxu0
    %v2148 = vadd.f32 %v1568, %v2147
    %v2149 = vpop.f32.mrb[0].mxu0
    %v2150 = vadd.f32 %v1572, %v2149
    %2151 = vmatprep.mubr.bf16.mxu0 0
    %2152 = vmatmul.mubr.bf16.gmra.mrb[0].mxu0 %v1821
    %v2153 = vpop.f32.mrb[0].mxu0
    %v2154 = vadd.f32 %v1568, %v2153
    %v2155 = vpop.f32.mrb[0].mxu0
    %v2156 = vadd.f32 %v1572, %v2155
    %v2157 = vpop.f32.mrb[0].mxu0
    %v2158 = vadd.f32 %v1568, %v2157
    %v2159 = vpop.f32.mrb[0].mxu0
    %v2160 = vadd.f32 %v1572, %v2159
    %2161 = vdwg.mxu0
    %v2162 = vmul.f32 %v1864, 0.01
    %v2163 = vmul.f32 %v1866, 0.01
    %v2164 = vmul.f32 %v1868, 0.01
    %v2165 = vmul.f32 %v1870, 0.01
    %v2166 = vmul.f32 %v1874, 0.01
    %v2167 = vmul.f32 %v1876, 0.01
    %v2168 = vmul.f32 %v1878, 0.01
    %v2169 = vmul.f32 %v1880, 0.01
    %v2170 = vmul.f32 %v1884, 0.01
    %v2171 = vmul.f32 %v1886, 0.01
    %v2172 = vmul.f32 %v1888, 0.01
    %v2173 = vmul.f32 %v1890, 0.01
    %v2174 = vmul.f32 %v1894, 0.01
    %v2175 = vmul.f32 %v1896, 0.01
    %v2176 = vmul.f32 %v1898, 0.01
    %v2177 = vmul.f32 %v1900, 0.01
    %v2178 = vmul.f32 %v1904, 0.01
    %v2179 = vmul.f32 %v1906, 0.01
    %v2180 = vmul.f32 %v1908, 0.01
    %v2181 = vmul.f32 %v1910, 0.01
    %v2182 = vmul.f32 %v1914, 0.01
    %v2183 = vmul.f32 %v1916, 0.01
    %v2184 = vmul.f32 %v1918, 0.01
    %v2185 = vmul.f32 %v1920, 0.01
    %v2186 = vmul.f32 %v1924, 0.01
    %v2187 = vmul.f32 %v1926, 0.01
    %v2188 = vmul.f32 %v1928, 0.01
    %v2189 = vmul.f32 %v1930, 0.01
    %v2190 = vmul.f32 %v1934, 0.01
    %v2191 = vmul.f32 %v1936, 0.01
    %v2192 = vmul.f32 %v1938, 0.01
    %v2193 = vmul.f32 %v1940, 0.01
    %v2194 = vmul.f32 %v1944, 0.01
    %v2195 = vmul.f32 %v1946, 0.01
    %v2196 = vmul.f32 %v1948, 0.01
    %v2197 = vmul.f32 %v1950, 0.01
    %v2198 = vmul.f32 %v1954, 0.01
    %v2199 = vmul.f32 %v1956, 0.01
    %v2200 = vmul.f32 %v1958, 0.01
    %v2201 = vmul.f32 %v1960, 0.01
    %v2202 = vmul.f32 %v1964, 0.01
    %v2203 = vmul.f32 %v1966, 0.01
    %v2204 = vmul.f32 %v1968, 0.01
    %v2205 = vmul.f32 %v1970, 0.01
    %v2206 = vmul.f32 %v1974, 0.01
    %v2207 = vmul.f32 %v1976, 0.01
    %v2208 = vmul.f32 %v1978, 0.01
    %v2209 = vmul.f32 %v1980, 0.01
    %v2210 = vmul.f32 %v1984, 0.01
    %v2211 = vmul.f32 %v1986, 0.01
    %v2212 = vmul.f32 %v1988, 0.01
    %v2213 = vmul.f32 %v1990, 0.01
    %v2214 = vmul.f32 %v1994, 0.01
    %v2215 = vmul.f32 %v1996, 0.01
    %v2216 = vmul.f32 %v1998, 0.01
    %v2217 = vmul.f32 %v2000, 0.01
    %v2218 = vmul.f32 %v2004, 0.01
    %v2219 = vmul.f32 %v2006, 0.01
    %v2220 = vmul.f32 %v2008, 0.01
    %v2221 = vmul.f32 %v2010, 0.01
    %v2222 = vmul.f32 %v2014, 0.01
    %v2223 = vmul.f32 %v2016, 0.01
    %v2224 = vmul.f32 %v2018, 0.01
    %v2225 = vmul.f32 %v2020, 0.01
    %v2226 = vmul.f32 %v2024, 0.01
    %v2227 = vmul.f32 %v2026, 0.01
    %v2228 = vmul.f32 %v2028, 0.01
    %v2229 = vmul.f32 %v2030, 0.01
    %v2230 = vmul.f32 %v2034, 0.01
    %v2231 = vmul.f32 %v2036, 0.01
    %v2232 = vmul.f32 %v2038, 0.01
    %v2233 = vmul.f32 %v2040, 0.01
    %v2234 = vmul.f32 %v2044, 0.01
    %v2235 = vmul.f32 %v2046, 0.01
    %v2236 = vmul.f32 %v2048, 0.01
    %v2237 = vmul.f32 %v2050, 0.01
    %v2238 = vmul.f32 %v2054, 0.01
    %v2239 = vmul.f32 %v2056, 0.01
    %v2240 = vmul.f32 %v2058, 0.01
    %v2241 = vmul.f32 %v2060, 0.01
    %v2242 = vmul.f32 %v2064, 0.01
    %v2243 = vmul.f32 %v2066, 0.01
    %v2244 = vmul.f32 %v2068, 0.01
    %v2245 = vmul.f32 %v2070, 0.01
    %v2246 = vmul.f32 %v2074, 0.01
    %v2247 = vmul.f32 %v2076, 0.01
    %v2248 = vmul.f32 %v2078, 0.01
    %v2249 = vmul.f32 %v2080, 0.01
    %v2250 = vmul.f32 %v2084, 0.01
    %v2251 = vmul.f32 %v2086, 0.01
    %v2252 = vmul.f32 %v2088, 0.01
    %v2253 = vmul.f32 %v2090, 0.01
    %v2254 = vmul.f32 %v2094, 0.01
    %v2255 = vmul.f32 %v2096, 0.01
    %v2256 = vmul.f32 %v2098, 0.01
    %v2257 = vmul.f32 %v2100, 0.01
    %v2258 = vmul.f32 %v2104, 0.01
    %v2259 = vmul.f32 %v2106, 0.01
    %v2260 = vmul.f32 %v2108, 0.01
    %v2261 = vmul.f32 %v2110, 0.01
    %v2262 = vmul.f32 %v2114, 0.01
    %v2263 = vmul.f32 %v2116, 0.01
    %v2264 = vmul.f32 %v2118, 0.01
    %v2265 = vmul.f32 %v2120, 0.01
    %v2266 = vmul.f32 %v2124, 0.01
    %v2267 = vmul.f32 %v2126, 0.01
    %v2268 = vmul.f32 %v2128, 0.01
    %v2269 = vmul.f32 %v2130, 0.01
    %v2270 = vmul.f32 %v2134, 0.01
    %v2271 = vmul.f32 %v2136, 0.01
    %v2272 = vmul.f32 %v2138, 0.01
    %v2273 = vmul.f32 %v2140, 0.01
    %v2274 = vmul.f32 %v2144, 0.01
    %v2275 = vmul.f32 %v2146, 0.01
    %v2276 = vmul.f32 %v2148, 0.01
    %v2277 = vmul.f32 %v2150, 0.01
    %v2278 = vmul.f32 %v2154, 0.01
    %v2279 = vmul.f32 %v2156, 0.01
    %v2280 = vmul.f32 %v2158, 0.01
    %v2281 = vmul.f32 %v2160, 0.01
    %v2282 = vmax.f32 %v1864, %v2162
    %v2283 = vmax.f32 %v1866, %v2163
    %v2284 = vmax.f32 %v1868, %v2164
    %v2285 = vmax.f32 %v1870, %v2165
    %v2286 = vmax.f32 %v1874, %v2166
    %v2287 = vmax.f32 %v1876, %v2167
    %v2288 = vmax.f32 %v1878, %v2168
    %v2289 = vmax.f32 %v1880, %v2169
    %v2290 = vmax.f32 %v1884, %v2170
    %v2291 = vmax.f32 %v1886, %v2171
    %v2292 = vmax.f32 %v1888, %v2172
    %v2293 = vmax.f32 %v1890, %v2173
    %v2294 = vmax.f32 %v1894, %v2174
    %v2295 = vmax.f32 %v1896, %v2175
    %v2296 = vmax.f32 %v1898, %v2176
    %v2297 = vmax.f32 %v1900, %v2177
    %v2298 = vmax.f32 %v1904, %v2178
    %v2299 = vmax.f32 %v1906, %v2179
    %v2300 = vmax.f32 %v1908, %v2180
    %v2301 = vmax.f32 %v1910, %v2181
    %v2302 = vmax.f32 %v1914, %v2182
    %v2303 = vmax.f32 %v1916, %v2183
    %v2304 = vmax.f32 %v1918, %v2184
    %v2305 = vmax.f32 %v1920, %v2185
    %v2306 = vmax.f32 %v1924, %v2186
    %v2307 = vmax.f32 %v1926, %v2187
    %v2308 = vmax.f32 %v1928, %v2188
    %v2309 = vmax.f32 %v1930, %v2189
    %v2310 = vmax.f32 %v1934, %v2190
    %v2311 = vmax.f32 %v1936, %v2191
    %v2312 = vmax.f32 %v1938, %v2192
    %v2313 = vmax.f32 %v1940, %v2193
    %v2314 = vmax.f32 %v1944, %v2194
    %v2315 = vmax.f32 %v1946, %v2195
    %v2316 = vmax.f32 %v1948, %v2196
    %v2317 = vmax.f32 %v1950, %v2197
    %v2318 = vmax.f32 %v1954, %v2198
    %v2319 = vmax.f32 %v1956, %v2199
    %v2320 = vmax.f32 %v1958, %v2200
    %v2321 = vmax.f32 %v1960, %v2201
    %v2322 = vmax.f32 %v1964, %v2202
    %v2323 = vmax.f32 %v1966, %v2203
    %v2324 = vmax.f32 %v1968, %v2204
    %v2325 = vmax.f32 %v1970, %v2205
    %v2326 = vmax.f32 %v1974, %v2206
    %v2327 = vmax.f32 %v1976, %v2207
    %v2328 = vmax.f32 %v1978, %v2208
    %v2329 = vmax.f32 %v1980, %v2209
    %v2330 = vmax.f32 %v1984, %v2210
    %v2331 = vmax.f32 %v1986, %v2211
    %v2332 = vmax.f32 %v1988, %v2212
    %v2333 = vmax.f32 %v1990, %v2213
    %v2334 = vmax.f32 %v1994, %v2214
    %v2335 = vmax.f32 %v1996, %v2215
    %v2336 = vmax.f32 %v1998, %v2216
    %v2337 = vmax.f32 %v2000, %v2217
    %v2338 = vmax.f32 %v2004, %v2218
    %v2339 = vmax.f32 %v2006, %v2219
    %v2340 = vmax.f32 %v2008, %v2220
    %v2341 = vmax.f32 %v2010, %v2221
    %v2342 = vmax.f32 %v2014, %v2222
    %v2343 = vmax.f32 %v2016, %v2223
    %v2344 = vmax.f32 %v2018, %v2224
    %v2345 = vmax.f32 %v2020, %v2225
    %v2346 = vmax.f32 %v2024, %v2226
    %v2347 = vmax.f32 %v2026, %v2227
    %v2348 = vmax.f32 %v2028, %v2228
    %v2349 = vmax.f32 %v2030, %v2229
    %v2350 = vmax.f32 %v2034, %v2230
    %v2351 = vmax.f32 %v2036, %v2231
    %v2352 = vmax.f32 %v2038, %v2232
    %v2353 = vmax.f32 %v2040, %v2233
    %v2354 = vmax.f32 %v2044, %v2234
    %v2355 = vmax.f32 %v2046, %v2235
    %v2356 = vmax.f32 %v2048, %v2236
    %v2357 = vmax.f32 %v2050, %v2237
    %v2358 = vmax.f32 %v2054, %v2238
    %v2359 = vmax.f32 %v2056, %v2239
    %v2360 = vmax.f32 %v2058, %v2240
    %v2361 = vmax.f32 %v2060, %v2241
    %v2362 = vmax.f32 %v2064, %v2242
    %v2363 = vmax.f32 %v2066, %v2243
    %v2364 = vmax.f32 %v2068, %v2244
    %v2365 = vmax.f32 %v2070, %v2245
    %v2366 = vmax.f32 %v2074, %v2246
    %v2367 = vmax.f32 %v2076, %v2247
    %v2368 = vmax.f32 %v2078, %v2248
    %v2369 = vmax.f32 %v2080, %v2249
    %v2370 = vmax.f32 %v2084, %v2250
    %v2371 = vmax.f32 %v2086, %v2251
    %v2372 = vmax.f32 %v2088, %v2252
    %v2373 = vmax.f32 %v2090, %v2253
    %v2374 = vmax.f32 %v2094, %v2254
    %v2375 = vmax.f32 %v2096, %v2255
    %v2376 = vmax.f32 %v2098, %v2256
    %v2377 = vmax.f32 %v2100, %v2257
    %v2378 = vmax.f32 %v2104, %v2258
    %v2379 = vmax.f32 %v2106, %v2259
    %v2380 = vmax.f32 %v2108, %v2260
    %v2381 = vmax.f32 %v2110, %v2261
    %v2382 = vmax.f32 %v2114, %v2262
    %v2383 = vmax.f32 %v2116, %v2263
    %v2384 = vmax.f32 %v2118, %v2264
    %v2385 = vmax.f32 %v2120, %v2265
    %v2386 = vmax.f32 %v2124, %v2266
    %v2387 = vmax.f32 %v2126, %v2267
    %v2388 = vmax.f32 %v2128, %v2268
    %v2389 = vmax.f32 %v2130, %v2269
    %v2390 = vmax.f32 %v2134, %v2270
    %v2391 = vmax.f32 %v2136, %v2271
    %v2392 = vmax.f32 %v2138, %v2272
    %v2393 = vmax.f32 %v2140, %v2273
    %v2394 = vmax.f32 %v2144, %v2274
    %v2395 = vmax.f32 %v2146, %v2275
    %v2396 = vmax.f32 %v2148, %v2276
    %v2397 = vmax.f32 %v2150, %v2277
    %v2398 = vmax.f32 %v2154, %v2278
    %v2399 = vmax.f32 %v2156, %v2279
    %v2400 = vmax.f32 %v2158, %v2280
    %v2401 = vmax.f32 %v2160, %v2281
    %v2402 = vadd.f32 %v2282, %v2342
    %v2403 = vadd.f32 %v2283, %v2343
    %v2404 = vadd.f32 %v2284, %v2344
    %v2405 = vadd.f32 %v2285, %v2345
    %v2406 = vadd.f32 %v2286, %v2346
    %v2407 = vadd.f32 %v2287, %v2347
    %v2408 = vadd.f32 %v2288, %v2348
    %v2409 = vadd.f32 %v2289, %v2349
    %v2410 = vadd.f32 %v2290, %v2350
    %v2411 = vadd.f32 %v2291, %v2351
    %v2412 = vadd.f32 %v2292, %v2352
    %v2413 = vadd.f32 %v2293, %v2353
    %v2414 = vadd.f32 %v2294, %v2354
    %v2415 = vadd.f32 %v2295, %v2355
    %v2416 = vadd.f32 %v2296, %v2356
    %v2417 = vadd.f32 %v2297, %v2357
    %v2418 = vadd.f32 %v2298, %v2358
    %v2419 = vadd.f32 %v2299, %v2359
    %v2420 = vadd.f32 %v2300, %v2360
    %v2421 = vadd.f32 %v2301, %v2361
    %v2422 = vadd.f32 %v2302, %v2362
    %v2423 = vadd.f32 %v2303, %v2363
    %v2424 = vadd.f32 %v2304, %v2364
    %v2425 = vadd.f32 %v2305, %v2365
    %v2426 = vadd.f32 %v2306, %v2366
    %v2427 = vadd.f32 %v2307, %v2367
    %v2428 = vadd.f32 %v2308, %v2368
    %v2429 = vadd.f32 %v2309, %v2369
    %v2430 = vadd.f32 %v2310, %v2370
    %v2431 = vadd.f32 %v2311, %v2371
    %v2432 = vadd.f32 %v2312, %v2372
    %v2433 = vadd.f32 %v2313, %v2373
    %v2434 = vadd.f32 %v2314, %v2374
    %v2435 = vadd.f32 %v2315, %v2375
    %v2436 = vadd.f32 %v2316, %v2376
    %v2437 = vadd.f32 %v2317, %v2377
    %v2438 = vadd.f32 %v2318, %v2378
    %v2439 = vadd.f32 %v2319, %v2379
    %v2440 = vadd.f32 %v2320, %v2380
    %v2441 = vadd.f32 %v2321, %v2381
    %v2442 = vadd.f32 %v2322, %v2382
    %v2443 = vadd.f32 %v2323, %v2383
    %v2444 = vadd.f32 %v2324, %v2384
    %v2445 = vadd.f32 %v2325, %v2385
    %v2446 = vadd.f32 %v2326, %v2386
    %v2447 = vadd.f32 %v2327, %v2387
    %v2448 = vadd.f32 %v2328, %v2388
    %v2449 = vadd.f32 %v2329, %v2389
    %v2450 = vadd.f32 %v2330, %v2390
    %v2451 = vadd.f32 %v2331, %v2391
    %v2452 = vadd.f32 %v2332, %v2392
    %v2453 = vadd.f32 %v2333, %v2393
    %v2454 = vadd.f32 %v2334, %v2394
    %v2455 = vadd.f32 %v2335, %v2395
    %v2456 = vadd.f32 %v2336, %v2396
    %v2457 = vadd.f32 %v2337, %v2397
    %v2458 = vadd.f32 %v2338, %v2398
    %v2459 = vadd.f32 %v2339, %v2399
    %v2460 = vadd.f32 %v2340, %v2400
    %v2461 = vadd.f32 %v2341, %v2401
    %v2462 = vpack.c.bf16 %v958, %v956
    %v2463 = vpack.c.bf16 %v959, %v957
    %v2464 = vpack.c.bf16 %v962, %v960
    %v2465 = vpack.c.bf16 %v963, %v961
    %v2466 = vpack.c.bf16 %v966, %v964
    %v2467 = vpack.c.bf16 %v967, %v965
    %v2468 = vpack.c.bf16 %v970, %v968
    %v2469 = vpack.c.bf16 %v971, %v969
    %v2470 = vpack.c.bf16 %v974, %v972
    %v2471 = vpack.c.bf16 %v975, %v973
    %v2472 = vpack.c.bf16 %v978, %v976
    %v2473 = vpack.c.bf16 %v979, %v977
    %v2474 = vpack.c.bf16 %v982, %v980
    %v2475 = vpack.c.bf16 %v983, %v981
    %v2476 = vpack.c.bf16 %v986, %v984
    %v2477 = vpack.c.bf16 %v987, %v985
    %v2478 = vpack.c.bf16 %v990, %v988
    %v2479 = vpack.c.bf16 %v991, %v989
    %v2480 = vpack.c.bf16 %v994, %v992
    %v2481 = vpack.c.bf16 %v995, %v993
    %v2482 = vpack.c.bf16 %v998, %v996
    %v2483 = vpack.c.bf16 %v999, %v997
    %v2484 = vpack.c.bf16 %v1002, %v1000
    %v2485 = vpack.c.bf16 %v1003, %v1001
    %v2486 = vpack.c.bf16 %v1006, %v1004
    %v2487 = vpack.c.bf16 %v1007, %v1005
    %v2488 = vpack.c.bf16 %v1010, %v1008
    %v2489 = vpack.c.bf16 %v1011, %v1009
    %v2490 = vpack.c.bf16 %v1014, %v1012
    %v2491 = vpack.c.bf16 %v1015, %v1013
    %v2492 = vld [vmem:[%s3] sm:$0xff]
    %v2493 = vld [vmem:[%s3 + $0x8] sm:$0xff]
    %v2494 = vld [vmem:[%s3 + $0x10] sm:$0xff]
    %v2495 = vld [vmem:[%s3 + $0x18] sm:$0xff]
    %v2496 = vld [vmem:[%s3 + $0x20] sm:$0xff]
    %v2497 = vld [vmem:[%s3 + $0x28] sm:$0xff]
    %v2498 = vld [vmem:[%s3 + $0x30] sm:$0xff]
    %v2499 = vld [vmem:[%s3 + $0x38] sm:$0xff]
    %v2500 = vld [vmem:[%s3 + $0x40] sm:$0xff]
    %v2501 = vld [vmem:[%s3 + $0x48] sm:$0xff]
    %v2502 = vld [vmem:[%s3 + $0x50] sm:$0xff]
    %v2503 = vld [vmem:[%s3 + $0x58] sm:$0xff]
    %v2504 = vld [vmem:[%s3 + $0x60] sm:$0xff]
    %v2505 = vld [vmem:[%s3 + $0x68] sm:$0xff]
    %v2506 = vld [vmem:[%s3 + $0x70] sm:$0xff]
    %v2507 = vld [vmem:[%s3 + $0x78] sm:$0xff]
    %v2508 = vld [vmem:[%s3 + $0x80] sm:$0xff]
    %v2509 = vld [vmem:[%s3 + $0x88] sm:$0xff]
    %v2510 = vld [vmem:[%s3 + $0x90] sm:$0xff]
    %v2511 = vld [vmem:[%s3 + $0x98] sm:$0xff]
    %v2512 = vld [vmem:[%s3 + $0xa0] sm:$0xff]
    %v2513 = vld [vmem:[%s3 + $0xa8] sm:$0xff]
    %v2514 = vld [vmem:[%s3 + $0xb0] sm:$0xff]
    %v2515 = vld [vmem:[%s3 + $0xb8] sm:$0xff]
    %v2516 = vld [vmem:[%s3 + $0xc0] sm:$0xff]
    %v2517 = vld [vmem:[%s3 + $0xc8] sm:$0xff]
    %v2518 = vld [vmem:[%s3 + $0xd0] sm:$0xff]
    %v2519 = vld [vmem:[%s3 + $0xd8] sm:$0xff]
    %v2520 = vld [vmem:[%s3 + $0xe0] sm:$0xff]
    %v2521 = vld [vmem:[%s3 + $0xe8] sm:$0xff]
    %v2522 = vld [vmem:[%s3 + $0xf0] sm:$0xff]
    %v2523 = vld [vmem:[%s3 + $0xf8] sm:$0xff]
    %v2524 = vld [vmem:[%s4] sm:$0x3]
    %v2525 = vmul.f32 %v2524, 2.0
    %v2527 = vlaneseq
    %v2528 = vshrl.u32 %v2527, 7
    %v2529 = vsub.s32 0, %v2528
    %v2530 = vrot.slane %v2525, %v2529
    %v2531 = vlaneseq
    %v2532 = vshrl.u32 %v2531, 7
    %v2533 = vsub.s32 1, %v2532
    %v2534 = vrot.slane %v2525, %v2533
    %v2569 = vunpack.c.l.b16 %v2492
    %v2570 = vunpack.c.h.b16 %v2492
    %v2571 = vunpack.c.l.b16 %v2493
    %v2572 = vunpack.c.h.b16 %v2493
    %v2573 = vunpack.c.l.b16 %v2494
    %v2574 = vunpack.c.h.b16 %v2494
    %v2575 = vunpack.c.l.b16 %v2495
    %v2576 = vunpack.c.h.b16 %v2495
    %v2577 = vunpack.c.l.b16 %v2496
    %v2578 = vunpack.c.h.b16 %v2496
    %v2579 = vunpack.c.l.b16 %v2497
    %v2580 = vunpack.c.h.b16 %v2497
    %v2581 = vunpack.c.l.b16 %v2498
    %v2582 = vunpack.c.h.b16 %v2498
    %v2583 = vunpack.c.l.b16 %v2499
    %v2584 = vunpack.c.h.b16 %v2499
    %v2585 = vunpack.c.l.b16 %v2500
    %v2586 = vunpack.c.h.b16 %v2500
    %v2587 = vunpack.c.l.b16 %v2501
    %v2588 = vunpack.c.h.b16 %v2501
    %v2589 = vunpack.c.l.b16 %v2502
    %v2590 = vunpack.c.h.b16 %v2502
    %v2591 = vunpack.c.l.b16 %v2503
    %v2592 = vunpack.c.h.b16 %v2503
    %v2593 = vunpack.c.l.b16 %v2504
    %v2594 = vunpack.c.h.b16 %v2504
    %v2595 = vunpack.c.l.b16 %v2505
    %v2596 = vunpack.c.h.b16 %v2505
    %v2597 = vunpack.c.l.b16 %v2506
    %v2598 = vunpack.c.h.b16 %v2506
    %v2599 = vunpack.c.l.b16 %v2507
    %v2600 = vunpack.c.h.b16 %v2507
    %v2601 = vunpack.c.l.b16 %v2508
    %v2602 = vunpack.c.h.b16 %v2508
    %v2603 = vunpack.c.l.b16 %v2509
    %v2604 = vunpack.c.h.b16 %v2509
    %v2605 = vunpack.c.l.b16 %v2510
    %v2606 = vunpack.c.h.b16 %v2510
    %v2607 = vunpack.c.l.b16 %v2511
    %v2608 = vunpack.c.h.b16 %v2511
    %v2609 = vunpack.c.l.b16 %v2512
    %v2610 = vunpack.c.h.b16 %v2512
    %v2611 = vunpack.c.l.b16 %v2513
    %v2612 = vunpack.c.h.b16 %v2513
    %v2613 = vunpack.c.l.b16 %v2514
    %v2614 = vunpack.c.h.b16 %v2514
    %v2615 = vunpack.c.l.b16 %v2515
    %v2616 = vunpack.c.h.b16 %v2515
    %v2617 = vunpack.c.l.b16 %v2516
    %v2618 = vunpack.c.h.b16 %v2516
    %v2619 = vunpack.c.l.b16 %v2517
    %v2620 = vunpack.c.h.b16 %v2517
    %v2621 = vunpack.c.l.b16 %v2518
    %v2622 = vunpack.c.h.b16 %v2518
    %v2623 = vunpack.c.l.b16 %v2519
    %v2624 = vunpack.c.h.b16 %v2519
    %v2625 = vunpack.c.l.b16 %v2520
    %v2626 = vunpack.c.h.b16 %v2520
    %v2627 = vunpack.c.l.b16 %v2521
    %v2628 = vunpack.c.h.b16 %v2521
    %v2629 = vunpack.c.l.b16 %v2522
    %v2630 = vunpack.c.h.b16 %v2522
    %v2631 = vunpack.c.l.b16 %v2523
    %v2632 = vunpack.c.h.b16 %v2523
    %v2633 = vpack.c.b16 %v2571, %v2569
    %v2634 = vpack.c.b16 %v2572, %v2570
    %v2635 = vpack.c.b16 %v2575, %v2573
    %v2636 = vpack.c.b16 %v2576, %v2574
    %v2637 = vpack.c.b16 %v2579, %v2577
    %v2638 = vpack.c.b16 %v2580, %v2578
    %v2639 = vpack.c.b16 %v2583, %v2581
    %v2640 = vpack.c.b16 %v2584, %v2582
    %v2641 = vpack.c.b16 %v2587, %v2585
    %v2642 = vpack.c.b16 %v2588, %v2586
    %v2643 = vpack.c.b16 %v2591, %v2589
    %v2644 = vpack.c.b16 %v2592, %v2590
    %v2645 = vpack.c.b16 %v2595, %v2593
    %v2646 = vpack.c.b16 %v2596, %v2594
    %v2647 = vpack.c.b16 %v2599, %v2597
    %v2648 = vpack.c.b16 %v2600, %v2598
    %v2649 = vpack.c.b16 %v2603, %v2601
    %v2650 = vpack.c.b16 %v2604, %v2602
    %v2651 = vpack.c.b16 %v2607, %v2605
    %v2652 = vpack.c.b16 %v2608, %v2606
    %v2653 = vpack.c.b16 %v2611, %v2609
    %v2654 = vpack.c.b16 %v2612, %v2610
    %v2655 = vpack.c.b16 %v2615, %v2613
    %v2656 = vpack.c.b16 %v2616, %v2614
    %v2657 = vpack.c.b16 %v2619, %v2617
    %v2658 = vpack.c.b16 %v2620, %v2618
    %v2659 = vpack.c.b16 %v2623, %v2621
    %v2660 = vpack.c.b16 %v2624, %v2622
    %v2661 = vpack.c.b16 %v2627, %v2625
    %v2662 = vpack.c.b16 %v2628, %v2626
    %v2663 = vpack.c.b16 %v2631, %v2629
    %v2664 = vpack.c.b16 %v2632, %v2630
    %2697 = vmatprep.subr.bf16.mxu0 %v2634
    %2698 = vmatpush1.bf16.msra.mxu0 %v2633
    %2699 = vmatprep.subr.bf16.mxu0 %v2636
    %2700 = vmatpush1.bf16.msra.mxu0 %v2635
    %2701 = vmatprep.subr.bf16.mxu0 %v2638
    %2702 = vmatpush1.bf16.msra.mxu0 %v2637
    %2703 = vmatprep.subr.bf16.mxu0 %v2640
    %2704 = vmatpush1.bf16.msra.mxu0 %v2639
    %2705 = vmatprep.subr.bf16.mxu0 %v2642
    %2706 = vmatpush1.bf16.msra.mxu0 %v2641
    %2707 = vmatprep.subr.bf16.mxu0 %v2644
    %2708 = vmatpush1.bf16.msra.mxu0 %v2643
    %2709 = vmatprep.subr.bf16.mxu0 %v2646
    %2710 = vmatpush1.bf16.msra.mxu0 %v2645
    %2711 = vmatprep.subr.bf16.mxu0 %v2648
    %2712 = vmatpush1.bf16.msra.mxu0 %v2647
    %2713 = vmatprep.subr.bf16.mxu0 %v2650
    %2714 = vmatpush1.bf16.msra.mxu0 %v2649
    %2715 = vmatprep.subr.bf16.mxu0 %v2652
    %2716 = vmatpush1.bf16.msra.mxu0 %v2651
    %2717 = vmatprep.subr.bf16.mxu0 %v2654
    %2718 = vmatpush1.bf16.msra.mxu0 %v2653
    %2719 = vmatprep.subr.bf16.mxu0 %v2656
    %2720 = vmatpush1.bf16.msra.mxu0 %v2655
    %2721 = vmatprep.subr.bf16.mxu0 %v2658
    %2722 = vmatpush1.bf16.msra.mxu0 %v2657
    %2723 = vmatprep.subr.bf16.mxu0 %v2660
    %2724 = vmatpush1.bf16.msra.mxu0 %v2659
    %2725 = vmatprep.subr.bf16.mxu0 %v2662
    %2726 = vmatpush1.bf16.msra.mxu0 %v2661
    %2727 = vmatprep.subr.bf16.mxu0 %v2664
    %2728 = vmatpush1.bf16.msra.mxu0 %v2663
    %2729 = vmatprep.mubr.bf16.mxu0 %v2463
    %2730 = vmatmul.mubr.bf16.gmra.mrb[0].mxu0 %v2462
    %v2731 = vpop.f32.mrb[0].mxu0
    %v2732 = vadd.f32 %v2530, %v2731
    %v2733 = vpop.f32.mrb[0].mxu0
    %v2734 = vadd.f32 %v2534, %v2733
    %v2735 = vpop.f32.mrb[0].mxu0
    %v2736 = vadd.f32 %v2530, %v2735
    %v2737 = vpop.f32.mrb[0].mxu0
    %v2738 = vadd.f32 %v2534, %v2737
    %2739 = vmatprep.mubr.bf16.mxu0 %v2465
    %2740 = vmatmul.mubr.bf16.gmra.mrb[0].mxu0 %v2464
    %v2741 = vpop.f32.mrb[0].mxu0
    %v2742 = vadd.f32 %v2530, %v2741
    %v2743 = vpop.f32.mrb[0].mxu0
    %v2744 = vadd.f32 %v2534, %v2743
    %v2745 = vpop.f32.mrb[0].mxu0
    %v2746 = vadd.f32 %v2530, %v2745
    %v2747 = vpop.f32.mrb[0].mxu0
    %v2748 = vadd.f32 %v2534, %v2747
    %2749 = vmatprep.mubr.bf16.mxu0 %v2467
    %2750 = vmatmul.mubr.bf16.gmra.mrb[0].mxu0 %v2466
    %v2751 = vpop.f32.mrb[0].mxu0
    %v2752 = vadd.f32 %v2530, %v2751
    %v2753 = vpop.f32.mrb[0].mxu0
    %v2754 = vadd.f32 %v2534, %v2753
    %v2755 = vpop.f32.mrb[0].mxu0
    %v2756 = vadd.f32 %v2530, %v2755
    %v2757 = vpop.f32.mrb[0].mxu0
    %v2758 = vadd.f32 %v2534, %v2757
    %2759 = vmatprep.mubr.bf16.mxu0 %v2469
    %2760 = vmatmul.mubr.bf16.gmra.mrb[0].mxu0 %v2468
    %v2761 = vpop.f32.mrb[0].mxu0
    %v2762 = vadd.f32 %v2530, %v2761
    %v2763 = vpop.f32.mrb[0].mxu0
    %v2764 = vadd.f32 %v2534, %v2763
    %v2765 = vpop.f32.mrb[0].mxu0
    %v2766 = vadd.f32 %v2530, %v2765
    %v2767 = vpop.f32.mrb[0].mxu0
    %v2768 = vadd.f32 %v2534, %v2767
    %2769 = vmatprep.mubr.bf16.mxu0 %v2471
    %2770 = vmatmul.mubr.bf16.gmra.mrb[0].mxu0 %v2470
    %v2771 = vpop.f32.mrb[0].mxu0
    %v2772 = vadd.f32 %v2530, %v2771
    %v2773 = vpop.f32.mrb[0].mxu0
    %v2774 = vadd.f32 %v2534, %v2773
    %v2775 = vpop.f32.mrb[0].mxu0
    %v2776 = vadd.f32 %v2530, %v2775
    %v2777 = vpop.f32.mrb[0].mxu0
    %v2778 = vadd.f32 %v2534, %v2777
    %2779 = vmatprep.mubr.bf16.mxu0 %v2473
    %2780 = vmatmul.mubr.bf16.gmra.mrb[0].mxu0 %v2472
    %v2781 = vpop.f32.mrb[0].mxu0
    %v2782 = vadd.f32 %v2530, %v2781
    %v2783 = vpop.f32.mrb[0].mxu0
    %v2784 = vadd.f32 %v2534, %v2783
    %v2785 = vpop.f32.mrb[0].mxu0
    %v2786 = vadd.f32 %v2530, %v2785
    %v2787 = vpop.f32.mrb[0].mxu0
    %v2788 = vadd.f32 %v2534, %v2787
    %2789 = vmatprep.mubr.bf16.mxu0 %v2475
    %2790 = vmatmul.mubr.bf16.gmra.mrb[0].mxu0 %v2474
    %v2791 = vpop.f32.mrb[0].mxu0
    %v2792 = vadd.f32 %v2530, %v2791
    %v2793 = vpop.f32.mrb[0].mxu0
    %v2794 = vadd.f32 %v2534, %v2793
    %v2795 = vpop.f32.mrb[0].mxu0
    %v2796 = vadd.f32 %v2530, %v2795
    %v2797 = vpop.f32.mrb[0].mxu0
    %v2798 = vadd.f32 %v2534, %v2797
    %2799 = vmatprep.mubr.bf16.mxu0 %v2477
    %2800 = vmatmul.mubr.bf16.gmra.mrb[0].mxu0 %v2476
    %v2801 = vpop.f32.mrb[0].mxu0
    %v2802 = vadd.f32 %v2530, %v2801
    %v2803 = vpop.f32.mrb[0].mxu0
    %v2804 = vadd.f32 %v2534, %v2803
    %v2805 = vpop.f32.mrb[0].mxu0
    %v2806 = vadd.f32 %v2530, %v2805
    %v2807 = vpop.f32.mrb[0].mxu0
    %v2808 = vadd.f32 %v2534, %v2807
    %2809 = vmatprep.mubr.bf16.mxu0 %v2479
    %2810 = vmatmul.mubr.bf16.gmra.mrb[0].mxu0 %v2478
    %v2811 = vpop.f32.mrb[0].mxu0
    %v2812 = vadd.f32 %v2530, %v2811
    %v2813 = vpop.f32.mrb[0].mxu0
    %v2814 = vadd.f32 %v2534, %v2813
    %v2815 = vpop.f32.mrb[0].mxu0
    %v2816 = vadd.f32 %v2530, %v2815
    %v2817 = vpop.f32.mrb[0].mxu0
    %v2818 = vadd.f32 %v2534, %v2817
    %2819 = vmatprep.mubr.bf16.mxu0 %v2481
    %2820 = vmatmul.mubr.bf16.gmra.mrb[0].mxu0 %v2480
    %v2821 = vpop.f32.mrb[0].mxu0
    %v2822 = vadd.f32 %v2530, %v2821
    %v2823 = vpop.f32.mrb[0].mxu0
    %v2824 = vadd.f32 %v2534, %v2823
    %v2825 = vpop.f32.mrb[0].mxu0
    %v2826 = vadd.f32 %v2530, %v2825
    %v2827 = vpop.f32.mrb[0].mxu0
    %v2828 = vadd.f32 %v2534, %v2827
    %2829 = vmatprep.mubr.bf16.mxu0 %v2483
    %2830 = vmatmul.mubr.bf16.gmra.mrb[0].mxu0 %v2482
    %v2831 = vpop.f32.mrb[0].mxu0
    %v2832 = vadd.f32 %v2530, %v2831
    %v2833 = vpop.f32.mrb[0].mxu0
    %v2834 = vadd.f32 %v2534, %v2833
    %v2835 = vpop.f32.mrb[0].mxu0
    %v2836 = vadd.f32 %v2530, %v2835
    %v2837 = vpop.f32.mrb[0].mxu0
    %v2838 = vadd.f32 %v2534, %v2837
    %2839 = vmatprep.mubr.bf16.mxu0 %v2485
    %2840 = vmatmul.mubr.bf16.gmra.mrb[0].mxu0 %v2484
    %v2841 = vpop.f32.mrb[0].mxu0
    %v2842 = vadd.f32 %v2530, %v2841
    %v2843 = vpop.f32.mrb[0].mxu0
    %v2844 = vadd.f32 %v2534, %v2843
    %v2845 = vpop.f32.mrb[0].mxu0
    %v2846 = vadd.f32 %v2530, %v2845
    %v2847 = vpop.f32.mrb[0].mxu0
    %v2848 = vadd.f32 %v2534, %v2847
    %2849 = vmatprep.mubr.bf16.mxu0 %v2487
    %2850 = vmatmul.mubr.bf16.gmra.mrb[0].mxu0 %v2486
    %v2851 = vpop.f32.mrb[0].mxu0
    %v2852 = vadd.f32 %v2530, %v2851
    %v2853 = vpop.f32.mrb[0].mxu0
    %v2854 = vadd.f32 %v2534, %v2853
    %v2855 = vpop.f32.mrb[0].mxu0
    %v2856 = vadd.f32 %v2530, %v2855
    %v2857 = vpop.f32.mrb[0].mxu0
    %v2858 = vadd.f32 %v2534, %v2857
    %2859 = vmatprep.mubr.bf16.mxu0 %v2489
    %2860 = vmatmul.mubr.bf16.gmra.mrb[0].mxu0 %v2488
    %v2861 = vpop.f32.mrb[0].mxu0
    %v2862 = vadd.f32 %v2530, %v2861
    %v2863 = vpop.f32.mrb[0].mxu0
    %v2864 = vadd.f32 %v2534, %v2863
    %v2865 = vpop.f32.mrb[0].mxu0
    %v2866 = vadd.f32 %v2530, %v2865
    %v2867 = vpop.f32.mrb[0].mxu0
    %v2868 = vadd.f32 %v2534, %v2867
    %2869 = vmatprep.mubr.bf16.mxu0 %v2491
    %2870 = vmatmul.mubr.bf16.gmra.mrb[0].mxu0 %v2490
    %v2871 = vpop.f32.mrb[0].mxu0
    %v2872 = vadd.f32 %v2530, %v2871
    %v2873 = vpop.f32.mrb[0].mxu0
    %v2874 = vadd.f32 %v2534, %v2873
    %v2875 = vpop.f32.mrb[0].mxu0
    %v2876 = vadd.f32 %v2530, %v2875
    %v2877 = vpop.f32.mrb[0].mxu0
    %v2878 = vadd.f32 %v2534, %v2877
    %2879 = vdwg.mxu0
    %v2880 = vpack.c.bf16 %v1441, %v1439
    %v2881 = vpack.c.bf16 %v1442, %v1440
    %v2882 = vpack.c.bf16 %v1445, %v1443
    %v2883 = vpack.c.bf16 %v1446, %v1444
    %v2884 = vpack.c.bf16 %v1449, %v1447
    %v2885 = vpack.c.bf16 %v1450, %v1448
    %v2886 = vpack.c.bf16 %v1453, %v1451
    %v2887 = vpack.c.bf16 %v1454, %v1452
    %v2888 = vpack.c.bf16 %v1457, %v1455
    %v2889 = vpack.c.bf16 %v1458, %v1456
    %v2890 = vpack.c.bf16 %v1461, %v1459
    %v2891 = vpack.c.bf16 %v1462, %v1460
    %v2892 = vpack.c.bf16 %v1465, %v1463
    %v2893 = vpack.c.bf16 %v1466, %v1464
    %v2894 = vpack.c.bf16 %v1469, %v1467
    %v2895 = vpack.c.bf16 %v1470, %v1468
    %v2896 = vpack.c.bf16 %v1473, %v1471
    %v2897 = vpack.c.bf16 %v1474, %v1472
    %v2898 = vpack.c.bf16 %v1477, %v1475
    %v2899 = vpack.c.bf16 %v1478, %v1476
    %v2900 = vpack.c.bf16 %v1481, %v1479
    %v2901 = vpack.c.bf16 %v1482, %v1480
    %v2902 = vpack.c.bf16 %v1485, %v1483
    %v2903 = vpack.c.bf16 %v1486, %v1484
    %v2904 = vpack.c.bf16 %v1489, %v1487
    %v2905 = vpack.c.bf16 %v1490, %v1488
    %v2906 = vpack.c.bf16 %v1493, %v1491
    %v2907 = vpack.c.bf16 %v1494, %v1492
    %v2908 = vpack.c.bf16 %v1497, %v1495
    %v2909 = vpack.c.bf16 %v1498, %v1496
    %s2910 = scalar_lea.vmem %s3, 256
    %v2911 = vld [vmem:[%s2910] sm:$0xff]
    %v2912 = vld [vmem:[%s2910 + $0x8] sm:$0xff]
    %v2913 = vld [vmem:[%s2910 + $0x10] sm:$0xff]
    %v2914 = vld [vmem:[%s2910 + $0x18] sm:$0xff]
    %v2915 = vld [vmem:[%s2910 + $0x20] sm:$0xff]
    %v2916 = vld [vmem:[%s2910 + $0x28] sm:$0xff]
    %v2917 = vld [vmem:[%s2910 + $0x30] sm:$0xff]
    %v2918 = vld [vmem:[%s2910 + $0x38] sm:$0xff]
    %v2919 = vld [vmem:[%s2910 + $0x40] sm:$0xff]
    %v2920 = vld [vmem:[%s2910 + $0x48] sm:$0xff]
    %v2921 = vld [vmem:[%s2910 + $0x50] sm:$0xff]
    %v2922 = vld [vmem:[%s2910 + $0x58] sm:$0xff]
    %v2923 = vld [vmem:[%s2910 + $0x60] sm:$0xff]
    %v2924 = vld [vmem:[%s2910 + $0x68] sm:$0xff]
    %v2925 = vld [vmem:[%s2910 + $0x70] sm:$0xff]
    %v2926 = vld [vmem:[%s2910 + $0x78] sm:$0xff]
    %v2927 = vld [vmem:[%s2910 + $0x80] sm:$0xff]
    %v2928 = vld [vmem:[%s2910 + $0x88] sm:$0xff]
    %v2929 = vld [vmem:[%s2910 + $0x90] sm:$0xff]
    %v2930 = vld [vmem:[%s2910 + $0x98] sm:$0xff]
    %v2931 = vld [vmem:[%s2910 + $0xa0] sm:$0xff]
    %v2932 = vld [vmem:[%s2910 + $0xa8] sm:$0xff]
    %v2933 = vld [vmem:[%s2910 + $0xb0] sm:$0xff]
    %v2934 = vld [vmem:[%s2910 + $0xb8] sm:$0xff]
    %v2935 = vld [vmem:[%s2910 + $0xc0] sm:$0xff]
    %v2936 = vld [vmem:[%s2910 + $0xc8] sm:$0xff]
    %v2937 = vld [vmem:[%s2910 + $0xd0] sm:$0xff]
    %v2938 = vld [vmem:[%s2910 + $0xd8] sm:$0xff]
    %v2939 = vld [vmem:[%s2910 + $0xe0] sm:$0xff]
    %v2940 = vld [vmem:[%s2910 + $0xe8] sm:$0xff]
    %v2941 = vld [vmem:[%s2910 + $0xf0] sm:$0xff]
    %v2942 = vld [vmem:[%s2910 + $0xf8] sm:$0xff]
    %v2975 = vunpack.c.l.b16 %v2911
    %v2976 = vunpack.c.h.b16 %v2911
    %v2977 = vunpack.c.l.b16 %v2912
    %v2978 = vunpack.c.h.b16 %v2912
    %v2979 = vunpack.c.l.b16 %v2913
    %v2980 = vunpack.c.h.b16 %v2913
    %v2981 = vunpack.c.l.b16 %v2914
    %v2982 = vunpack.c.h.b16 %v2914
    %v2983 = vunpack.c.l.b16 %v2915
    %v2984 = vunpack.c.h.b16 %v2915
    %v2985 = vunpack.c.l.b16 %v2916
    %v2986 = vunpack.c.h.b16 %v2916
    %v2987 = vunpack.c.l.b16 %v2917
    %v2988 = vunpack.c.h.b16 %v2917
    %v2989 = vunpack.c.l.b16 %v2918
    %v2990 = vunpack.c.h.b16 %v2918
    %v2991 = vunpack.c.l.b16 %v2919
    %v2992 = vunpack.c.h.b16 %v2919
    %v2993 = vunpack.c.l.b16 %v2920
    %v2994 = vunpack.c.h.b16 %v2920
    %v2995 = vunpack.c.l.b16 %v2921
    %v2996 = vunpack.c.h.b16 %v2921
    %v2997 = vunpack.c.l.b16 %v2922
    %v2998 = vunpack.c.h.b16 %v2922
    %v2999 = vunpack.c.l.b16 %v2923
    %v3000 = vunpack.c.h.b16 %v2923
    %v3001 = vunpack.c.l.b16 %v2924
    %v3002 = vunpack.c.h.b16 %v2924
    %v3003 = vunpack.c.l.b16 %v2925
    %v3004 = vunpack.c.h.b16 %v2925
    %v3005 = vunpack.c.l.b16 %v2926
    %v3006 = vunpack.c.h.b16 %v2926
    %v3007 = vunpack.c.l.b16 %v2927
    %v3008 = vunpack.c.h.b16 %v2927
    %v3009 = vunpack.c.l.b16 %v2928
    %v3010 = vunpack.c.h.b16 %v2928
    %v3011 = vunpack.c.l.b16 %v2929
    %v3012 = vunpack.c.h.b16 %v2929
    %v3013 = vunpack.c.l.b16 %v2930
    %v3014 = vunpack.c.h.b16 %v2930
    %v3015 = vunpack.c.l.b16 %v2931
    %v3016 = vunpack.c.h.b16 %v2931
    %v3017 = vunpack.c.l.b16 %v2932
    %v3018 = vunpack.c.h.b16 %v2932
    %v3019 = vunpack.c.l.b16 %v2933
    %v3020 = vunpack.c.h.b16 %v2933
    %v3021 = vunpack.c.l.b16 %v2934
    %v3022 = vunpack.c.h.b16 %v2934
    %v3023 = vunpack.c.l.b16 %v2935
    %v3024 = vunpack.c.h.b16 %v2935
    %v3025 = vunpack.c.l.b16 %v2936
    %v3026 = vunpack.c.h.b16 %v2936
    %v3027 = vunpack.c.l.b16 %v2937
    %v3028 = vunpack.c.h.b16 %v2937
    %v3029 = vunpack.c.l.b16 %v2938
    %v3030 = vunpack.c.h.b16 %v2938
    %v3031 = vunpack.c.l.b16 %v2939
    %v3032 = vunpack.c.h.b16 %v2939
    %v3033 = vunpack.c.l.b16 %v2940
    %v3034 = vunpack.c.h.b16 %v2940
    %v3035 = vunpack.c.l.b16 %v2941
    %v3036 = vunpack.c.h.b16 %v2941
    %v3037 = vunpack.c.l.b16 %v2942
    %v3038 = vunpack.c.h.b16 %v2942
    %v3039 = vpack.c.b16 %v2977, %v2975
    %v3040 = vpack.c.b16 %v2978, %v2976
    %v3041 = vpack.c.b16 %v2981, %v2979
    %v3042 = vpack.c.b16 %v2982, %v2980
    %v3043 = vpack.c.b16 %v2985, %v2983
    %v3044 = vpack.c.b16 %v2986, %v2984
    %v3045 = vpack.c.b16 %v2989, %v2987
    %v3046 = vpack.c.b16 %v2990, %v2988
    %v3047 = vpack.c.b16 %v2993, %v2991
    %v3048 = vpack.c.b16 %v2994, %v2992
    %v3049 = vpack.c.b16 %v2997, %v2995
    %v3050 = vpack.c.b16 %v2998, %v2996
    %v3051 = vpack.c.b16 %v3001, %v2999
    %v3052 = vpack.c.b16 %v3002, %v3000
    %v3053 = vpack.c.b16 %v3005, %v3003
    %v3054 = vpack.c.b16 %v3006, %v3004
    %v3055 = vpack.c.b16 %v3009, %v3007
    %v3056 = vpack.c.b16 %v3010, %v3008
    %v3057 = vpack.c.b16 %v3013, %v3011
    %v3058 = vpack.c.b16 %v3014, %v3012
    %v3059 = vpack.c.b16 %v3017, %v3015
    %v3060 = vpack.c.b16 %v3018, %v3016
    %v3061 = vpack.c.b16 %v3021, %v3019
    %v3062 = vpack.c.b16 %v3022, %v3020
    %v3063 = vpack.c.b16 %v3025, %v3023
    %v3064 = vpack.c.b16 %v3026, %v3024
    %v3065 = vpack.c.b16 %v3029, %v3027
    %v3066 = vpack.c.b16 %v3030, %v3028
    %v3067 = vpack.c.b16 %v3033, %v3031
    %v3068 = vpack.c.b16 %v3034, %v3032
    %v3069 = vpack.c.b16 %v3037, %v3035
    %v3070 = vpack.c.b16 %v3038, %v3036
    %3103 = vmatprep.subr.bf16.mxu0 %v3040
    %3104 = vmatpush1.bf16.msra.mxu0 %v3039
    %3105 = vmatprep.subr.bf16.mxu0 %v3042
    %3106 = vmatpush1.bf16.msra.mxu0 %v3041
    %3107 = vmatprep.subr.bf16.mxu0 %v3044
    %3108 = vmatpush1.bf16.msra.mxu0 %v3043
    %3109 = vmatprep.subr.bf16.mxu0 %v3046
    %3110 = vmatpush1.bf16.msra.mxu0 %v3045
    %3111 = vmatprep.subr.bf16.mxu0 %v3048
    %3112 = vmatpush1.bf16.msra.mxu0 %v3047
    %3113 = vmatprep.subr.bf16.mxu0 %v3050
    %3114 = vmatpush1.bf16.msra.mxu0 %v3049
    %3115 = vmatprep.subr.bf16.mxu0 %v3052
    %3116 = vmatpush1.bf16.msra.mxu0 %v3051
    %3117 = vmatprep.subr.bf16.mxu0 %v3054
    %3118 = vmatpush1.bf16.msra.mxu0 %v3053
    %3119 = vmatprep.subr.bf16.mxu0 %v3056
    %3120 = vmatpush1.bf16.msra.mxu0 %v3055
    %3121 = vmatprep.subr.bf16.mxu0 %v3058
    %3122 = vmatpush1.bf16.msra.mxu0 %v3057
    %3123 = vmatprep.subr.bf16.mxu0 %v3060
    %3124 = vmatpush1.bf16.msra.mxu0 %v3059
    %3125 = vmatprep.subr.bf16.mxu0 %v3062
    %3126 = vmatpush1.bf16.msra.mxu0 %v3061
    %3127 = vmatprep.subr.bf16.mxu0 %v3064
    %3128 = vmatpush1.bf16.msra.mxu0 %v3063
    %3129 = vmatprep.subr.bf16.mxu0 %v3066
    %3130 = vmatpush1.bf16.msra.mxu0 %v3065
    %3131 = vmatprep.subr.bf16.mxu0 %v3068
    %3132 = vmatpush1.bf16.msra.mxu0 %v3067
    %3133 = vmatprep.subr.bf16.mxu0 %v3070
    %3134 = vmatpush1.bf16.msra.mxu0 %v3069
    %3135 = vmatprep.mubr.bf16.mxu0 %v2881
    %3136 = vmatmul.mubr.bf16.gmra.mrb[0].mxu0 %v2880
    %v3137 = vpop.f32.mrb[0].mxu0
    %v3138 = vadd.f32 0.0, %v3137
    %v3139 = vpop.f32.mrb[0].mxu0
    %v3140 = vadd.f32 0.0, %v3139
    %v3141 = vpop.f32.mrb[0].mxu0
    %v3142 = vadd.f32 0.0, %v3141
    %v3143 = vpop.f32.mrb[0].mxu0
    %v3144 = vadd.f32 0.0, %v3143
    %3145 = vmatprep.mubr.bf16.mxu0 %v2883
    %3146 = vmatmul.mubr.bf16.gmra.mrb[0].mxu0 %v2882
    %v3147 = vpop.f32.mrb[0].mxu0
    %v3148 = vadd.f32 0.0, %v3147
    %v3149 = vpop.f32.mrb[0].mxu0
    %v3150 = vadd.f32 0.0, %v3149
    %v3151 = vpop.f32.mrb[0].mxu0
    %v3152 = vadd.f32 0.0, %v3151
    %v3153 = vpop.f32.mrb[0].mxu0
    %v3154 = vadd.f32 0.0, %v3153
    %3155 = vmatprep.mubr.bf16.mxu0 %v2885
    %3156 = vmatmul.mubr.bf16.gmra.mrb[0].mxu0 %v2884
    %v3157 = vpop.f32.mrb[0].mxu0
    %v3158 = vadd.f32 0.0, %v3157
    %v3159 = vpop.f32.mrb[0].mxu0
    %v3160 = vadd.f32 0.0, %v3159
    %v3161 = vpop.f32.mrb[0].mxu0
    %v3162 = vadd.f32 0.0, %v3161
    %v3163 = vpop.f32.mrb[0].mxu0
    %v3164 = vadd.f32 0.0, %v3163
    %3165 = vmatprep.mubr.bf16.mxu0 %v2887
    %3166 = vmatmul.mubr.bf16.gmra.mrb[0].mxu0 %v2886
    %v3167 = vpop.f32.mrb[0].mxu0
    %v3168 = vadd.f32 0.0, %v3167
    %v3169 = vpop.f32.mrb[0].mxu0
    %v3170 = vadd.f32 0.0, %v3169
    %v3171 = vpop.f32.mrb[0].mxu0
    %v3172 = vadd.f32 0.0, %v3171
    %v3173 = vpop.f32.mrb[0].mxu0
    %v3174 = vadd.f32 0.0, %v3173
    %3175 = vmatprep.mubr.bf16.mxu0 %v2889
    %3176 = vmatmul.mubr.bf16.gmra.mrb[0].mxu0 %v2888
    %v3177 = vpop.f32.mrb[0].mxu0
    %v3178 = vadd.f32 0.0, %v3177
    %v3179 = vpop.f32.mrb[0].mxu0
    %v3180 = vadd.f32 0.0, %v3179
    %v3181 = vpop.f32.mrb[0].mxu0
    %v3182 = vadd.f32 0.0, %v3181
    %v3183 = vpop.f32.mrb[0].mxu0
    %v3184 = vadd.f32 0.0, %v3183
    %3185 = vmatprep.mubr.bf16.mxu0 %v2891
    %3186 = vmatmul.mubr.bf16.gmra.mrb[0].mxu0 %v2890
    %v3187 = vpop.f32.mrb[0].mxu0
    %v3188 = vadd.f32 0.0, %v3187
    %v3189 = vpop.f32.mrb[0].mxu0
    %v3190 = vadd.f32 0.0, %v3189
    %v3191 = vpop.f32.mrb[0].mxu0
    %v3192 = vadd.f32 0.0, %v3191
    %v3193 = vpop.f32.mrb[0].mxu0
    %v3194 = vadd.f32 0.0, %v3193
    %3195 = vmatprep.mubr.bf16.mxu0 %v2893
    %3196 = vmatmul.mubr.bf16.gmra.mrb[0].mxu0 %v2892
    %v3197 = vpop.f32.mrb[0].mxu0
    %v3198 = vadd.f32 0.0, %v3197
    %v3199 = vpop.f32.mrb[0].mxu0
    %v3200 = vadd.f32 0.0, %v3199
    %v3201 = vpop.f32.mrb[0].mxu0
    %v3202 = vadd.f32 0.0, %v3201
    %v3203 = vpop.f32.mrb[0].mxu0
    %v3204 = vadd.f32 0.0, %v3203
    %3205 = vmatprep.mubr.bf16.mxu0 %v2895
    %3206 = vmatmul.mubr.bf16.gmra.mrb[0].mxu0 %v2894
    %v3207 = vpop.f32.mrb[0].mxu0
    %v3208 = vadd.f32 0.0, %v3207
    %v3209 = vpop.f32.mrb[0].mxu0
    %v3210 = vadd.f32 0.0, %v3209
    %v3211 = vpop.f32.mrb[0].mxu0
    %v3212 = vadd.f32 0.0, %v3211
    %v3213 = vpop.f32.mrb[0].mxu0
    %v3214 = vadd.f32 0.0, %v3213
    %3215 = vmatprep.mubr.bf16.mxu0 %v2897
    %3216 = vmatmul.mubr.bf16.gmra.mrb[0].mxu0 %v2896
    %v3217 = vpop.f32.mrb[0].mxu0
    %v3218 = vadd.f32 0.0, %v3217
    %v3219 = vpop.f32.mrb[0].mxu0
    %v3220 = vadd.f32 0.0, %v3219
    %v3221 = vpop.f32.mrb[0].mxu0
    %v3222 = vadd.f32 0.0, %v3221
    %v3223 = vpop.f32.mrb[0].mxu0
    %v3224 = vadd.f32 0.0, %v3223
    %3225 = vmatprep.mubr.bf16.mxu0 %v2899
    %3226 = vmatmul.mubr.bf16.gmra.mrb[0].mxu0 %v2898
    %v3227 = vpop.f32.mrb[0].mxu0
    %v3228 = vadd.f32 0.0, %v3227
    %v3229 = vpop.f32.mrb[0].mxu0
    %v3230 = vadd.f32 0.0, %v3229
    %v3231 = vpop.f32.mrb[0].mxu0
    %v3232 = vadd.f32 0.0, %v3231
    %v3233 = vpop.f32.mrb[0].mxu0
    %v3234 = vadd.f32 0.0, %v3233
    %3235 = vmatprep.mubr.bf16.mxu0 %v2901
    %3236 = vmatmul.mubr.bf16.gmra.mrb[0].mxu0 %v2900
    %v3237 = vpop.f32.mrb[0].mxu0
    %v3238 = vadd.f32 0.0, %v3237
    %v3239 = vpop.f32.mrb[0].mxu0
    %v3240 = vadd.f32 0.0, %v3239
    %v3241 = vpop.f32.mrb[0].mxu0
    %v3242 = vadd.f32 0.0, %v3241
    %v3243 = vpop.f32.mrb[0].mxu0
    %v3244 = vadd.f32 0.0, %v3243
    %3245 = vmatprep.mubr.bf16.mxu0 %v2903
    %3246 = vmatmul.mubr.bf16.gmra.mrb[0].mxu0 %v2902
    %v3247 = vpop.f32.mrb[0].mxu0
    %v3248 = vadd.f32 0.0, %v3247
    %v3249 = vpop.f32.mrb[0].mxu0
    %v3250 = vadd.f32 0.0, %v3249
    %v3251 = vpop.f32.mrb[0].mxu0
    %v3252 = vadd.f32 0.0, %v3251
    %v3253 = vpop.f32.mrb[0].mxu0
    %v3254 = vadd.f32 0.0, %v3253
    %3255 = vmatprep.mubr.bf16.mxu0 %v2905
    %3256 = vmatmul.mubr.bf16.gmra.mrb[0].mxu0 %v2904
    %v3257 = vpop.f32.mrb[0].mxu0
    %v3258 = vadd.f32 0.0, %v3257
    %v3259 = vpop.f32.mrb[0].mxu0
    %v3260 = vadd.f32 0.0, %v3259
    %v3261 = vpop.f32.mrb[0].mxu0
    %v3262 = vadd.f32 0.0, %v3261
    %v3263 = vpop.f32.mrb[0].mxu0
    %v3264 = vadd.f32 0.0, %v3263
    %3265 = vmatprep.mubr.bf16.mxu0 %v2907
    %3266 = vmatmul.mubr.bf16.gmra.mrb[0].mxu0 %v2906
    %v3267 = vpop.f32.mrb[0].mxu0
    %v3268 = vadd.f32 0.0, %v3267
    %v3269 = vpop.f32.mrb[0].mxu0
    %v3270 = vadd.f32 0.0, %v3269
    %v3271 = vpop.f32.mrb[0].mxu0
    %v3272 = vadd.f32 0.0, %v3271
    %v3273 = vpop.f32.mrb[0].mxu0
    %v3274 = vadd.f32 0.0, %v3273
    %3275 = vmatprep.mubr.bf16.mxu0 %v2909
    %3276 = vmatmul.mubr.bf16.gmra.mrb[0].mxu0 %v2908
    %v3277 = vpop.f32.mrb[0].mxu0
    %v3278 = vadd.f32 0.0, %v3277
    %v3279 = vpop.f32.mrb[0].mxu0
    %v3280 = vadd.f32 0.0, %v3279
    %v3281 = vpop.f32.mrb[0].mxu0
    %v3282 = vadd.f32 0.0, %v3281
    %v3283 = vpop.f32.mrb[0].mxu0
    %v3284 = vadd.f32 0.0, %v3283
    %3285 = vdwg.mxu0
    %v3286 = vadd.f32 %v2732, %v3138
    %v3287 = vadd.f32 %v2734, %v3140
    %v3288 = vadd.f32 %v2736, %v3142
    %v3289 = vadd.f32 %v2738, %v3144
    %v3290 = vadd.f32 %v2742, %v3148
    %v3291 = vadd.f32 %v2744, %v3150
    %v3292 = vadd.f32 %v2746, %v3152
    %v3293 = vadd.f32 %v2748, %v3154
    %v3294 = vadd.f32 %v2752, %v3158
    %v3295 = vadd.f32 %v2754, %v3160
    %v3296 = vadd.f32 %v2756, %v3162
    %v3297 = vadd.f32 %v2758, %v3164
    %v3298 = vadd.f32 %v2762, %v3168
    %v3299 = vadd.f32 %v2764, %v3170
    %v3300 = vadd.f32 %v2766, %v3172
    %v3301 = vadd.f32 %v2768, %v3174
    %v3302 = vadd.f32 %v2772, %v3178
    %v3303 = vadd.f32 %v2774, %v3180
    %v3304 = vadd.f32 %v2776, %v3182
    %v3305 = vadd.f32 %v2778, %v3184
    %v3306 = vadd.f32 %v2782, %v3188
    %v3307 = vadd.f32 %v2784, %v3190
    %v3308 = vadd.f32 %v2786, %v3192
    %v3309 = vadd.f32 %v2788, %v3194
    %v3310 = vadd.f32 %v2792, %v3198
    %v3311 = vadd.f32 %v2794, %v3200
    %v3312 = vadd.f32 %v2796, %v3202
    %v3313 = vadd.f32 %v2798, %v3204
    %v3314 = vadd.f32 %v2802, %v3208
    %v3315 = vadd.f32 %v2804, %v3210
    %v3316 = vadd.f32 %v2806, %v3212
    %v3317 = vadd.f32 %v2808, %v3214
    %v3318 = vadd.f32 %v2812, %v3218
    %v3319 = vadd.f32 %v2814, %v3220
    %v3320 = vadd.f32 %v2816, %v3222
    %v3321 = vadd.f32 %v2818, %v3224
    %v3322 = vadd.f32 %v2822, %v3228
    %v3323 = vadd.f32 %v2824, %v3230
    %v3324 = vadd.f32 %v2826, %v3232
    %v3325 = vadd.f32 %v2828, %v3234
    %v3326 = vadd.f32 %v2832, %v3238
    %v3327 = vadd.f32 %v2834, %v3240
    %v3328 = vadd.f32 %v2836, %v3242
    %v3329 = vadd.f32 %v2838, %v3244
    %v3330 = vadd.f32 %v2842, %v3248
    %v3331 = vadd.f32 %v2844, %v3250
    %v3332 = vadd.f32 %v2846, %v3252
    %v3333 = vadd.f32 %v2848, %v3254
    %v3334 = vadd.f32 %v2852, %v3258
    %v3335 = vadd.f32 %v2854, %v3260
    %v3336 = vadd.f32 %v2856, %v3262
    %v3337 = vadd.f32 %v2858, %v3264
    %v3338 = vadd.f32 %v2862, %v3268
    %v3339 = vadd.f32 %v2864, %v3270
    %v3340 = vadd.f32 %v2866, %v3272
    %v3341 = vadd.f32 %v2868, %v3274
    %v3342 = vadd.f32 %v2872, %v3278
    %v3343 = vadd.f32 %v2874, %v3280
    %v3344 = vadd.f32 %v2876, %v3282
    %v3345 = vadd.f32 %v2878, %v3284
    %s3346 = scalar_lea.vmem %s4, 2
    %v3347 = vld [vmem:[%s3346] sm:$0x3]
    %v3349 = vlaneseq
    %v3350 = vshrl.u32 %v3349, 7
    %v3351 = vsub.s32 0, %v3350
    %v3352 = vrot.slane %v3347, %v3351
    %v3353 = vlaneseq
    %v3354 = vshrl.u32 %v3353, 7
    %v3355 = vsub.s32 1, %v3354
    %v3356 = vrot.slane %v3347, %v3355
    %v3359 = vadd.f32 %v3286, %v3352
    %v3360 = vadd.f32 %v3287, %v3356
    %v3361 = vadd.f32 %v3288, %v3352
    %v3362 = vadd.f32 %v3289, %v3356
    %v3363 = vadd.f32 %v3290, %v3352
    %v3364 = vadd.f32 %v3291, %v3356
    %v3365 = vadd.f32 %v3292, %v3352
    %v3366 = vadd.f32 %v3293, %v3356
    %v3367 = vadd.f32 %v3294, %v3352
    %v3368 = vadd.f32 %v3295, %v3356
    %v3369 = vadd.f32 %v3296, %v3352
    %v3370 = vadd.f32 %v3297, %v3356
    %v3371 = vadd.f32 %v3298, %v3352
    %v3372 = vadd.f32 %v3299, %v3356
    %v3373 = vadd.f32 %v3300, %v3352
    %v3374 = vadd.f32 %v3301, %v3356
    %v3375 = vadd.f32 %v3302, %v3352
    %v3376 = vadd.f32 %v3303, %v3356
    %v3377 = vadd.f32 %v3304, %v3352
    %v3378 = vadd.f32 %v3305, %v3356
    %v3379 = vadd.f32 %v3306, %v3352
    %v3380 = vadd.f32 %v3307, %v3356
    %v3381 = vadd.f32 %v3308, %v3352
    %v3382 = vadd.f32 %v3309, %v3356
    %v3383 = vadd.f32 %v3310, %v3352
    %v3384 = vadd.f32 %v3311, %v3356
    %v3385 = vadd.f32 %v3312, %v3352
    %v3386 = vadd.f32 %v3313, %v3356
    %v3387 = vadd.f32 %v3314, %v3352
    %v3388 = vadd.f32 %v3315, %v3356
    %v3389 = vadd.f32 %v3316, %v3352
    %v3390 = vadd.f32 %v3317, %v3356
    %v3391 = vadd.f32 %v3318, %v3352
    %v3392 = vadd.f32 %v3319, %v3356
    %v3393 = vadd.f32 %v3320, %v3352
    %v3394 = vadd.f32 %v3321, %v3356
    %v3395 = vadd.f32 %v3322, %v3352
    %v3396 = vadd.f32 %v3323, %v3356
    %v3397 = vadd.f32 %v3324, %v3352
    %v3398 = vadd.f32 %v3325, %v3356
    %v3399 = vadd.f32 %v3326, %v3352
    %v3400 = vadd.f32 %v3327, %v3356
    %v3401 = vadd.f32 %v3328, %v3352
    %v3402 = vadd.f32 %v3329, %v3356
    %v3403 = vadd.f32 %v3330, %v3352
    %v3404 = vadd.f32 %v3331, %v3356
    %v3405 = vadd.f32 %v3332, %v3352
    %v3406 = vadd.f32 %v3333, %v3356
    %v3407 = vadd.f32 %v3334, %v3352
    %v3408 = vadd.f32 %v3335, %v3356
    %v3409 = vadd.f32 %v3336, %v3352
    %v3410 = vadd.f32 %v3337, %v3356
    %v3411 = vadd.f32 %v3338, %v3352
    %v3412 = vadd.f32 %v3339, %v3356
    %v3413 = vadd.f32 %v3340, %v3352
    %v3414 = vadd.f32 %v3341, %v3356
    %v3415 = vadd.f32 %v3342, %v3352
    %v3416 = vadd.f32 %v3343, %v3356
    %v3417 = vadd.f32 %v3344, %v3352
    %v3418 = vadd.f32 %v3345, %v3356
    %v3419 = vpack.c.bf16 %v2404, %v2402
    %v3420 = vpack.c.bf16 %v2405, %v2403
    %v3421 = vpack.c.bf16 %v2408, %v2406
    %v3422 = vpack.c.bf16 %v2409, %v2407
    %v3423 = vpack.c.bf16 %v2412, %v2410
    %v3424 = vpack.c.bf16 %v2413, %v2411
    %v3425 = vpack.c.bf16 %v2416, %v2414
    %v3426 = vpack.c.bf16 %v2417, %v2415
    %v3427 = vpack.c.bf16 %v2420, %v2418
    %v3428 = vpack.c.bf16 %v2421, %v2419
    %v3429 = vpack.c.bf16 %v2424, %v2422
    %v3430 = vpack.c.bf16 %v2425, %v2423
    %v3431 = vpack.c.bf16 %v2428, %v2426
    %v3432 = vpack.c.bf16 %v2429, %v2427
    %v3433 = vpack.c.bf16 %v2432, %v2430
    %v3434 = vpack.c.bf16 %v2433, %v2431
    %v3435 = vpack.c.bf16 %v2436, %v2434
    %v3436 = vpack.c.bf16 %v2437, %v2435
    %v3437 = vpack.c.bf16 %v2440, %v2438
    %v3438 = vpack.c.bf16 %v2441, %v2439
    %v3439 = vpack.c.bf16 %v2444, %v2442
    %v3440 = vpack.c.bf16 %v2445, %v2443
    %v3441 = vpack.c.bf16 %v2448, %v2446
    %v3442 = vpack.c.bf16 %v2449, %v2447
    %v3443 = vpack.c.bf16 %v2452, %v2450
    %v3444 = vpack.c.bf16 %v2453, %v2451
    %v3445 = vpack.c.bf16 %v2456, %v2454
    %v3446 = vpack.c.bf16 %v2457, %v2455
    %v3447 = vpack.c.bf16 %v2460, %v2458
    %v3448 = vpack.c.bf16 %v2461, %v2459
    %s3449 = scalar_lea.vmem %s3, 512
    %v3450 = vld [vmem:[%s3449] sm:$0xff]
    %v3451 = vld [vmem:[%s3449 + $0x8] sm:$0xff]
    %v3452 = vld [vmem:[%s3449 + $0x10] sm:$0xff]
    %v3453 = vld [vmem:[%s3449 + $0x18] sm:$0xff]
    %v3454 = vld [vmem:[%s3449 + $0x20] sm:$0xff]
    %v3455 = vld [vmem:[%s3449 + $0x28] sm:$0xff]
    %v3456 = vld [vmem:[%s3449 + $0x30] sm:$0xff]
    %v3457 = vld [vmem:[%s3449 + $0x38] sm:$0xff]
    %v3458 = vld [vmem:[%s3449 + $0x40] sm:$0xff]
    %v3459 = vld [vmem:[%s3449 + $0x48] sm:$0xff]
    %v3460 = vld [vmem:[%s3449 + $0x50] sm:$0xff]
    %v3461 = vld [vmem:[%s3449 + $0x58] sm:$0xff]
    %v3462 = vld [vmem:[%s3449 + $0x60] sm:$0xff]
    %v3463 = vld [vmem:[%s3449 + $0x68] sm:$0xff]
    %v3464 = vld [vmem:[%s3449 + $0x70] sm:$0xff]
    %v3465 = vld [vmem:[%s3449 + $0x78] sm:$0xff]
    %v3466 = vld [vmem:[%s3449 + $0x80] sm:$0xff]
    %v3467 = vld [vmem:[%s3449 + $0x88] sm:$0xff]
    %v3468 = vld [vmem:[%s3449 + $0x90] sm:$0xff]
    %v3469 = vld [vmem:[%s3449 + $0x98] sm:$0xff]
    %v3470 = vld [vmem:[%s3449 + $0xa0] sm:$0xff]
    %v3471 = vld [vmem:[%s3449 + $0xa8] sm:$0xff]
    %v3472 = vld [vmem:[%s3449 + $0xb0] sm:$0xff]
    %v3473 = vld [vmem:[%s3449 + $0xb8] sm:$0xff]
    %v3474 = vld [vmem:[%s3449 + $0xc0] sm:$0xff]
    %v3475 = vld [vmem:[%s3449 + $0xc8] sm:$0xff]
    %v3476 = vld [vmem:[%s3449 + $0xd0] sm:$0xff]
    %v3477 = vld [vmem:[%s3449 + $0xd8] sm:$0xff]
    %v3478 = vld [vmem:[%s3449 + $0xe0] sm:$0xff]
    %v3479 = vld [vmem:[%s3449 + $0xe8] sm:$0xff]
    %v3480 = vld [vmem:[%s3449 + $0xf0] sm:$0xff]
    %v3481 = vld [vmem:[%s3449 + $0xf8] sm:$0xff]
    %v3514 = vunpack.c.l.b16 %v3450
    %v3515 = vunpack.c.h.b16 %v3450
    %v3516 = vunpack.c.l.b16 %v3451
    %v3517 = vunpack.c.h.b16 %v3451
    %v3518 = vunpack.c.l.b16 %v3452
    %v3519 = vunpack.c.h.b16 %v3452
    %v3520 = vunpack.c.l.b16 %v3453
    %v3521 = vunpack.c.h.b16 %v3453
    %v3522 = vunpack.c.l.b16 %v3454
    %v3523 = vunpack.c.h.b16 %v3454
    %v3524 = vunpack.c.l.b16 %v3455
    %v3525 = vunpack.c.h.b16 %v3455
    %v3526 = vunpack.c.l.b16 %v3456
    %v3527 = vunpack.c.h.b16 %v3456
    %v3528 = vunpack.c.l.b16 %v3457
    %v3529 = vunpack.c.h.b16 %v3457
    %v3530 = vunpack.c.l.b16 %v3458
    %v3531 = vunpack.c.h.b16 %v3458
    %v3532 = vunpack.c.l.b16 %v3459
    %v3533 = vunpack.c.h.b16 %v3459
    %v3534 = vunpack.c.l.b16 %v3460
    %v3535 = vunpack.c.h.b16 %v3460
    %v3536 = vunpack.c.l.b16 %v3461
    %v3537 = vunpack.c.h.b16 %v3461
    %v3538 = vunpack.c.l.b16 %v3462
    %v3539 = vunpack.c.h.b16 %v3462
    %v3540 = vunpack.c.l.b16 %v3463
    %v3541 = vunpack.c.h.b16 %v3463
    %v3542 = vunpack.c.l.b16 %v3464
    %v3543 = vunpack.c.h.b16 %v3464
    %v3544 = vunpack.c.l.b16 %v3465
    %v3545 = vunpack.c.h.b16 %v3465
    %v3546 = vunpack.c.l.b16 %v3466
    %v3547 = vunpack.c.h.b16 %v3466
    %v3548 = vunpack.c.l.b16 %v3467
    %v3549 = vunpack.c.h.b16 %v3467
    %v3550 = vunpack.c.l.b16 %v3468
    %v3551 = vunpack.c.h.b16 %v3468
    %v3552 = vunpack.c.l.b16 %v3469
    %v3553 = vunpack.c.h.b16 %v3469
    %v3554 = vunpack.c.l.b16 %v3470
    %v3555 = vunpack.c.h.b16 %v3470
    %v3556 = vunpack.c.l.b16 %v3471
    %v3557 = vunpack.c.h.b16 %v3471
    %v3558 = vunpack.c.l.b16 %v3472
    %v3559 = vunpack.c.h.b16 %v3472
    %v3560 = vunpack.c.l.b16 %v3473
    %v3561 = vunpack.c.h.b16 %v3473
    %v3562 = vunpack.c.l.b16 %v3474
    %v3563 = vunpack.c.h.b16 %v3474
    %v3564 = vunpack.c.l.b16 %v3475
    %v3565 = vunpack.c.h.b16 %v3475
    %v3566 = vunpack.c.l.b16 %v3476
    %v3567 = vunpack.c.h.b16 %v3476
    %v3568 = vunpack.c.l.b16 %v3477
    %v3569 = vunpack.c.h.b16 %v3477
    %v3570 = vunpack.c.l.b16 %v3478
    %v3571 = vunpack.c.h.b16 %v3478
    %v3572 = vunpack.c.l.b16 %v3479
    %v3573 = vunpack.c.h.b16 %v3479
    %v3574 = vunpack.c.l.b16 %v3480
    %v3575 = vunpack.c.h.b16 %v3480
    %v3576 = vunpack.c.l.b16 %v3481
    %v3577 = vunpack.c.h.b16 %v3481
    %v3578 = vpack.c.b16 %v3516, %v3514
    %v3579 = vpack.c.b16 %v3517, %v3515
    %v3580 = vpack.c.b16 %v3520, %v3518
    %v3581 = vpack.c.b16 %v3521, %v3519
    %v3582 = vpack.c.b16 %v3524, %v3522
    %v3583 = vpack.c.b16 %v3525, %v3523
    %v3584 = vpack.c.b16 %v3528, %v3526
    %v3585 = vpack.c.b16 %v3529, %v3527
    %v3586 = vpack.c.b16 %v3532, %v3530
    %v3587 = vpack.c.b16 %v3533, %v3531
    %v3588 = vpack.c.b16 %v3536, %v3534
    %v3589 = vpack.c.b16 %v3537, %v3535
    %v3590 = vpack.c.b16 %v3540, %v3538
    %v3591 = vpack.c.b16 %v3541, %v3539
    %v3592 = vpack.c.b16 %v3544, %v3542
    %v3593 = vpack.c.b16 %v3545, %v3543
    %v3594 = vpack.c.b16 %v3548, %v3546
    %v3595 = vpack.c.b16 %v3549, %v3547
    %v3596 = vpack.c.b16 %v3552, %v3550
    %v3597 = vpack.c.b16 %v3553, %v3551
    %v3598 = vpack.c.b16 %v3556, %v3554
    %v3599 = vpack.c.b16 %v3557, %v3555
    %v3600 = vpack.c.b16 %v3560, %v3558
    %v3601 = vpack.c.b16 %v3561, %v3559
    %v3602 = vpack.c.b16 %v3564, %v3562
    %v3603 = vpack.c.b16 %v3565, %v3563
    %v3604 = vpack.c.b16 %v3568, %v3566
    %v3605 = vpack.c.b16 %v3569, %v3567
    %v3606 = vpack.c.b16 %v3572, %v3570
    %v3607 = vpack.c.b16 %v3573, %v3571
    %v3608 = vpack.c.b16 %v3576, %v3574
    %v3609 = vpack.c.b16 %v3577, %v3575
    %3642 = vmatprep.subr.bf16.mxu0 %v3579
    %3643 = vmatpush1.bf16.msra.mxu0 %v3578
    %3644 = vmatprep.subr.bf16.mxu0 %v3581
    %3645 = vmatpush1.bf16.msra.mxu0 %v3580
    %3646 = vmatprep.subr.bf16.mxu0 %v3583
    %3647 = vmatpush1.bf16.msra.mxu0 %v3582
    %3648 = vmatprep.subr.bf16.mxu0 %v3585
    %3649 = vmatpush1.bf16.msra.mxu0 %v3584
    %3650 = vmatprep.subr.bf16.mxu0 %v3587
    %3651 = vmatpush1.bf16.msra.mxu0 %v3586
    %3652 = vmatprep.subr.bf16.mxu0 %v3589
    %3653 = vmatpush1.bf16.msra.mxu0 %v3588
    %3654 = vmatprep.subr.bf16.mxu0 %v3591
    %3655 = vmatpush1.bf16.msra.mxu0 %v3590
    %3656 = vmatprep.subr.bf16.mxu0 %v3593
    %3657 = vmatpush1.bf16.msra.mxu0 %v3592
    %3658 = vmatprep.subr.bf16.mxu0 %v3595
    %3659 = vmatpush1.bf16.msra.mxu0 %v3594
    %3660 = vmatprep.subr.bf16.mxu0 %v3597
    %3661 = vmatpush1.bf16.msra.mxu0 %v3596
    %3662 = vmatprep.subr.bf16.mxu0 %v3599
    %3663 = vmatpush1.bf16.msra.mxu0 %v3598
    %3664 = vmatprep.subr.bf16.mxu0 %v3601
    %3665 = vmatpush1.bf16.msra.mxu0 %v3600
    %3666 = vmatprep.subr.bf16.mxu0 %v3603
    %3667 = vmatpush1.bf16.msra.mxu0 %v3602
    %3668 = vmatprep.subr.bf16.mxu0 %v3605
    %3669 = vmatpush1.bf16.msra.mxu0 %v3604
    %3670 = vmatprep.subr.bf16.mxu0 %v3607
    %3671 = vmatpush1.bf16.msra.mxu0 %v3606
    %3672 = vmatprep.subr.bf16.mxu0 %v3609
    %3673 = vmatpush1.bf16.msra.mxu0 %v3608
    %3674 = vmatprep.mubr.bf16.mxu0 %v3420
    %3675 = vmatmul.mubr.bf16.gmra.mrb[0].mxu0 %v3419
    %v3676 = vpop.f32.mrb[0].mxu0
    %v3677 = vadd.f32 0.0, %v3676
    %v3678 = vpop.f32.mrb[0].mxu0
    %v3679 = vadd.f32 0.0, %v3678
    %v3680 = vpop.f32.mrb[0].mxu0
    %v3681 = vadd.f32 0.0, %v3680
    %v3682 = vpop.f32.mrb[0].mxu0
    %v3683 = vadd.f32 0.0, %v3682
    %3684 = vmatprep.mubr.bf16.mxu0 %v3422
    %3685 = vmatmul.mubr.bf16.gmra.mrb[0].mxu0 %v3421
    %v3686 = vpop.f32.mrb[0].mxu0
    %v3687 = vadd.f32 0.0, %v3686
    %v3688 = vpop.f32.mrb[0].mxu0
    %v3689 = vadd.f32 0.0, %v3688
    %v3690 = vpop.f32.mrb[0].mxu0
    %v3691 = vadd.f32 0.0, %v3690
    %v3692 = vpop.f32.mrb[0].mxu0
    %v3693 = vadd.f32 0.0, %v3692
    %3694 = vmatprep.mubr.bf16.mxu0 %v3424
    %3695 = vmatmul.mubr.bf16.gmra.mrb[0].mxu0 %v3423
    %v3696 = vpop.f32.mrb[0].mxu0
    %v3697 = vadd.f32 0.0, %v3696
    %v3698 = vpop.f32.mrb[0].mxu0
    %v3699 = vadd.f32 0.0, %v3698
    %v3700 = vpop.f32.mrb[0].mxu0
    %v3701 = vadd.f32 0.0, %v3700
    %v3702 = vpop.f32.mrb[0].mxu0
    %v3703 = vadd.f32 0.0, %v3702
    %3704 = vmatprep.mubr.bf16.mxu0 %v3426
    %3705 = vmatmul.mubr.bf16.gmra.mrb[0].mxu0 %v3425
    %v3706 = vpop.f32.mrb[0].mxu0
    %v3707 = vadd.f32 0.0, %v3706
    %v3708 = vpop.f32.mrb[0].mxu0
    %v3709 = vadd.f32 0.0, %v3708
    %v3710 = vpop.f32.mrb[0].mxu0
    %v3711 = vadd.f32 0.0, %v3710
    %v3712 = vpop.f32.mrb[0].mxu0
    %v3713 = vadd.f32 0.0, %v3712
    %3714 = vmatprep.mubr.bf16.mxu0 %v3428
    %3715 = vmatmul.mubr.bf16.gmra.mrb[0].mxu0 %v3427
    %v3716 = vpop.f32.mrb[0].mxu0
    %v3717 = vadd.f32 0.0, %v3716
    %v3718 = vpop.f32.mrb[0].mxu0
    %v3719 = vadd.f32 0.0, %v3718
    %v3720 = vpop.f32.mrb[0].mxu0
    %v3721 = vadd.f32 0.0, %v3720
    %v3722 = vpop.f32.mrb[0].mxu0
    %v3723 = vadd.f32 0.0, %v3722
    %3724 = vmatprep.mubr.bf16.mxu0 %v3430
    %3725 = vmatmul.mubr.bf16.gmra.mrb[0].mxu0 %v3429
    %v3726 = vpop.f32.mrb[0].mxu0
    %v3727 = vadd.f32 0.0, %v3726
    %v3728 = vpop.f32.mrb[0].mxu0
    %v3729 = vadd.f32 0.0, %v3728
    %v3730 = vpop.f32.mrb[0].mxu0
    %v3731 = vadd.f32 0.0, %v3730
    %v3732 = vpop.f32.mrb[0].mxu0
    %v3733 = vadd.f32 0.0, %v3732
    %3734 = vmatprep.mubr.bf16.mxu0 %v3432
    %3735 = vmatmul.mubr.bf16.gmra.mrb[0].mxu0 %v3431
    %v3736 = vpop.f32.mrb[0].mxu0
    %v3737 = vadd.f32 0.0, %v3736
    %v3738 = vpop.f32.mrb[0].mxu0
    %v3739 = vadd.f32 0.0, %v3738
    %v3740 = vpop.f32.mrb[0].mxu0
    %v3741 = vadd.f32 0.0, %v3740
    %v3742 = vpop.f32.mrb[0].mxu0
    %v3743 = vadd.f32 0.0, %v3742
    %3744 = vmatprep.mubr.bf16.mxu0 %v3434
    %3745 = vmatmul.mubr.bf16.gmra.mrb[0].mxu0 %v3433
    %v3746 = vpop.f32.mrb[0].mxu0
    %v3747 = vadd.f32 0.0, %v3746
    %v3748 = vpop.f32.mrb[0].mxu0
    %v3749 = vadd.f32 0.0, %v3748
    %v3750 = vpop.f32.mrb[0].mxu0
    %v3751 = vadd.f32 0.0, %v3750
    %v3752 = vpop.f32.mrb[0].mxu0
    %v3753 = vadd.f32 0.0, %v3752
    %3754 = vmatprep.mubr.bf16.mxu0 %v3436
    %3755 = vmatmul.mubr.bf16.gmra.mrb[0].mxu0 %v3435
    %v3756 = vpop.f32.mrb[0].mxu0
    %v3757 = vadd.f32 0.0, %v3756
    %v3758 = vpop.f32.mrb[0].mxu0
    %v3759 = vadd.f32 0.0, %v3758
    %v3760 = vpop.f32.mrb[0].mxu0
    %v3761 = vadd.f32 0.0, %v3760
    %v3762 = vpop.f32.mrb[0].mxu0
    %v3763 = vadd.f32 0.0, %v3762
    %3764 = vmatprep.mubr.bf16.mxu0 %v3438
    %3765 = vmatmul.mubr.bf16.gmra.mrb[0].mxu0 %v3437
    %v3766 = vpop.f32.mrb[0].mxu0
    %v3767 = vadd.f32 0.0, %v3766
    %v3768 = vpop.f32.mrb[0].mxu0
    %v3769 = vadd.f32 0.0, %v3768
    %v3770 = vpop.f32.mrb[0].mxu0
    %v3771 = vadd.f32 0.0, %v3770
    %v3772 = vpop.f32.mrb[0].mxu0
    %v3773 = vadd.f32 0.0, %v3772
    %3774 = vmatprep.mubr.bf16.mxu0 %v3440
    %3775 = vmatmul.mubr.bf16.gmra.mrb[0].mxu0 %v3439
    %v3776 = vpop.f32.mrb[0].mxu0
    %v3777 = vadd.f32 0.0, %v3776
    %v3778 = vpop.f32.mrb[0].mxu0
    %v3779 = vadd.f32 0.0, %v3778
    %v3780 = vpop.f32.mrb[0].mxu0
    %v3781 = vadd.f32 0.0, %v3780
    %v3782 = vpop.f32.mrb[0].mxu0
    %v3783 = vadd.f32 0.0, %v3782
    %3784 = vmatprep.mubr.bf16.mxu0 %v3442
    %3785 = vmatmul.mubr.bf16.gmra.mrb[0].mxu0 %v3441
    %v3786 = vpop.f32.mrb[0].mxu0
    %v3787 = vadd.f32 0.0, %v3786
    %v3788 = vpop.f32.mrb[0].mxu0
    %v3789 = vadd.f32 0.0, %v3788
    %v3790 = vpop.f32.mrb[0].mxu0
    %v3791 = vadd.f32 0.0, %v3790
    %v3792 = vpop.f32.mrb[0].mxu0
    %v3793 = vadd.f32 0.0, %v3792
    %3794 = vmatprep.mubr.bf16.mxu0 %v3444
    %3795 = vmatmul.mubr.bf16.gmra.mrb[0].mxu0 %v3443
    %v3796 = vpop.f32.mrb[0].mxu0
    %v3797 = vadd.f32 0.0, %v3796
    %v3798 = vpop.f32.mrb[0].mxu0
    %v3799 = vadd.f32 0.0, %v3798
    %v3800 = vpop.f32.mrb[0].mxu0
    %v3801 = vadd.f32 0.0, %v3800
    %v3802 = vpop.f32.mrb[0].mxu0
    %v3803 = vadd.f32 0.0, %v3802
    %3804 = vmatprep.mubr.bf16.mxu0 %v3446
    %3805 = vmatmul.mubr.bf16.gmra.mrb[0].mxu0 %v3445
    %v3806 = vpop.f32.mrb[0].mxu0
    %v3807 = vadd.f32 0.0, %v3806
    %v3808 = vpop.f32.mrb[0].mxu0
    %v3809 = vadd.f32 0.0, %v3808
    %v3810 = vpop.f32.mrb[0].mxu0
    %v3811 = vadd.f32 0.0, %v3810
    %v3812 = vpop.f32.mrb[0].mxu0
    %v3813 = vadd.f32 0.0, %v3812
    %3814 = vmatprep.mubr.bf16.mxu0 %v3448
    %3815 = vmatmul.mubr.bf16.gmra.mrb[0].mxu0 %v3447
    %v3816 = vpop.f32.mrb[0].mxu0
    %v3817 = vadd.f32 0.0, %v3816
    %v3818 = vpop.f32.mrb[0].mxu0
    %v3819 = vadd.f32 0.0, %v3818
    %v3820 = vpop.f32.mrb[0].mxu0
    %v3821 = vadd.f32 0.0, %v3820
    %v3822 = vpop.f32.mrb[0].mxu0
    %v3823 = vadd.f32 0.0, %v3822
    %3824 = vdwg.mxu0
    %v3825 = vadd.f32 %v3359, %v3677
    %v3826 = vadd.f32 %v3360, %v3679
    %v3827 = vadd.f32 %v3361, %v3681
    %v3828 = vadd.f32 %v3362, %v3683
    %v3829 = vadd.f32 %v3363, %v3687
    %v3830 = vadd.f32 %v3364, %v3689
    %v3831 = vadd.f32 %v3365, %v3691
    %v3832 = vadd.f32 %v3366, %v3693
    %v3833 = vadd.f32 %v3367, %v3697
    %v3834 = vadd.f32 %v3368, %v3699
    %v3835 = vadd.f32 %v3369, %v3701
    %v3836 = vadd.f32 %v3370, %v3703
    %v3837 = vadd.f32 %v3371, %v3707
    %v3838 = vadd.f32 %v3372, %v3709
    %v3839 = vadd.f32 %v3373, %v3711
    %v3840 = vadd.f32 %v3374, %v3713
    %v3841 = vadd.f32 %v3375, %v3717
    %v3842 = vadd.f32 %v3376, %v3719
    %v3843 = vadd.f32 %v3377, %v3721
    %v3844 = vadd.f32 %v3378, %v3723
    %v3845 = vadd.f32 %v3379, %v3727
    %v3846 = vadd.f32 %v3380, %v3729
    %v3847 = vadd.f32 %v3381, %v3731
    %v3848 = vadd.f32 %v3382, %v3733
    %v3849 = vadd.f32 %v3383, %v3737
    %v3850 = vadd.f32 %v3384, %v3739
    %v3851 = vadd.f32 %v3385, %v3741
    %v3852 = vadd.f32 %v3386, %v3743
    %v3853 = vadd.f32 %v3387, %v3747
    %v3854 = vadd.f32 %v3388, %v3749
    %v3855 = vadd.f32 %v3389, %v3751
    %v3856 = vadd.f32 %v3390, %v3753
    %v3857 = vadd.f32 %v3391, %v3757
    %v3858 = vadd.f32 %v3392, %v3759
    %v3859 = vadd.f32 %v3393, %v3761
    %v3860 = vadd.f32 %v3394, %v3763
    %v3861 = vadd.f32 %v3395, %v3767
    %v3862 = vadd.f32 %v3396, %v3769
    %v3863 = vadd.f32 %v3397, %v3771
    %v3864 = vadd.f32 %v3398, %v3773
    %v3865 = vadd.f32 %v3399, %v3777
    %v3866 = vadd.f32 %v3400, %v3779
    %v3867 = vadd.f32 %v3401, %v3781
    %v3868 = vadd.f32 %v3402, %v3783
    %v3869 = vadd.f32 %v3403, %v3787
    %v3870 = vadd.f32 %v3404, %v3789
    %v3871 = vadd.f32 %v3405, %v3791
    %v3872 = vadd.f32 %v3406, %v3793
    %v3873 = vadd.f32 %v3407, %v3797
    %v3874 = vadd.f32 %v3408, %v3799
    %v3875 = vadd.f32 %v3409, %v3801
    %v3876 = vadd.f32 %v3410, %v3803
    %v3877 = vadd.f32 %v3411, %v3807
    %v3878 = vadd.f32 %v3412, %v3809
    %v3879 = vadd.f32 %v3413, %v3811
    %v3880 = vadd.f32 %v3414, %v3813
    %v3881 = vadd.f32 %v3415, %v3817
    %v3882 = vadd.f32 %v3416, %v3819
    %v3883 = vadd.f32 %v3417, %v3821
    %v3884 = vadd.f32 %v3418, %v3823
    %s3885 = scalar_lea.vmem %s4, 4
    %v3886 = vld [vmem:[%s3885] sm:$0x3]
    %v3887 = vmul.f32 %v3886, 2.0
    %v3889 = vlaneseq
    %v3890 = vshrl.u32 %v3889, 7
    %v3891 = vsub.s32 0, %v3890
    %v3892 = vrot.slane %v3887, %v3891
    %v3893 = vlaneseq
    %v3894 = vshrl.u32 %v3893, 7
    %v3895 = vsub.s32 1, %v3894
    %v3896 = vrot.slane %v3887, %v3895
    %v3899 = vadd.f32 %v3825, %v3892
    %v3900 = vadd.f32 %v3826, %v3896
    %v3901 = vadd.f32 %v3827, %v3892
    %v3902 = vadd.f32 %v3828, %v3896
    %v3903 = vadd.f32 %v3829, %v3892
    %v3904 = vadd.f32 %v3830, %v3896
    %v3905 = vadd.f32 %v3831, %v3892
    %v3906 = vadd.f32 %v3832, %v3896
    %v3907 = vadd.f32 %v3833, %v3892
    %v3908 = vadd.f32 %v3834, %v3896
    %v3909 = vadd.f32 %v3835, %v3892
    %v3910 = vadd.f32 %v3836, %v3896
    %v3911 = vadd.f32 %v3837, %v3892
    %v3912 = vadd.f32 %v3838, %v3896
    %v3913 = vadd.f32 %v3839, %v3892
    %v3914 = vadd.f32 %v3840, %v3896
    %v3915 = vadd.f32 %v3841, %v3892
    %v3916 = vadd.f32 %v3842, %v3896
    %v3917 = vadd.f32 %v3843, %v3892
    %v3918 = vadd.f32 %v3844, %v3896
    %v3919 = vadd.f32 %v3845, %v3892
    %v3920 = vadd.f32 %v3846, %v3896
    %v3921 = vadd.f32 %v3847, %v3892
    %v3922 = vadd.f32 %v3848, %v3896
    %v3923 = vadd.f32 %v3849, %v3892
    %v3924 = vadd.f32 %v3850, %v3896
    %v3925 = vadd.f32 %v3851, %v3892
    %v3926 = vadd.f32 %v3852, %v3896
    %v3927 = vadd.f32 %v3853, %v3892
    %v3928 = vadd.f32 %v3854, %v3896
    %v3929 = vadd.f32 %v3855, %v3892
    %v3930 = vadd.f32 %v3856, %v3896
    %v3931 = vadd.f32 %v3857, %v3892
    %v3932 = vadd.f32 %v3858, %v3896
    %v3933 = vadd.f32 %v3859, %v3892
    %v3934 = vadd.f32 %v3860, %v3896
    %v3935 = vadd.f32 %v3861, %v3892
    %v3936 = vadd.f32 %v3862, %v3896
    %v3937 = vadd.f32 %v3863, %v3892
    %v3938 = vadd.f32 %v3864, %v3896
    %v3939 = vadd.f32 %v3865, %v3892
    %v3940 = vadd.f32 %v3866, %v3896
    %v3941 = vadd.f32 %v3867, %v3892
    %v3942 = vadd.f32 %v3868, %v3896
    %v3943 = vadd.f32 %v3869, %v3892
    %v3944 = vadd.f32 %v3870, %v3896
    %v3945 = vadd.f32 %v3871, %v3892
    %v3946 = vadd.f32 %v3872, %v3896
    %v3947 = vadd.f32 %v3873, %v3892
    %v3948 = vadd.f32 %v3874, %v3896
    %v3949 = vadd.f32 %v3875, %v3892
    %v3950 = vadd.f32 %v3876, %v3896
    %v3951 = vadd.f32 %v3877, %v3892
    %v3952 = vadd.f32 %v3878, %v3896
    %v3953 = vadd.f32 %v3879, %v3892
    %v3954 = vadd.f32 %v3880, %v3896
    %v3955 = vadd.f32 %v3881, %v3892
    %v3956 = vadd.f32 %v3882, %v3896
    %v3957 = vadd.f32 %v3883, %v3892
    %v3958 = vadd.f32 %v3884, %v3896
    %v3959 = vmax.f32 %v3899, 0.0
    %v3960 = vmax.f32 %v3900, 0.0
    %v3961 = vmax.f32 %v3901, 0.0
    %v3962 = vmax.f32 %v3902, 0.0
    %v3963 = vmax.f32 %v3903, 0.0
    %v3964 = vmax.f32 %v3904, 0.0
    %v3965 = vmax.f32 %v3905, 0.0
    %v3966 = vmax.f32 %v3906, 0.0
    %v3967 = vmax.f32 %v3907, 0.0
    %v3968 = vmax.f32 %v3908, 0.0
    %v3969 = vmax.f32 %v3909, 0.0
    %v3970 = vmax.f32 %v3910, 0.0
    %v3971 = vmax.f32 %v3911, 0.0
    %v3972 = vmax.f32 %v3912, 0.0
    %v3973 = vmax.f32 %v3913, 0.0
    %v3974 = vmax.f32 %v3914, 0.0
    %v3975 = vmax.f32 %v3915, 0.0
    %v3976 = vmax.f32 %v3916, 0.0
    %v3977 = vmax.f32 %v3917, 0.0
    %v3978 = vmax.f32 %v3918, 0.0
    %v3979 = vmax.f32 %v3919, 0.0
    %v3980 = vmax.f32 %v3920, 0.0
    %v3981 = vmax.f32 %v3921, 0.0
    %v3982 = vmax.f32 %v3922, 0.0
    %v3983 = vmax.f32 %v3923, 0.0
    %v3984 = vmax.f32 %v3924, 0.0
    %v3985 = vmax.f32 %v3925, 0.0
    %v3986 = vmax.f32 %v3926, 0.0
    %v3987 = vmax.f32 %v3927, 0.0
    %v3988 = vmax.f32 %v3928, 0.0
    %v3989 = vmax.f32 %v3929, 0.0
    %v3990 = vmax.f32 %v3930, 0.0
    %v3991 = vmax.f32 %v3931, 0.0
    %v3992 = vmax.f32 %v3932, 0.0
    %v3993 = vmax.f32 %v3933, 0.0
    %v3994 = vmax.f32 %v3934, 0.0
    %v3995 = vmax.f32 %v3935, 0.0
    %v3996 = vmax.f32 %v3936, 0.0
    %v3997 = vmax.f32 %v3937, 0.0
    %v3998 = vmax.f32 %v3938, 0.0
    %v3999 = vmax.f32 %v3939, 0.0
    %v4000 = vmax.f32 %v3940, 0.0
    %v4001 = vmax.f32 %v3941, 0.0
    %v4002 = vmax.f32 %v3942, 0.0
    %v4003 = vmax.f32 %v3943, 0.0
    %v4004 = vmax.f32 %v3944, 0.0
    %v4005 = vmax.f32 %v3945, 0.0
    %v4006 = vmax.f32 %v3946, 0.0
    %v4007 = vmax.f32 %v3947, 0.0
    %v4008 = vmax.f32 %v3948, 0.0
    %v4009 = vmax.f32 %v3949, 0.0
    %v4010 = vmax.f32 %v3950, 0.0
    %v4011 = vmax.f32 %v3951, 0.0
    %v4012 = vmax.f32 %v3952, 0.0
    %v4013 = vmax.f32 %v3953, 0.0
    %v4014 = vmax.f32 %v3954, 0.0
    %v4015 = vmax.f32 %v3955, 0.0
    %v4016 = vmax.f32 %v3956, 0.0
    %v4017 = vmax.f32 %v3957, 0.0
    %v4018 = vmax.f32 %v3958, 0.0
    %v4019 = vld [vmem:[%s0 + $0x258] sm:$0xf]
    %v4020 = vld [vmem:[%s0 + $0x25c] sm:$0xf]
    %v4021 = vld [vmem:[%s0 + $0x260] sm:$0xf]
    %v4022 = vld [vmem:[%s0 + $0x264] sm:$0xf]
    %v4023 = vld [vmem:[%s0 + $0x268] sm:$0xf]
    %v4024 = vld [vmem:[%s0 + $0x26c] sm:$0xf]
    %v4025 = vld [vmem:[%s0 + $0x270] sm:$0xf]
    %v4026 = vld [vmem:[%s0 + $0x274] sm:$0xf]
    %v4027 = vld [vmem:[%s0 + $0x278] sm:$0xf]
    %v4028 = vld [vmem:[%s0 + $0x27c] sm:$0xf]
    %v4029 = vld [vmem:[%s0 + $0x280] sm:$0xf]
    %v4030 = vld [vmem:[%s0 + $0x284] sm:$0xf]
    %v4031 = vld [vmem:[%s0 + $0x288] sm:$0xf]
    %v4032 = vld [vmem:[%s0 + $0x28c] sm:$0xf]
    %v4033 = vld [vmem:[%s0 + $0x290] sm:$0xf]
    %v4034 = vld [vmem:[%s0 + $0x294] sm:$0xf]
    %v4035 = vld [vmem:[%s0 + $0x298] sm:$0xf]
    %v4036 = vld [vmem:[%s0 + $0x29c] sm:$0xf]
    %v4037 = vld [vmem:[%s0 + $0x2a0] sm:$0xf]
    %v4038 = vld [vmem:[%s0 + $0x2a4] sm:$0xf]
    %v4039 = vld [vmem:[%s0 + $0x2a8] sm:$0xf]
    %v4040 = vld [vmem:[%s0 + $0x2ac] sm:$0xf]
    %v4041 = vld [vmem:[%s0 + $0x2b0] sm:$0xf]
    %v4042 = vld [vmem:[%s0 + $0x2b4] sm:$0xf]
    %v4043 = vld [vmem:[%s0 + $0x2b8] sm:$0xf]
    %v4044 = vld [vmem:[%s0 + $0x2bc] sm:$0xf]
    %v4045 = vld [vmem:[%s0 + $0x2c0] sm:$0xf]
    %v4046 = vld [vmem:[%s0 + $0x2c4] sm:$0xf]
    %v4047 = vld [vmem:[%s0 + $0x2c8] sm:$0xf]
    %v4048 = vld [vmem:[%s0 + $0x2cc] sm:$0xf]
    %v4049 = vunpack.c.l.bf16 %v4019
    %v4050 = vunpack.c.l.bf16 %v4020
    %v4051 = vunpack.c.l.bf16 %v4021
    %v4052 = vunpack.c.l.bf16 %v4022
    %v4053 = vunpack.c.l.bf16 %v4023
    %v4054 = vunpack.c.l.bf16 %v4024
    %v4055 = vunpack.c.l.bf16 %v4025
    %v4056 = vunpack.c.l.bf16 %v4026
    %v4057 = vunpack.c.l.bf16 %v4027
    %v4058 = vunpack.c.l.bf16 %v4028
    %v4059 = vunpack.c.l.bf16 %v4029
    %v4060 = vunpack.c.l.bf16 %v4030
    %v4061 = vunpack.c.l.bf16 %v4031
    %v4062 = vunpack.c.l.bf16 %v4032
    %v4063 = vunpack.c.l.bf16 %v4033
    %v4064 = vunpack.c.l.bf16 %v4034
    %v4065 = vunpack.c.l.bf16 %v4035
    %v4066 = vunpack.c.l.bf16 %v4036
    %v4067 = vunpack.c.l.bf16 %v4037
    %v4068 = vunpack.c.l.bf16 %v4038
    %v4069 = vunpack.c.l.bf16 %v4039
    %v4070 = vunpack.c.l.bf16 %v4040
    %v4071 = vunpack.c.l.bf16 %v4041
    %v4072 = vunpack.c.l.bf16 %v4042
    %v4073 = vunpack.c.l.bf16 %v4043
    %v4074 = vunpack.c.l.bf16 %v4044
    %v4075 = vunpack.c.l.bf16 %v4045
    %v4076 = vunpack.c.l.bf16 %v4046
    %v4077 = vunpack.c.l.bf16 %v4047
    %v4078 = vunpack.c.l.bf16 %v4048
    %v4079 = vmax.f32 %v4049, 0.0
    %v4080 = vmax.f32 %v4050, 0.0
    %v4081 = vmax.f32 %v4051, 0.0
    %v4082 = vmax.f32 %v4052, 0.0
    %v4083 = vmax.f32 %v4053, 0.0
    %v4084 = vmax.f32 %v4054, 0.0
    %v4085 = vmax.f32 %v4055, 0.0
    %v4086 = vmax.f32 %v4056, 0.0
    %v4087 = vmax.f32 %v4057, 0.0
    %v4088 = vmax.f32 %v4058, 0.0
    %v4089 = vmax.f32 %v4059, 0.0
    %v4090 = vmax.f32 %v4060, 0.0
    %v4091 = vmax.f32 %v4061, 0.0
    %v4092 = vmax.f32 %v4062, 0.0
    %v4093 = vmax.f32 %v4063, 0.0
    %v4094 = vmax.f32 %v4064, 0.0
    %v4095 = vmax.f32 %v4065, 0.0
    %v4096 = vmax.f32 %v4066, 0.0
    %v4097 = vmax.f32 %v4067, 0.0
    %v4098 = vmax.f32 %v4068, 0.0
    %v4099 = vmax.f32 %v4069, 0.0
    %v4100 = vmax.f32 %v4070, 0.0
    %v4101 = vmax.f32 %v4071, 0.0
    %v4102 = vmax.f32 %v4072, 0.0
    %v4103 = vmax.f32 %v4073, 0.0
    %v4104 = vmax.f32 %v4074, 0.0
    %v4105 = vmax.f32 %v4075, 0.0
    %v4106 = vmax.f32 %v4076, 0.0
    %v4107 = vmax.f32 %v4077, 0.0
    %v4108 = vmax.f32 %v4078, 0.0
    %v4109 = vpack.c.bf16 %v3961, %v3959
    %v4110 = vpack.c.bf16 %v3962, %v3960
    %v4111 = vpack.c.bf16 %v3965, %v3963
    %v4112 = vpack.c.bf16 %v3966, %v3964
    %v4113 = vpack.c.bf16 %v3969, %v3967
    %v4114 = vpack.c.bf16 %v3970, %v3968
    %v4115 = vpack.c.bf16 %v3973, %v3971
    %v4116 = vpack.c.bf16 %v3974, %v3972
    %v4117 = vpack.c.bf16 %v3977, %v3975
    %v4118 = vpack.c.bf16 %v3978, %v3976
    %v4119 = vpack.c.bf16 %v3981, %v3979
    %v4120 = vpack.c.bf16 %v3982, %v3980
    %v4121 = vpack.c.bf16 %v3985, %v3983
    %v4122 = vpack.c.bf16 %v3986, %v3984
    %v4123 = vpack.c.bf16 %v3989, %v3987
    %v4124 = vpack.c.bf16 %v3990, %v3988
    %v4125 = vpack.c.bf16 %v3993, %v3991
    %v4126 = vpack.c.bf16 %v3994, %v3992
    %v4127 = vpack.c.bf16 %v3997, %v3995
    %v4128 = vpack.c.bf16 %v3998, %v3996
    %v4129 = vpack.c.bf16 %v4001, %v3999
    %v4130 = vpack.c.bf16 %v4002, %v4000
    %v4131 = vpack.c.bf16 %v4005, %v4003
    %v4132 = vpack.c.bf16 %v4006, %v4004
    %v4133 = vpack.c.bf16 %v4009, %v4007
    %v4134 = vpack.c.bf16 %v4010, %v4008
    %v4135 = vpack.c.bf16 %v4013, %v4011
    %v4136 = vpack.c.bf16 %v4014, %v4012
    %v4137 = vpack.c.bf16 %v4017, %v4015
    %v4138 = vpack.c.bf16 %v4018, %v4016
    %v4139 = vld [vmem:[#allocation2] sm:$0xff]
    %v4140 = vld [vmem:[#allocation2 + $0x8] sm:$0xff]
    %v4141 = vld [vmem:[#allocation2 + $0x10] sm:$0xff]
    %v4142 = vld [vmem:[#allocation2 + $0x18] sm:$0xff]
    %v4143 = vld [vmem:[#allocation2 + $0x20] sm:$0xff]
    %v4144 = vld [vmem:[#allocation2 + $0x28] sm:$0xff]
    %v4145 = vld [vmem:[#allocation2 + $0x30] sm:$0xff]
    %v4146 = vld [vmem:[#allocation2 + $0x38] sm:$0xff]
    %v4147 = vld [vmem:[#allocation2 + $0x40] sm:$0xff]
    %v4148 = vld [vmem:[#allocation2 + $0x48] sm:$0xff]
    %v4149 = vld [vmem:[#allocation2 + $0x50] sm:$0xff]
    %v4150 = vld [vmem:[#allocation2 + $0x58] sm:$0xff]
    %v4151 = vld [vmem:[#allocation2 + $0x60] sm:$0xff]
    %v4152 = vld [vmem:[#allocation2 + $0x68] sm:$0xff]
    %v4153 = vld [vmem:[#allocation2 + $0x70] sm:$0xff]
    %v4154 = vld [vmem:[#allocation2 + $0x78] sm:$0xff]
    %v4155 = vld [vmem:[#allocation2 + $0x80] sm:$0xff]
    %v4156 = vld [vmem:[#allocation2 + $0x88] sm:$0xff]
    %v4157 = vld [vmem:[#allocation2 + $0x90] sm:$0xff]
    %v4158 = vld [vmem:[#allocation2 + $0x98] sm:$0xff]
    %v4159 = vld [vmem:[#allocation2 + $0xa0] sm:$0xff]
    %v4160 = vld [vmem:[#allocation2 + $0xa8] sm:$0xff]
    %v4161 = vld [vmem:[#allocation2 + $0xb0] sm:$0xff]
    %v4162 = vld [vmem:[#allocation2 + $0xb8] sm:$0xff]
    %v4163 = vld [vmem:[#allocation2 + $0xc0] sm:$0xff]
    %v4164 = vld [vmem:[#allocation2 + $0xc8] sm:$0xff]
    %v4165 = vld [vmem:[#allocation2 + $0xd0] sm:$0xff]
    %v4166 = vld [vmem:[#allocation2 + $0xd8] sm:$0xff]
    %v4167 = vld [vmem:[#allocation2 + $0xe0] sm:$0xff]
    %v4168 = vld [vmem:[#allocation2 + $0xe8] sm:$0xff]
    %v4169 = vld [vmem:[#allocation2 + $0xf0] sm:$0xff]
    %v4170 = vld [vmem:[#allocation2 + $0xf8] sm:$0xff]
    %v4171 = vld [vmem:[%s7] sm:$0x3]
    %v4173 = vlaneseq
    %v4174 = vshrl.u32 %v4173, 7
    %v4175 = vsub.s32 0, %v4174
    %v4176 = vrot.slane %v4171, %v4175
    %v4177 = vlaneseq
    %v4178 = vshrl.u32 %v4177, 7
    %v4179 = vsub.s32 1, %v4178
    %v4180 = vrot.slane %v4171, %v4179
    %v4215 = vunpack.c.l.b16 %v4139
    %v4216 = vunpack.c.h.b16 %v4139
    %v4217 = vunpack.c.l.b16 %v4140
    %v4218 = vunpack.c.h.b16 %v4140
    %v4219 = vunpack.c.l.b16 %v4141
    %v4220 = vunpack.c.h.b16 %v4141
    %v4221 = vunpack.c.l.b16 %v4142
    %v4222 = vunpack.c.h.b16 %v4142
    %v4223 = vunpack.c.l.b16 %v4143
    %v4224 = vunpack.c.h.b16 %v4143
    %v4225 = vunpack.c.l.b16 %v4144
    %v4226 = vunpack.c.h.b16 %v4144
    %v4227 = vunpack.c.l.b16 %v4145
    %v4228 = vunpack.c.h.b16 %v4145
    %v4229 = vunpack.c.l.b16 %v4146
    %v4230 = vunpack.c.h.b16 %v4146
    %v4231 = vunpack.c.l.b16 %v4147
    %v4232 = vunpack.c.h.b16 %v4147
    %v4233 = vunpack.c.l.b16 %v4148
    %v4234 = vunpack.c.h.b16 %v4148
    %v4235 = vunpack.c.l.b16 %v4149
    %v4236 = vunpack.c.h.b16 %v4149
    %v4237 = vunpack.c.l.b16 %v4150
    %v4238 = vunpack.c.h.b16 %v4150
    %v4239 = vunpack.c.l.b16 %v4151
    %v4240 = vunpack.c.h.b16 %v4151
    %v4241 = vunpack.c.l.b16 %v4152
    %v4242 = vunpack.c.h.b16 %v4152
    %v4243 = vunpack.c.l.b16 %v4153
    %v4244 = vunpack.c.h.b16 %v4153
    %v4245 = vunpack.c.l.b16 %v4154
    %v4246 = vunpack.c.h.b16 %v4154
    %v4247 = vunpack.c.l.b16 %v4155
    %v4248 = vunpack.c.h.b16 %v4155
    %v4249 = vunpack.c.l.b16 %v4156
    %v4250 = vunpack.c.h.b16 %v4156
    %v4251 = vunpack.c.l.b16 %v4157
    %v4252 = vunpack.c.h.b16 %v4157
    %v4253 = vunpack.c.l.b16 %v4158
    %v4254 = vunpack.c.h.b16 %v4158
    %v4255 = vunpack.c.l.b16 %v4159
    %v4256 = vunpack.c.h.b16 %v4159
    %v4257 = vunpack.c.l.b16 %v4160
    %v4258 = vunpack.c.h.b16 %v4160
    %v4259 = vunpack.c.l.b16 %v4161
    %v4260 = vunpack.c.h.b16 %v4161
    %v4261 = vunpack.c.l.b16 %v4162
    %v4262 = vunpack.c.h.b16 %v4162
    %v4263 = vunpack.c.l.b16 %v4163
    %v4264 = vunpack.c.h.b16 %v4163
    %v4265 = vunpack.c.l.b16 %v4164
    %v4266 = vunpack.c.h.b16 %v4164
    %v4267 = vunpack.c.l.b16 %v4165
    %v4268 = vunpack.c.h.b16 %v4165
    %v4269 = vunpack.c.l.b16 %v4166
    %v4270 = vunpack.c.h.b16 %v4166
    %v4271 = vunpack.c.l.b16 %v4167
    %v4272 = vunpack.c.h.b16 %v4167
    %v4273 = vunpack.c.l.b16 %v4168
    %v4274 = vunpack.c.h.b16 %v4168
    %v4275 = vunpack.c.l.b16 %v4169
    %v4276 = vunpack.c.h.b16 %v4169
    %v4277 = vunpack.c.l.b16 %v4170
    %v4278 = vunpack.c.h.b16 %v4170
    %v4279 = vpack.c.b16 %v4217, %v4215
    %v4280 = vpack.c.b16 %v4218, %v4216
    %v4281 = vpack.c.b16 %v4221, %v4219
    %v4282 = vpack.c.b16 %v4222, %v4220
    %v4283 = vpack.c.b16 %v4225, %v4223
    %v4284 = vpack.c.b16 %v4226, %v4224
    %v4285 = vpack.c.b16 %v4229, %v4227
    %v4286 = vpack.c.b16 %v4230, %v4228
    %v4287 = vpack.c.b16 %v4233, %v4231
    %v4288 = vpack.c.b16 %v4234, %v4232
    %v4289 = vpack.c.b16 %v4237, %v4235
    %v4290 = vpack.c.b16 %v4238, %v4236
    %v4291 = vpack.c.b16 %v4241, %v4239
    %v4292 = vpack.c.b16 %v4242, %v4240
    %v4293 = vpack.c.b16 %v4245, %v4243
    %v4294 = vpack.c.b16 %v4246, %v4244
    %v4295 = vpack.c.b16 %v4249, %v4247
    %v4296 = vpack.c.b16 %v4250, %v4248
    %v4297 = vpack.c.b16 %v4253, %v4251
    %v4298 = vpack.c.b16 %v4254, %v4252
    %v4299 = vpack.c.b16 %v4257, %v4255
    %v4300 = vpack.c.b16 %v4258, %v4256
    %v4301 = vpack.c.b16 %v4261, %v4259
    %v4302 = vpack.c.b16 %v4262, %v4260
    %v4303 = vpack.c.b16 %v4265, %v4263
    %v4304 = vpack.c.b16 %v4266, %v4264
    %v4305 = vpack.c.b16 %v4269, %v4267
    %v4306 = vpack.c.b16 %v4270, %v4268
    %v4307 = vpack.c.b16 %v4273, %v4271
    %v4308 = vpack.c.b16 %v4274, %v4272
    %v4309 = vpack.c.b16 %v4277, %v4275
    %v4310 = vpack.c.b16 %v4278, %v4276
    %4343 = vmatprep.subr.bf16.mxu0 %v4280
    %4344 = vmatpush1.bf16.msra.mxu0 %v4279
    %4345 = vmatprep.subr.bf16.mxu0 %v4282
    %4346 = vmatpush1.bf16.msra.mxu0 %v4281
    %4347 = vmatprep.subr.bf16.mxu0 %v4284
    %4348 = vmatpush1.bf16.msra.mxu0 %v4283
    %4349 = vmatprep.subr.bf16.mxu0 %v4286
    %4350 = vmatpush1.bf16.msra.mxu0 %v4285
    %4351 = vmatprep.subr.bf16.mxu0 %v4288
    %4352 = vmatpush1.bf16.msra.mxu0 %v4287
    %4353 = vmatprep.subr.bf16.mxu0 %v4290
    %4354 = vmatpush1.bf16.msra.mxu0 %v4289
    %4355 = vmatprep.subr.bf16.mxu0 %v4292
    %4356 = vmatpush1.bf16.msra.mxu0 %v4291
    %4357 = vmatprep.subr.bf16.mxu0 %v4294
    %4358 = vmatpush1.bf16.msra.mxu0 %v4293
    %4359 = vmatprep.subr.bf16.mxu0 %v4296
    %4360 = vmatpush1.bf16.msra.mxu0 %v4295
    %4361 = vmatprep.subr.bf16.mxu0 %v4298
    %4362 = vmatpush1.bf16.msra.mxu0 %v4297
    %4363 = vmatprep.subr.bf16.mxu0 %v4300
    %4364 = vmatpush1.bf16.msra.mxu0 %v4299
    %4365 = vmatprep.subr.bf16.mxu0 %v4302
    %4366 = vmatpush1.bf16.msra.mxu0 %v4301
    %4367 = vmatprep.subr.bf16.mxu0 %v4304
    %4368 = vmatpush1.bf16.msra.mxu0 %v4303
    %4369 = vmatprep.subr.bf16.mxu0 %v4306
    %4370 = vmatpush1.bf16.msra.mxu0 %v4305
    %4371 = vmatprep.subr.bf16.mxu0 %v4308
    %4372 = vmatpush1.bf16.msra.mxu0 %v4307
    %4373 = vmatprep.subr.bf16.mxu0 %v4310
    %4374 = vmatpush1.bf16.msra.mxu0 %v4309
    %4375 = vmatprep.mubr.bf16.mxu0 %v4110
    %4376 = vmatmul.mubr.bf16.gmra.mrb[0].mxu0 %v4109
    %v4377 = vpop.f32.mrb[0].mxu0
    %v4378 = vadd.f32 %v4176, %v4377
    %v4379 = vpop.f32.mrb[0].mxu0
    %v4380 = vadd.f32 %v4180, %v4379
    %v4381 = vpop.f32.mrb[0].mxu0
    %v4382 = vadd.f32 %v4176, %v4381
    %v4383 = vpop.f32.mrb[0].mxu0
    %v4384 = vadd.f32 %v4180, %v4383
    %4385 = vmatprep.mubr.bf16.mxu0 %v4112
    %4386 = vmatmul.mubr.bf16.gmra.mrb[0].mxu0 %v4111
    %v4387 = vpop.f32.mrb[0].mxu0
    %v4388 = vadd.f32 %v4176, %v4387
    %v4389 = vpop.f32.mrb[0].mxu0
    %v4390 = vadd.f32 %v4180, %v4389
    %v4391 = vpop.f32.mrb[0].mxu0
    %v4392 = vadd.f32 %v4176, %v4391
    %v4393 = vpop.f32.mrb[0].mxu0
    %v4394 = vadd.f32 %v4180, %v4393
    %4395 = vmatprep.mubr.bf16.mxu0 %v4114
    %4396 = vmatmul.mubr.bf16.gmra.mrb[0].mxu0 %v4113
    %v4397 = vpop.f32.mrb[0].mxu0
    %v4398 = vadd.f32 %v4176, %v4397
    %v4399 = vpop.f32.mrb[0].mxu0
    %v4400 = vadd.f32 %v4180, %v4399
    %v4401 = vpop.f32.mrb[0].mxu0
    %v4402 = vadd.f32 %v4176, %v4401
    %v4403 = vpop.f32.mrb[0].mxu0
    %v4404 = vadd.f32 %v4180, %v4403
    %4405 = vmatprep.mubr.bf16.mxu0 %v4116
    %4406 = vmatmul.mubr.bf16.gmra.mrb[0].mxu0 %v4115
    %v4407 = vpop.f32.mrb[0].mxu0
    %v4408 = vadd.f32 %v4176, %v4407
    %v4409 = vpop.f32.mrb[0].mxu0
    %v4410 = vadd.f32 %v4180, %v4409
    %v4411 = vpop.f32.mrb[0].mxu0
    %v4412 = vadd.f32 %v4176, %v4411
    %v4413 = vpop.f32.mrb[0].mxu0
    %v4414 = vadd.f32 %v4180, %v4413
    %4415 = vmatprep.mubr.bf16.mxu0 %v4118
    %4416 = vmatmul.mubr.bf16.gmra.mrb[0].mxu0 %v4117
    %v4417 = vpop.f32.mrb[0].mxu0
    %v4418 = vadd.f32 %v4176, %v4417
    %v4419 = vpop.f32.mrb[0].mxu0
    %v4420 = vadd.f32 %v4180, %v4419
    %v4421 = vpop.f32.mrb[0].mxu0
    %v4422 = vadd.f32 %v4176, %v4421
    %v4423 = vpop.f32.mrb[0].mxu0
    %v4424 = vadd.f32 %v4180, %v4423
    %4425 = vmatprep.mubr.bf16.mxu0 %v4120
    %4426 = vmatmul.mubr.bf16.gmra.mrb[0].mxu0 %v4119
    %v4427 = vpop.f32.mrb[0].mxu0
    %v4428 = vadd.f32 %v4176, %v4427
    %v4429 = vpop.f32.mrb[0].mxu0
    %v4430 = vadd.f32 %v4180, %v4429
    %v4431 = vpop.f32.mrb[0].mxu0
    %v4432 = vadd.f32 %v4176, %v4431
    %v4433 = vpop.f32.mrb[0].mxu0
    %v4434 = vadd.f32 %v4180, %v4433
    %4435 = vmatprep.mubr.bf16.mxu0 %v4122
    %4436 = vmatmul.mubr.bf16.gmra.mrb[0].mxu0 %v4121
    %v4437 = vpop.f32.mrb[0].mxu0
    %v4438 = vadd.f32 %v4176, %v4437
    %v4439 = vpop.f32.mrb[0].mxu0
    %v4440 = vadd.f32 %v4180, %v4439
    %v4441 = vpop.f32.mrb[0].mxu0
    %v4442 = vadd.f32 %v4176, %v4441
    %v4443 = vpop.f32.mrb[0].mxu0
    %v4444 = vadd.f32 %v4180, %v4443
    %4445 = vmatprep.mubr.bf16.mxu0 %v4124
    %4446 = vmatmul.mubr.bf16.gmra.mrb[0].mxu0 %v4123
    %v4447 = vpop.f32.mrb[0].mxu0
    %v4448 = vadd.f32 %v4176, %v4447
    %v4449 = vpop.f32.mrb[0].mxu0
    %v4450 = vadd.f32 %v4180, %v4449
    %v4451 = vpop.f32.mrb[0].mxu0
    %v4452 = vadd.f32 %v4176, %v4451
    %v4453 = vpop.f32.mrb[0].mxu0
    %v4454 = vadd.f32 %v4180, %v4453
    %4455 = vmatprep.mubr.bf16.mxu0 %v4126
    %4456 = vmatmul.mubr.bf16.gmra.mrb[0].mxu0 %v4125
    %v4457 = vpop.f32.mrb[0].mxu0
    %v4458 = vadd.f32 %v4176, %v4457
    %v4459 = vpop.f32.mrb[0].mxu0
    %v4460 = vadd.f32 %v4180, %v4459
    %v4461 = vpop.f32.mrb[0].mxu0
    %v4462 = vadd.f32 %v4176, %v4461
    %v4463 = vpop.f32.mrb[0].mxu0
    %v4464 = vadd.f32 %v4180, %v4463
    %4465 = vmatprep.mubr.bf16.mxu0 %v4128
    %4466 = vmatmul.mubr.bf16.gmra.mrb[0].mxu0 %v4127
    %v4467 = vpop.f32.mrb[0].mxu0
    %v4468 = vadd.f32 %v4176, %v4467
    %v4469 = vpop.f32.mrb[0].mxu0
    %v4470 = vadd.f32 %v4180, %v4469
    %v4471 = vpop.f32.mrb[0].mxu0
    %v4472 = vadd.f32 %v4176, %v4471
    %v4473 = vpop.f32.mrb[0].mxu0
    %v4474 = vadd.f32 %v4180, %v4473
    %4475 = vmatprep.mubr.bf16.mxu0 %v4130
    %4476 = vmatmul.mubr.bf16.gmra.mrb[0].mxu0 %v4129
    %v4477 = vpop.f32.mrb[0].mxu0
    %v4478 = vadd.f32 %v4176, %v4477
    %v4479 = vpop.f32.mrb[0].mxu0
    %v4480 = vadd.f32 %v4180, %v4479
    %v4481 = vpop.f32.mrb[0].mxu0
    %v4482 = vadd.f32 %v4176, %v4481
    %v4483 = vpop.f32.mrb[0].mxu0
    %v4484 = vadd.f32 %v4180, %v4483
    %4485 = vmatprep.mubr.bf16.mxu0 %v4132
    %4486 = vmatmul.mubr.bf16.gmra.mrb[0].mxu0 %v4131
    %v4487 = vpop.f32.mrb[0].mxu0
    %v4488 = vadd.f32 %v4176, %v4487
    %v4489 = vpop.f32.mrb[0].mxu0
    %v4490 = vadd.f32 %v4180, %v4489
    %v4491 = vpop.f32.mrb[0].mxu0
    %v4492 = vadd.f32 %v4176, %v4491
    %v4493 = vpop.f32.mrb[0].mxu0
    %v4494 = vadd.f32 %v4180, %v4493
    %4495 = vmatprep.mubr.bf16.mxu0 %v4134
    %4496 = vmatmul.mubr.bf16.gmra.mrb[0].mxu0 %v4133
    %v4497 = vpop.f32.mrb[0].mxu0
    %v4498 = vadd.f32 %v4176, %v4497
    %v4499 = vpop.f32.mrb[0].mxu0
    %v4500 = vadd.f32 %v4180, %v4499
    %v4501 = vpop.f32.mrb[0].mxu0
    %v4502 = vadd.f32 %v4176, %v4501
    %v4503 = vpop.f32.mrb[0].mxu0
    %v4504 = vadd.f32 %v4180, %v4503
    %4505 = vmatprep.mubr.bf16.mxu0 %v4136
    %4506 = vmatmul.mubr.bf16.gmra.mrb[0].mxu0 %v4135
    %v4507 = vpop.f32.mrb[0].mxu0
    %v4508 = vadd.f32 %v4176, %v4507
    %v4509 = vpop.f32.mrb[0].mxu0
    %v4510 = vadd.f32 %v4180, %v4509
    %v4511 = vpop.f32.mrb[0].mxu0
    %v4512 = vadd.f32 %v4176, %v4511
    %v4513 = vpop.f32.mrb[0].mxu0
    %v4514 = vadd.f32 %v4180, %v4513
    %4515 = vmatprep.mubr.bf16.mxu0 %v4138
    %4516 = vmatmul.mubr.bf16.gmra.mrb[0].mxu0 %v4137
    %v4517 = vpop.f32.mrb[0].mxu0
    %v4518 = vadd.f32 %v4176, %v4517
    %v4519 = vpop.f32.mrb[0].mxu0
    %v4520 = vadd.f32 %v4180, %v4519
    %v4521 = vpop.f32.mrb[0].mxu0
    %v4522 = vadd.f32 %v4176, %v4521
    %v4523 = vpop.f32.mrb[0].mxu0
    %v4524 = vadd.f32 %v4180, %v4523
    %4525 = vdwg.mxu0
    %v4526 = vld [vmem:[%s6] ss:$4 sm:$0x3]
    %4528 = vset.pattern.permute.xlu0 0
    %4529 = vperm.xlu0 %4528, %v4079
    %v4530 = vpop.permute.xlu0 %4529
    %4533 = vset.pattern.permute.xlu0 0
    %4534 = vperm.xlu0 %4533, %v4080
    %v4535 = vpop.permute.xlu0 %4534
    %4538 = vset.pattern.permute.xlu0 0
    %4539 = vperm.xlu0 %4538, %v4081
    %v4540 = vpop.permute.xlu0 %4539
    %4543 = vset.pattern.permute.xlu0 0
    %4544 = vperm.xlu0 %4543, %v4082
    %v4545 = vpop.permute.xlu0 %4544
    %4548 = vset.pattern.permute.xlu0 0
    %4549 = vperm.xlu0 %4548, %v4083
    %v4550 = vpop.permute.xlu0 %4549
    %4553 = vset.pattern.permute.xlu0 0
    %4554 = vperm.xlu0 %4553, %v4084
    %v4555 = vpop.permute.xlu0 %4554
    %4558 = vset.pattern.permute.xlu0 0
    %4559 = vperm.xlu0 %4558, %v4085
    %v4560 = vpop.permute.xlu0 %4559
    %4563 = vset.pattern.permute.xlu0 0
    %4564 = vperm.xlu0 %4563, %v4086
    %v4565 = vpop.permute.xlu0 %4564
    %4568 = vset.pattern.permute.xlu0 0
    %4569 = vperm.xlu0 %4568, %v4087
    %v4570 = vpop.permute.xlu0 %4569
    %4573 = vset.pattern.permute.xlu0 0
    %4574 = vperm.xlu0 %4573, %v4088
    %v4575 = vpop.permute.xlu0 %4574
    %4578 = vset.pattern.permute.xlu0 0
    %4579 = vperm.xlu0 %4578, %v4089
    %v4580 = vpop.permute.xlu0 %4579
    %4583 = vset.pattern.permute.xlu0 0
    %4584 = vperm.xlu0 %4583, %v4090
    %v4585 = vpop.permute.xlu0 %4584
    %4588 = vset.pattern.permute.xlu0 0
    %4589 = vperm.xlu0 %4588, %v4091
    %v4590 = vpop.permute.xlu0 %4589
    %4593 = vset.pattern.permute.xlu0 0
    %4594 = vperm.xlu0 %4593, %v4092
    %v4595 = vpop.permute.xlu0 %4594
    %4598 = vset.pattern.permute.xlu0 0
    %4599 = vperm.xlu0 %4598, %v4093
    %v4600 = vpop.permute.xlu0 %4599
    %4603 = vset.pattern.permute.xlu0 0
    %4604 = vperm.xlu0 %4603, %v4094
    %v4605 = vpop.permute.xlu0 %4604
    %4608 = vset.pattern.permute.xlu0 0
    %4609 = vperm.xlu0 %4608, %v4095
    %v4610 = vpop.permute.xlu0 %4609
    %4613 = vset.pattern.permute.xlu0 0
    %4614 = vperm.xlu0 %4613, %v4096
    %v4615 = vpop.permute.xlu0 %4614
    %4618 = vset.pattern.permute.xlu0 0
    %4619 = vperm.xlu0 %4618, %v4097
    %v4620 = vpop.permute.xlu0 %4619
    %4623 = vset.pattern.permute.xlu0 0
    %4624 = vperm.xlu0 %4623, %v4098
    %v4625 = vpop.permute.xlu0 %4624
    %4628 = vset.pattern.permute.xlu0 0
    %4629 = vperm.xlu0 %4628, %v4099
    %v4630 = vpop.permute.xlu0 %4629
    %4633 = vset.pattern.permute.xlu0 0
    %4634 = vperm.xlu0 %4633, %v4100
    %v4635 = vpop.permute.xlu0 %4634
    %4638 = vset.pattern.permute.xlu0 0
    %4639 = vperm.xlu0 %4638, %v4101
    %v4640 = vpop.permute.xlu0 %4639
    %4643 = vset.pattern.permute.xlu0 0
    %4644 = vperm.xlu0 %4643, %v4102
    %v4645 = vpop.permute.xlu0 %4644
    %4648 = vset.pattern.permute.xlu0 0
    %4649 = vperm.xlu0 %4648, %v4103
    %v4650 = vpop.permute.xlu0 %4649
    %4653 = vset.pattern.permute.xlu0 0
    %4654 = vperm.xlu0 %4653, %v4104
    %v4655 = vpop.permute.xlu0 %4654
    %4658 = vset.pattern.permute.xlu0 0
    %4659 = vperm.xlu0 %4658, %v4105
    %v4660 = vpop.permute.xlu0 %4659
    %4663 = vset.pattern.permute.xlu0 0
    %4664 = vperm.xlu0 %4663, %v4106
    %v4665 = vpop.permute.xlu0 %4664
    %4668 = vset.pattern.permute.xlu0 0
    %4669 = vperm.xlu0 %4668, %v4107
    %v4670 = vpop.permute.xlu0 %4669
    %4673 = vset.pattern.permute.xlu0 0
    %4674 = vperm.xlu0 %4673, %v4108
    %v4675 = vpop.permute.xlu0 %4674
    %v4678 = vlaneseq
    %v4679 = vshrl.u32 %v4678, 7
    %v4680 = vsub.s32 0, %v4679
    %v4681 = vrot.slane %v4526, %v4680
    %v4682 = vlaneseq
    %v4683 = vshrl.u32 %v4682, 7
    %v4684 = vsub.s32 1, %v4683
    %v4685 = vrot.slane %v4526, %v4684
    %v4688 = vmul.f32 %v4530, %v4681
    %v4689 = vmul.f32 %v4530, %v4685
    %v4690 = vmul.f32 %v4535, %v4681
    %v4691 = vmul.f32 %v4535, %v4685
    %v4692 = vmul.f32 %v4540, %v4681
    %v4693 = vmul.f32 %v4540, %v4685
    %v4694 = vmul.f32 %v4545, %v4681
    %v4695 = vmul.f32 %v4545, %v4685
    %v4696 = vmul.f32 %v4550, %v4681
    %v4697 = vmul.f32 %v4550, %v4685
    %v4698 = vmul.f32 %v4555, %v4681
    %v4699 = vmul.f32 %v4555, %v4685
    %v4700 = vmul.f32 %v4560, %v4681
    %v4701 = vmul.f32 %v4560, %v4685
    %v4702 = vmul.f32 %v4565, %v4681
    %v4703 = vmul.f32 %v4565, %v4685
    %v4704 = vmul.f32 %v4570, %v4681
    %v4705 = vmul.f32 %v4570, %v4685
    %v4706 = vmul.f32 %v4575, %v4681
    %v4707 = vmul.f32 %v4575, %v4685
    %v4708 = vmul.f32 %v4580, %v4681
    %v4709 = vmul.f32 %v4580, %v4685
    %v4710 = vmul.f32 %v4585, %v4681
    %v4711 = vmul.f32 %v4585, %v4685
    %v4712 = vmul.f32 %v4590, %v4681
    %v4713 = vmul.f32 %v4590, %v4685
    %v4714 = vmul.f32 %v4595, %v4681
    %v4715 = vmul.f32 %v4595, %v4685
    %v4716 = vmul.f32 %v4600, %v4681
    %v4717 = vmul.f32 %v4600, %v4685
    %v4718 = vmul.f32 %v4605, %v4681
    %v4719 = vmul.f32 %v4605, %v4685
    %v4720 = vmul.f32 %v4610, %v4681
    %v4721 = vmul.f32 %v4610, %v4685
    %v4722 = vmul.f32 %v4615, %v4681
    %v4723 = vmul.f32 %v4615, %v4685
    %v4724 = vmul.f32 %v4620, %v4681
    %v4725 = vmul.f32 %v4620, %v4685
    %v4726 = vmul.f32 %v4625, %v4681
    %v4727 = vmul.f32 %v4625, %v4685
    %v4728 = vmul.f32 %v4630, %v4681
    %v4729 = vmul.f32 %v4630, %v4685
    %v4730 = vmul.f32 %v4635, %v4681
    %v4731 = vmul.f32 %v4635, %v4685
    %v4732 = vmul.f32 %v4640, %v4681
    %v4733 = vmul.f32 %v4640, %v4685
    %v4734 = vmul.f32 %v4645, %v4681
    %v4735 = vmul.f32 %v4645, %v4685
    %v4736 = vmul.f32 %v4650, %v4681
    %v4737 = vmul.f32 %v4650, %v4685
    %v4738 = vmul.f32 %v4655, %v4681
    %v4739 = vmul.f32 %v4655, %v4685
    %v4740 = vmul.f32 %v4660, %v4681
    %v4741 = vmul.f32 %v4660, %v4685
    %v4742 = vmul.f32 %v4665, %v4681
    %v4743 = vmul.f32 %v4665, %v4685
    %v4744 = vmul.f32 %v4670, %v4681
    %v4745 = vmul.f32 %v4670, %v4685
    %v4746 = vmul.f32 %v4675, %v4681
    %v4747 = vmul.f32 %v4675, %v4685
    %v4748 = vadd.f32 %v4378, %v4688
    %v4749 = vadd.f32 %v4380, %v4689
    %v4750 = vadd.f32 %v4382, %v4690
    %v4751 = vadd.f32 %v4384, %v4691
    %v4752 = vadd.f32 %v4388, %v4692
    %v4753 = vadd.f32 %v4390, %v4693
    %v4754 = vadd.f32 %v4392, %v4694
    %v4755 = vadd.f32 %v4394, %v4695
    %v4756 = vadd.f32 %v4398, %v4696
    %v4757 = vadd.f32 %v4400, %v4697
    %v4758 = vadd.f32 %v4402, %v4698
    %v4759 = vadd.f32 %v4404, %v4699
    %v4760 = vadd.f32 %v4408, %v4700
    %v4761 = vadd.f32 %v4410, %v4701
    %v4762 = vadd.f32 %v4412, %v4702
    %v4763 = vadd.f32 %v4414, %v4703
    %v4764 = vadd.f32 %v4418, %v4704
    %v4765 = vadd.f32 %v4420, %v4705
    %v4766 = vadd.f32 %v4422, %v4706
    %v4767 = vadd.f32 %v4424, %v4707
    %v4768 = vadd.f32 %v4428, %v4708
    %v4769 = vadd.f32 %v4430, %v4709
    %v4770 = vadd.f32 %v4432, %v4710
    %v4771 = vadd.f32 %v4434, %v4711
    %v4772 = vadd.f32 %v4438, %v4712
    %v4773 = vadd.f32 %v4440, %v4713
    %v4774 = vadd.f32 %v4442, %v4714
    %v4775 = vadd.f32 %v4444, %v4715
    %v4776 = vadd.f32 %v4448, %v4716
    %v4777 = vadd.f32 %v4450, %v4717
    %v4778 = vadd.f32 %v4452, %v4718
    %v4779 = vadd.f32 %v4454, %v4719
    %v4780 = vadd.f32 %v4458, %v4720
    %v4781 = vadd.f32 %v4460, %v4721
    %v4782 = vadd.f32 %v4462, %v4722
    %v4783 = vadd.f32 %v4464, %v4723
    %v4784 = vadd.f32 %v4468, %v4724
    %v4785 = vadd.f32 %v4470, %v4725
    %v4786 = vadd.f32 %v4472, %v4726
    %v4787 = vadd.f32 %v4474, %v4727
    %v4788 = vadd.f32 %v4478, %v4728
    %v4789 = vadd.f32 %v4480, %v4729
    %v4790 = vadd.f32 %v4482, %v4730
    %v4791 = vadd.f32 %v4484, %v4731
    %v4792 = vadd.f32 %v4488, %v4732
    %v4793 = vadd.f32 %v4490, %v4733
    %v4794 = vadd.f32 %v4492, %v4734
    %v4795 = vadd.f32 %v4494, %v4735
    %v4796 = vadd.f32 %v4498, %v4736
    %v4797 = vadd.f32 %v4500, %v4737
    %v4798 = vadd.f32 %v4502, %v4738
    %v4799 = vadd.f32 %v4504, %v4739
    %v4800 = vadd.f32 %v4508, %v4740
    %v4801 = vadd.f32 %v4510, %v4741
    %v4802 = vadd.f32 %v4512, %v4742
    %v4803 = vadd.f32 %v4514, %v4743
    %v4804 = vadd.f32 %v4518, %v4744
    %v4805 = vadd.f32 %v4520, %v4745
    %v4806 = vadd.f32 %v4522, %v4746
    %v4807 = vadd.f32 %v4524, %v4747
    %s4808 = scalar_lea.vmem %s6, 1
    %v4809 = vld [vmem:[%s4808] ss:$4 sm:$0x3]
    %4810 = vset.pattern.permute.xlu0 1
    %4811 = vperm.xlu0 %4810, %v4079
    %v4812 = vpop.permute.xlu0 %4811
    %4814 = vset.pattern.permute.xlu0 1
    %4815 = vperm.xlu0 %4814, %v4080
    %v4816 = vpop.permute.xlu0 %4815
    %4818 = vset.pattern.permute.xlu0 1
    %4819 = vperm.xlu0 %4818, %v4081
    %v4820 = vpop.permute.xlu0 %4819
    %4822 = vset.pattern.permute.xlu0 1
    %4823 = vperm.xlu0 %4822, %v4082
    %v4824 = vpop.permute.xlu0 %4823
    %4826 = vset.pattern.permute.xlu0 1
    %4827 = vperm.xlu0 %4826, %v4083
    %v4828 = vpop.permute.xlu0 %4827
    %4830 = vset.pattern.permute.xlu0 1
    %4831 = vperm.xlu0 %4830, %v4084
    %v4832 = vpop.permute.xlu0 %4831
    %4834 = vset.pattern.permute.xlu0 1
    %4835 = vperm.xlu0 %4834, %v4085
    %v4836 = vpop.permute.xlu0 %4835
    %4838 = vset.pattern.permute.xlu0 1
    %4839 = vperm.xlu0 %4838, %v4086
    %v4840 = vpop.permute.xlu0 %4839
    %4842 = vset.pattern.permute.xlu0 1
    %4843 = vperm.xlu0 %4842, %v4087
    %v4844 = vpop.permute.xlu0 %4843
    %4846 = vset.pattern.permute.xlu0 1
    %4847 = vperm.xlu0 %4846, %v4088
    %v4848 = vpop.permute.xlu0 %4847
    %4850 = vset.pattern.permute.xlu0 1
    %4851 = vperm.xlu0 %4850, %v4089
    %v4852 = vpop.permute.xlu0 %4851
    %4854 = vset.pattern.permute.xlu0 1
    %4855 = vperm.xlu0 %4854, %v4090
    %v4856 = vpop.permute.xlu0 %4855
    %4858 = vset.pattern.permute.xlu0 1
    %4859 = vperm.xlu0 %4858, %v4091
    %v4860 = vpop.permute.xlu0 %4859
    %4862 = vset.pattern.permute.xlu0 1
    %4863 = vperm.xlu0 %4862, %v4092
    %v4864 = vpop.permute.xlu0 %4863
    %4866 = vset.pattern.permute.xlu0 1
    %4867 = vperm.xlu0 %4866, %v4093
    %v4868 = vpop.permute.xlu0 %4867
    %4870 = vset.pattern.permute.xlu0 1
    %4871 = vperm.xlu0 %4870, %v4094
    %v4872 = vpop.permute.xlu0 %4871
    %4874 = vset.pattern.permute.xlu0 1
    %4875 = vperm.xlu0 %4874, %v4095
    %v4876 = vpop.permute.xlu0 %4875
    %4878 = vset.pattern.permute.xlu0 1
    %4879 = vperm.xlu0 %4878, %v4096
    %v4880 = vpop.permute.xlu0 %4879
    %4882 = vset.pattern.permute.xlu0 1
    %4883 = vperm.xlu0 %4882, %v4097
    %v4884 = vpop.permute.xlu0 %4883
    %4886 = vset.pattern.permute.xlu0 1
    %4887 = vperm.xlu0 %4886, %v4098
    %v4888 = vpop.permute.xlu0 %4887
    %4890 = vset.pattern.permute.xlu0 1
    %4891 = vperm.xlu0 %4890, %v4099
    %v4892 = vpop.permute.xlu0 %4891
    %4894 = vset.pattern.permute.xlu0 1
    %4895 = vperm.xlu0 %4894, %v4100
    %v4896 = vpop.permute.xlu0 %4895
    %4898 = vset.pattern.permute.xlu0 1
    %4899 = vperm.xlu0 %4898, %v4101
    %v4900 = vpop.permute.xlu0 %4899
    %4902 = vset.pattern.permute.xlu0 1
    %4903 = vperm.xlu0 %4902, %v4102
    %v4904 = vpop.permute.xlu0 %4903
    %4906 = vset.pattern.permute.xlu0 1
    %4907 = vperm.xlu0 %4906, %v4103
    %v4908 = vpop.permute.xlu0 %4907
    %4910 = vset.pattern.permute.xlu0 1
    %4911 = vperm.xlu0 %4910, %v4104
    %v4912 = vpop.permute.xlu0 %4911
    %4914 = vset.pattern.permute.xlu0 1
    %4915 = vperm.xlu0 %4914, %v4105
    %v4916 = vpop.permute.xlu0 %4915
    %4918 = vset.pattern.permute.xlu0 1
    %4919 = vperm.xlu0 %4918, %v4106
    %v4920 = vpop.permute.xlu0 %4919
    %4922 = vset.pattern.permute.xlu0 1
    %4923 = vperm.xlu0 %4922, %v4107
    %v4924 = vpop.permute.xlu0 %4923
    %4926 = vset.pattern.permute.xlu0 1
    %4927 = vperm.xlu0 %4926, %v4108
    %v4928 = vpop.permute.xlu0 %4927
    %v4931 = vlaneseq
    %v4932 = vshrl.u32 %v4931, 7
    %v4933 = vsub.s32 0, %v4932
    %v4934 = vrot.slane %v4809, %v4933
    %v4935 = vlaneseq
    %v4936 = vshrl.u32 %v4935, 7
    %v4937 = vsub.s32 1, %v4936
    %v4938 = vrot.slane %v4809, %v4937
    %v4941 = vmul.f32 %v4812, %v4934
    %v4942 = vmul.f32 %v4812, %v4938
    %v4943 = vmul.f32 %v4816, %v4934
    %v4944 = vmul.f32 %v4816, %v4938
    %v4945 = vmul.f32 %v4820, %v4934
    %v4946 = vmul.f32 %v4820, %v4938
    %v4947 = vmul.f32 %v4824, %v4934
    %v4948 = vmul.f32 %v4824, %v4938
    %v4949 = vmul.f32 %v4828, %v4934
    %v4950 = vmul.f32 %v4828, %v4938
    %v4951 = vmul.f32 %v4832, %v4934
    %v4952 = vmul.f32 %v4832, %v4938
    %v4953 = vmul.f32 %v4836, %v4934
    %v4954 = vmul.f32 %v4836, %v4938
    %v4955 = vmul.f32 %v4840, %v4934
    %v4956 = vmul.f32 %v4840, %v4938
    %v4957 = vmul.f32 %v4844, %v4934
    %v4958 = vmul.f32 %v4844, %v4938
    %v4959 = vmul.f32 %v4848, %v4934
    %v4960 = vmul.f32 %v4848, %v4938
    %v4961 = vmul.f32 %v4852, %v4934
    %v4962 = vmul.f32 %v4852, %v4938
    %v4963 = vmul.f32 %v4856, %v4934
    %v4964 = vmul.f32 %v4856, %v4938
    %v4965 = vmul.f32 %v4860, %v4934
    %v4966 = vmul.f32 %v4860, %v4938
    %v4967 = vmul.f32 %v4864, %v4934
    %v4968 = vmul.f32 %v4864, %v4938
    %v4969 = vmul.f32 %v4868, %v4934
    %v4970 = vmul.f32 %v4868, %v4938
    %v4971 = vmul.f32 %v4872, %v4934
    %v4972 = vmul.f32 %v4872, %v4938
    %v4973 = vmul.f32 %v4876, %v4934
    %v4974 = vmul.f32 %v4876, %v4938
    %v4975 = vmul.f32 %v4880, %v4934
    %v4976 = vmul.f32 %v4880, %v4938
    %v4977 = vmul.f32 %v4884, %v4934
    %v4978 = vmul.f32 %v4884, %v4938
    %v4979 = vmul.f32 %v4888, %v4934
    %v4980 = vmul.f32 %v4888, %v4938
    %v4981 = vmul.f32 %v4892, %v4934
    %v4982 = vmul.f32 %v4892, %v4938
    %v4983 = vmul.f32 %v4896, %v4934
    %v4984 = vmul.f32 %v4896, %v4938
    %v4985 = vmul.f32 %v4900, %v4934
    %v4986 = vmul.f32 %v4900, %v4938
    %v4987 = vmul.f32 %v4904, %v4934
    %v4988 = vmul.f32 %v4904, %v4938
    %v4989 = vmul.f32 %v4908, %v4934
    %v4990 = vmul.f32 %v4908, %v4938
    %v4991 = vmul.f32 %v4912, %v4934
    %v4992 = vmul.f32 %v4912, %v4938
    %v4993 = vmul.f32 %v4916, %v4934
    %v4994 = vmul.f32 %v4916, %v4938
    %v4995 = vmul.f32 %v4920, %v4934
    %v4996 = vmul.f32 %v4920, %v4938
    %v4997 = vmul.f32 %v4924, %v4934
    %v4998 = vmul.f32 %v4924, %v4938
    %v4999 = vmul.f32 %v4928, %v4934
    %v5000 = vmul.f32 %v4928, %v4938
    %v5001 = vadd.f32 %v4748, %v4941
    %v5002 = vadd.f32 %v4749, %v4942
    %v5003 = vadd.f32 %v4750, %v4943
    %v5004 = vadd.f32 %v4751, %v4944
    %v5005 = vadd.f32 %v4752, %v4945
    %v5006 = vadd.f32 %v4753, %v4946
    %v5007 = vadd.f32 %v4754, %v4947
    %v5008 = vadd.f32 %v4755, %v4948
    %v5009 = vadd.f32 %v4756, %v4949
    %v5010 = vadd.f32 %v4757, %v4950
    %v5011 = vadd.f32 %v4758, %v4951
    %v5012 = vadd.f32 %v4759, %v4952
    %v5013 = vadd.f32 %v4760, %v4953
    %v5014 = vadd.f32 %v4761, %v4954
    %v5015 = vadd.f32 %v4762, %v4955
    %v5016 = vadd.f32 %v4763, %v4956
    %v5017 = vadd.f32 %v4764, %v4957
    %v5018 = vadd.f32 %v4765, %v4958
    %v5019 = vadd.f32 %v4766, %v4959
    %v5020 = vadd.f32 %v4767, %v4960
    %v5021 = vadd.f32 %v4768, %v4961
    %v5022 = vadd.f32 %v4769, %v4962
    %v5023 = vadd.f32 %v4770, %v4963
    %v5024 = vadd.f32 %v4771, %v4964
    %v5025 = vadd.f32 %v4772, %v4965
    %v5026 = vadd.f32 %v4773, %v4966
    %v5027 = vadd.f32 %v4774, %v4967
    %v5028 = vadd.f32 %v4775, %v4968
    %v5029 = vadd.f32 %v4776, %v4969
    %v5030 = vadd.f32 %v4777, %v4970
    %v5031 = vadd.f32 %v4778, %v4971
    %v5032 = vadd.f32 %v4779, %v4972
    %v5033 = vadd.f32 %v4780, %v4973
    %v5034 = vadd.f32 %v4781, %v4974
    %v5035 = vadd.f32 %v4782, %v4975
    %v5036 = vadd.f32 %v4783, %v4976
    %v5037 = vadd.f32 %v4784, %v4977
    %v5038 = vadd.f32 %v4785, %v4978
    %v5039 = vadd.f32 %v4786, %v4979
    %v5040 = vadd.f32 %v4787, %v4980
    %v5041 = vadd.f32 %v4788, %v4981
    %v5042 = vadd.f32 %v4789, %v4982
    %v5043 = vadd.f32 %v4790, %v4983
    %v5044 = vadd.f32 %v4791, %v4984
    %v5045 = vadd.f32 %v4792, %v4985
    %v5046 = vadd.f32 %v4793, %v4986
    %v5047 = vadd.f32 %v4794, %v4987
    %v5048 = vadd.f32 %v4795, %v4988
    %v5049 = vadd.f32 %v4796, %v4989
    %v5050 = vadd.f32 %v4797, %v4990
    %v5051 = vadd.f32 %v4798, %v4991
    %v5052 = vadd.f32 %v4799, %v4992
    %v5053 = vadd.f32 %v4800, %v4993
    %v5054 = vadd.f32 %v4801, %v4994
    %v5055 = vadd.f32 %v4802, %v4995
    %v5056 = vadd.f32 %v4803, %v4996
    %v5057 = vadd.f32 %v4804, %v4997
    %v5058 = vadd.f32 %v4805, %v4998
    %v5059 = vadd.f32 %v4806, %v4999
    %v5060 = vadd.f32 %v4807, %v5000
    %s5061 = scalar_lea.vmem %s6, 2
    %v5062 = vld [vmem:[%s5061] ss:$4 sm:$0x3]
    %5063 = vset.pattern.permute.xlu0 2
    %5064 = vperm.xlu0 %5063, %v4079
    %v5065 = vpop.permute.xlu0 %5064
    %5067 = vset.pattern.permute.xlu0 2
    %5068 = vperm.xlu0 %5067, %v4080
    %v5069 = vpop.permute.xlu0 %5068
    %5071 = vset.pattern.permute.xlu0 2
    %5072 = vperm.xlu0 %5071, %v4081
    %v5073 = vpop.permute.xlu0 %5072
    %5075 = vset.pattern.permute.xlu0 2
    %5076 = vperm.xlu0 %5075, %v4082
    %v5077 = vpop.permute.xlu0 %5076
    %5079 = vset.pattern.permute.xlu0 2
    %5080 = vperm.xlu0 %5079, %v4083
    %v5081 = vpop.permute.xlu0 %5080
    %5083 = vset.pattern.permute.xlu0 2
    %5084 = vperm.xlu0 %5083, %v4084
    %v5085 = vpop.permute.xlu0 %5084
    %5087 = vset.pattern.permute.xlu0 2
    %5088 = vperm.xlu0 %5087, %v4085
    %v5089 = vpop.permute.xlu0 %5088
    %5091 = vset.pattern.permute.xlu0 2
    %5092 = vperm.xlu0 %5091, %v4086
    %v5093 = vpop.permute.xlu0 %5092
    %5095 = vset.pattern.permute.xlu0 2
    %5096 = vperm.xlu0 %5095, %v4087
    %v5097 = vpop.permute.xlu0 %5096
    %5099 = vset.pattern.permute.xlu0 2
    %5100 = vperm.xlu0 %5099, %v4088
    %v5101 = vpop.permute.xlu0 %5100
    %5103 = vset.pattern.permute.xlu0 2
    %5104 = vperm.xlu0 %5103, %v4089
    %v5105 = vpop.permute.xlu0 %5104
    %5107 = vset.pattern.permute.xlu0 2
    %5108 = vperm.xlu0 %5107, %v4090
    %v5109 = vpop.permute.xlu0 %5108
    %5111 = vset.pattern.permute.xlu0 2
    %5112 = vperm.xlu0 %5111, %v4091
    %v5113 = vpop.permute.xlu0 %5112
    %5115 = vset.pattern.permute.xlu0 2
    %5116 = vperm.xlu0 %5115, %v4092
    %v5117 = vpop.permute.xlu0 %5116
    %5119 = vset.pattern.permute.xlu0 2
    %5120 = vperm.xlu0 %5119, %v4093
    %v5121 = vpop.permute.xlu0 %5120
    %5123 = vset.pattern.permute.xlu0 2
    %5124 = vperm.xlu0 %5123, %v4094
    %v5125 = vpop.permute.xlu0 %5124
    %5127 = vset.pattern.permute.xlu0 2
    %5128 = vperm.xlu0 %5127, %v4095
    %v5129 = vpop.permute.xlu0 %5128
    %5131 = vset.pattern.permute.xlu0 2
    %5132 = vperm.xlu0 %5131, %v4096
    %v5133 = vpop.permute.xlu0 %5132
    %5135 = vset.pattern.permute.xlu0 2
    %5136 = vperm.xlu0 %5135, %v4097
    %v5137 = vpop.permute.xlu0 %5136
    %5139 = vset.pattern.permute.xlu0 2
    %5140 = vperm.xlu0 %5139, %v4098
    %v5141 = vpop.permute.xlu0 %5140
    %5143 = vset.pattern.permute.xlu0 2
    %5144 = vperm.xlu0 %5143, %v4099
    %v5145 = vpop.permute.xlu0 %5144
    %5147 = vset.pattern.permute.xlu0 2
    %5148 = vperm.xlu0 %5147, %v4100
    %v5149 = vpop.permute.xlu0 %5148
    %5151 = vset.pattern.permute.xlu0 2
    %5152 = vperm.xlu0 %5151, %v4101
    %v5153 = vpop.permute.xlu0 %5152
    %5155 = vset.pattern.permute.xlu0 2
    %5156 = vperm.xlu0 %5155, %v4102
    %v5157 = vpop.permute.xlu0 %5156
    %5159 = vset.pattern.permute.xlu0 2
    %5160 = vperm.xlu0 %5159, %v4103
    %v5161 = vpop.permute.xlu0 %5160
    %5163 = vset.pattern.permute.xlu0 2
    %5164 = vperm.xlu0 %5163, %v4104
    %v5165 = vpop.permute.xlu0 %5164
    %5167 = vset.pattern.permute.xlu0 2
    %5168 = vperm.xlu0 %5167, %v4105
    %v5169 = vpop.permute.xlu0 %5168
    %5171 = vset.pattern.permute.xlu0 2
    %5172 = vperm.xlu0 %5171, %v4106
    %v5173 = vpop.permute.xlu0 %5172
    %5175 = vset.pattern.permute.xlu0 2
    %5176 = vperm.xlu0 %5175, %v4107
    %v5177 = vpop.permute.xlu0 %5176
    %5179 = vset.pattern.permute.xlu0 2
    %5180 = vperm.xlu0 %5179, %v4108
    %v5181 = vpop.permute.xlu0 %5180
    %v5184 = vlaneseq
    %v5185 = vshrl.u32 %v5184, 7
    %v5186 = vsub.s32 0, %v5185
    %v5187 = vrot.slane %v5062, %v5186
    %v5188 = vlaneseq
    %v5189 = vshrl.u32 %v5188, 7
    %v5190 = vsub.s32 1, %v5189
    %v5191 = vrot.slane %v5062, %v5190
    %v5194 = vmul.f32 %v5065, %v5187
    %v5195 = vmul.f32 %v5065, %v5191
    %v5196 = vmul.f32 %v5069, %v5187
    %v5197 = vmul.f32 %v5069, %v5191
    %v5198 = vmul.f32 %v5073, %v5187
    %v5199 = vmul.f32 %v5073, %v5191
    %v5200 = vmul.f32 %v5077, %v5187
    %v5201 = vmul.f32 %v5077, %v5191
    %v5202 = vmul.f32 %v5081, %v5187
    %v5203 = vmul.f32 %v5081, %v5191
    %v5204 = vmul.f32 %v5085, %v5187
    %v5205 = vmul.f32 %v5085, %v5191
    %v5206 = vmul.f32 %v5089, %v5187
    %v5207 = vmul.f32 %v5089, %v5191
    %v5208 = vmul.f32 %v5093, %v5187
    %v5209 = vmul.f32 %v5093, %v5191
    %v5210 = vmul.f32 %v5097, %v5187
    %v5211 = vmul.f32 %v5097, %v5191
    %v5212 = vmul.f32 %v5101, %v5187
    %v5213 = vmul.f32 %v5101, %v5191
    %v5214 = vmul.f32 %v5105, %v5187
    %v5215 = vmul.f32 %v5105, %v5191
    %v5216 = vmul.f32 %v5109, %v5187
    %v5217 = vmul.f32 %v5109, %v5191
    %v5218 = vmul.f32 %v5113, %v5187
    %v5219 = vmul.f32 %v5113, %v5191
    %v5220 = vmul.f32 %v5117, %v5187
    %v5221 = vmul.f32 %v5117, %v5191
    %v5222 = vmul.f32 %v5121, %v5187
    %v5223 = vmul.f32 %v5121, %v5191
    %v5224 = vmul.f32 %v5125, %v5187
    %v5225 = vmul.f32 %v5125, %v5191
    %v5226 = vmul.f32 %v5129, %v5187
    %v5227 = vmul.f32 %v5129, %v5191
    %v5228 = vmul.f32 %v5133, %v5187
    %v5229 = vmul.f32 %v5133, %v5191
    %v5230 = vmul.f32 %v5137, %v5187
    %v5231 = vmul.f32 %v5137, %v5191
    %v5232 = vmul.f32 %v5141, %v5187
    %v5233 = vmul.f32 %v5141, %v5191
    %v5234 = vmul.f32 %v5145, %v5187
    %v5235 = vmul.f32 %v5145, %v5191
    %v5236 = vmul.f32 %v5149, %v5187
    %v5237 = vmul.f32 %v5149, %v5191
    %v5238 = vmul.f32 %v5153, %v5187
    %v5239 = vmul.f32 %v5153, %v5191
    %v5240 = vmul.f32 %v5157, %v5187
    %v5241 = vmul.f32 %v5157, %v5191
    %v5242 = vmul.f32 %v5161, %v5187
    %v5243 = vmul.f32 %v5161, %v5191
    %v5244 = vmul.f32 %v5165, %v5187
    %v5245 = vmul.f32 %v5165, %v5191
    %v5246 = vmul.f32 %v5169, %v5187
    %v5247 = vmul.f32 %v5169, %v5191
    %v5248 = vmul.f32 %v5173, %v5187
    %v5249 = vmul.f32 %v5173, %v5191
    %v5250 = vmul.f32 %v5177, %v5187
    %v5251 = vmul.f32 %v5177, %v5191
    %v5252 = vmul.f32 %v5181, %v5187
    %v5253 = vmul.f32 %v5181, %v5191
    %v5254 = vadd.f32 %v5001, %v5194
    %v5255 = vadd.f32 %v5002, %v5195
    %v5256 = vadd.f32 %v5003, %v5196
    %v5257 = vadd.f32 %v5004, %v5197
    %v5258 = vadd.f32 %v5005, %v5198
    %v5259 = vadd.f32 %v5006, %v5199
    %v5260 = vadd.f32 %v5007, %v5200
    %v5261 = vadd.f32 %v5008, %v5201
    %v5262 = vadd.f32 %v5009, %v5202
    %v5263 = vadd.f32 %v5010, %v5203
    %v5264 = vadd.f32 %v5011, %v5204
    %v5265 = vadd.f32 %v5012, %v5205
    %v5266 = vadd.f32 %v5013, %v5206
    %v5267 = vadd.f32 %v5014, %v5207
    %v5268 = vadd.f32 %v5015, %v5208
    %v5269 = vadd.f32 %v5016, %v5209
    %v5270 = vadd.f32 %v5017, %v5210
    %v5271 = vadd.f32 %v5018, %v5211
    %v5272 = vadd.f32 %v5019, %v5212
    %v5273 = vadd.f32 %v5020, %v5213
    %v5274 = vadd.f32 %v5021, %v5214
    %v5275 = vadd.f32 %v5022, %v5215
    %v5276 = vadd.f32 %v5023, %v5216
    %v5277 = vadd.f32 %v5024, %v5217
    %v5278 = vadd.f32 %v5025, %v5218
    %v5279 = vadd.f32 %v5026, %v5219
    %v5280 = vadd.f32 %v5027, %v5220
    %v5281 = vadd.f32 %v5028, %v5221
    %v5282 = vadd.f32 %v5029, %v5222
    %v5283 = vadd.f32 %v5030, %v5223
    %v5284 = vadd.f32 %v5031, %v5224
    %v5285 = vadd.f32 %v5032, %v5225
    %v5286 = vadd.f32 %v5033, %v5226
    %v5287 = vadd.f32 %v5034, %v5227
    %v5288 = vadd.f32 %v5035, %v5228
    %v5289 = vadd.f32 %v5036, %v5229
    %v5290 = vadd.f32 %v5037, %v5230
    %v5291 = vadd.f32 %v5038, %v5231
    %v5292 = vadd.f32 %v5039, %v5232
    %v5293 = vadd.f32 %v5040, %v5233
    %v5294 = vadd.f32 %v5041, %v5234
    %v5295 = vadd.f32 %v5042, %v5235
    %v5296 = vadd.f32 %v5043, %v5236
    %v5297 = vadd.f32 %v5044, %v5237
    %v5298 = vadd.f32 %v5045, %v5238
    %v5299 = vadd.f32 %v5046, %v5239
    %v5300 = vadd.f32 %v5047, %v5240
    %v5301 = vadd.f32 %v5048, %v5241
    %v5302 = vadd.f32 %v5049, %v5242
    %v5303 = vadd.f32 %v5050, %v5243
    %v5304 = vadd.f32 %v5051, %v5244
    %v5305 = vadd.f32 %v5052, %v5245
    %v5306 = vadd.f32 %v5053, %v5246
    %v5307 = vadd.f32 %v5054, %v5247
    %v5308 = vadd.f32 %v5055, %v5248
    %v5309 = vadd.f32 %v5056, %v5249
    %v5310 = vadd.f32 %v5057, %v5250
    %v5311 = vadd.f32 %v5058, %v5251
    %v5312 = vadd.f32 %v5059, %v5252
    %v5313 = vadd.f32 %v5060, %v5253
    %v5314 = vmax.f32 %v5254, 0.0
    %v5315 = vmax.f32 %v5255, 0.0
    %v5316 = vmax.f32 %v5256, 0.0
    %v5317 = vmax.f32 %v5257, 0.0
    %v5318 = vmax.f32 %v5258, 0.0
    %v5319 = vmax.f32 %v5259, 0.0
    %v5320 = vmax.f32 %v5260, 0.0
    %v5321 = vmax.f32 %v5261, 0.0
    %v5322 = vmax.f32 %v5262, 0.0
    %v5323 = vmax.f32 %v5263, 0.0
    %v5324 = vmax.f32 %v5264, 0.0
    %v5325 = vmax.f32 %v5265, 0.0
    %v5326 = vmax.f32 %v5266, 0.0
    %v5327 = vmax.f32 %v5267, 0.0
    %v5328 = vmax.f32 %v5268, 0.0
    %v5329 = vmax.f32 %v5269, 0.0
    %v5330 = vmax.f32 %v5270, 0.0
    %v5331 = vmax.f32 %v5271, 0.0
    %v5332 = vmax.f32 %v5272, 0.0
    %v5333 = vmax.f32 %v5273, 0.0
    %v5334 = vmax.f32 %v5274, 0.0
    %v5335 = vmax.f32 %v5275, 0.0
    %v5336 = vmax.f32 %v5276, 0.0
    %v5337 = vmax.f32 %v5277, 0.0
    %v5338 = vmax.f32 %v5278, 0.0
    %v5339 = vmax.f32 %v5279, 0.0
    %v5340 = vmax.f32 %v5280, 0.0
    %v5341 = vmax.f32 %v5281, 0.0
    %v5342 = vmax.f32 %v5282, 0.0
    %v5343 = vmax.f32 %v5283, 0.0
    %v5344 = vmax.f32 %v5284, 0.0
    %v5345 = vmax.f32 %v5285, 0.0
    %v5346 = vmax.f32 %v5286, 0.0
    %v5347 = vmax.f32 %v5287, 0.0
    %v5348 = vmax.f32 %v5288, 0.0
    %v5349 = vmax.f32 %v5289, 0.0
    %v5350 = vmax.f32 %v5290, 0.0
    %v5351 = vmax.f32 %v5291, 0.0
    %v5352 = vmax.f32 %v5292, 0.0
    %v5353 = vmax.f32 %v5293, 0.0
    %v5354 = vmax.f32 %v5294, 0.0
    %v5355 = vmax.f32 %v5295, 0.0
    %v5356 = vmax.f32 %v5296, 0.0
    %v5357 = vmax.f32 %v5297, 0.0
    %v5358 = vmax.f32 %v5298, 0.0
    %v5359 = vmax.f32 %v5299, 0.0
    %v5360 = vmax.f32 %v5300, 0.0
    %v5361 = vmax.f32 %v5301, 0.0
    %v5362 = vmax.f32 %v5302, 0.0
    %v5363 = vmax.f32 %v5303, 0.0
    %v5364 = vmax.f32 %v5304, 0.0
    %v5365 = vmax.f32 %v5305, 0.0
    %v5366 = vmax.f32 %v5306, 0.0
    %v5367 = vmax.f32 %v5307, 0.0
    %v5368 = vmax.f32 %v5308, 0.0
    %v5369 = vmax.f32 %v5309, 0.0
    %v5370 = vmax.f32 %v5310, 0.0
    %v5371 = vmax.f32 %v5311, 0.0
    %v5372 = vmax.f32 %v5312, 0.0
    %v5373 = vmax.f32 %v5313, 0.0
    %v5374 = vpack.c.bf16 %v5316, %v5314
    %v5375 = vpack.c.bf16 %v5317, %v5315
    %v5376 = vpack.c.bf16 %v5320, %v5318
    %v5377 = vpack.c.bf16 %v5321, %v5319
    %v5378 = vpack.c.bf16 %v5324, %v5322
    %v5379 = vpack.c.bf16 %v5325, %v5323
    %v5380 = vpack.c.bf16 %v5328, %v5326
    %v5381 = vpack.c.bf16 %v5329, %v5327
    %v5382 = vpack.c.bf16 %v5332, %v5330
    %v5383 = vpack.c.bf16 %v5333, %v5331
    %v5384 = vpack.c.bf16 %v5336, %v5334
    %v5385 = vpack.c.bf16 %v5337, %v5335
    %v5386 = vpack.c.bf16 %v5340, %v5338
    %v5387 = vpack.c.bf16 %v5341, %v5339
    %v5388 = vpack.c.bf16 %v5344, %v5342
    %v5389 = vpack.c.bf16 %v5345, %v5343
    %v5390 = vpack.c.bf16 %v5348, %v5346
    %v5391 = vpack.c.bf16 %v5349, %v5347
    %v5392 = vpack.c.bf16 %v5352, %v5350
    %v5393 = vpack.c.bf16 %v5353, %v5351
    %v5394 = vpack.c.bf16 %v5356, %v5354
    %v5395 = vpack.c.bf16 %v5357, %v5355
    %v5396 = vpack.c.bf16 %v5360, %v5358
    %v5397 = vpack.c.bf16 %v5361, %v5359
    %v5398 = vpack.c.bf16 %v5364, %v5362
    %v5399 = vpack.c.bf16 %v5365, %v5363
    %v5400 = vpack.c.bf16 %v5368, %v5366
    %v5401 = vpack.c.bf16 %v5369, %v5367
    %v5402 = vpack.c.bf16 %v5372, %v5370
    %v5403 = vpack.c.bf16 %v5373, %v5371
    %v5434 = vunpack.c.l.b16 %v5374
    %v5435 = vunpack.c.l.b16 %v5375
    %v5436 = vunpack.c.h.b16 %v5374
    %v5437 = vunpack.c.h.b16 %v5375
    %v5438 = vunpack.c.l.b16 %v5376
    %v5439 = vunpack.c.l.b16 %v5377
    %v5440 = vunpack.c.h.b16 %v5376
    %v5441 = vunpack.c.h.b16 %v5377
    %v5442 = vunpack.c.l.b16 %v5378
    %v5443 = vunpack.c.l.b16 %v5379
    %v5444 = vunpack.c.h.b16 %v5378
    %v5445 = vunpack.c.h.b16 %v5379
    %v5446 = vunpack.c.l.b16 %v5380
    %v5447 = vunpack.c.l.b16 %v5381
    %v5448 = vunpack.c.h.b16 %v5380
    %v5449 = vunpack.c.h.b16 %v5381
    %v5450 = vunpack.c.l.b16 %v5382
    %v5451 = vunpack.c.l.b16 %v5383
    %v5452 = vunpack.c.h.b16 %v5382
    %v5453 = vunpack.c.h.b16 %v5383
    %v5454 = vunpack.c.l.b16 %v5384
    %v5455 = vunpack.c.l.b16 %v5385
    %v5456 = vunpack.c.h.b16 %v5384
    %v5457 = vunpack.c.h.b16 %v5385
    %v5458 = vunpack.c.l.b16 %v5386
    %v5459 = vunpack.c.l.b16 %v5387
    %v5460 = vunpack.c.h.b16 %v5386
    %v5461 = vunpack.c.h.b16 %v5387
    %v5462 = vunpack.c.l.b16 %v5388
    %v5463 = vunpack.c.l.b16 %v5389
    %v5464 = vunpack.c.h.b16 %v5388
    %v5465 = vunpack.c.h.b16 %v5389
    %v5466 = vunpack.c.l.b16 %v5390
    %v5467 = vunpack.c.l.b16 %v5391
    %v5468 = vunpack.c.h.b16 %v5390
    %v5469 = vunpack.c.h.b16 %v5391
    %v5470 = vunpack.c.l.b16 %v5392
    %v5471 = vunpack.c.l.b16 %v5393
    %v5472 = vunpack.c.h.b16 %v5392
    %v5473 = vunpack.c.h.b16 %v5393
    %v5474 = vunpack.c.l.b16 %v5394
    %v5475 = vunpack.c.l.b16 %v5395
    %v5476 = vunpack.c.h.b16 %v5394
    %v5477 = vunpack.c.h.b16 %v5395
    %v5478 = vunpack.c.l.b16 %v5396
    %v5479 = vunpack.c.l.b16 %v5397
    %v5480 = vunpack.c.h.b16 %v5396
    %v5481 = vunpack.c.h.b16 %v5397
    %v5482 = vunpack.c.l.b16 %v5398
    %v5483 = vunpack.c.l.b16 %v5399
    %v5484 = vunpack.c.h.b16 %v5398
    %v5485 = vunpack.c.h.b16 %v5399
    %v5486 = vunpack.c.l.b16 %v5400
    %v5487 = vunpack.c.l.b16 %v5401
    %v5488 = vunpack.c.h.b16 %v5400
    %v5489 = vunpack.c.h.b16 %v5401
    %v5490 = vunpack.c.l.b16 %v5402
    %v5491 = vunpack.c.l.b16 %v5403
    %v5492 = vunpack.c.h.b16 %v5402
    %v5493 = vunpack.c.h.b16 %v5403
    %v5494 = vpack.c.b16 %v5435, %v5434
    %v5495 = vpack.c.b16 %v5437, %v5436
    %v5496 = vpack.c.b16 %v5439, %v5438
    %v5497 = vpack.c.b16 %v5441, %v5440
    %v5498 = vpack.c.b16 %v5443, %v5442
    %v5499 = vpack.c.b16 %v5445, %v5444
    %v5500 = vpack.c.b16 %v5447, %v5446
    %v5501 = vpack.c.b16 %v5449, %v5448
    %v5502 = vpack.c.b16 %v5451, %v5450
    %v5503 = vpack.c.b16 %v5453, %v5452
    %v5504 = vpack.c.b16 %v5455, %v5454
    %v5505 = vpack.c.b16 %v5457, %v5456
    %v5506 = vpack.c.b16 %v5459, %v5458
    %v5507 = vpack.c.b16 %v5461, %v5460
    %v5508 = vpack.c.b16 %v5463, %v5462
    %v5509 = vpack.c.b16 %v5465, %v5464
    %v5510 = vpack.c.b16 %v5467, %v5466
    %v5511 = vpack.c.b16 %v5469, %v5468
    %v5512 = vpack.c.b16 %v5471, %v5470
    %v5513 = vpack.c.b16 %v5473, %v5472
    %v5514 = vpack.c.b16 %v5475, %v5474
    %v5515 = vpack.c.b16 %v5477, %v5476
    %v5516 = vpack.c.b16 %v5479, %v5478
    %v5517 = vpack.c.b16 %v5481, %v5480
    %v5518 = vpack.c.b16 %v5483, %v5482
    %v5519 = vpack.c.b16 %v5485, %v5484
    %v5520 = vpack.c.b16 %v5487, %v5486
    %v5521 = vpack.c.b16 %v5489, %v5488
    %v5522 = vpack.c.b16 %v5491, %v5490
    %v5523 = vpack.c.b16 %v5493, %v5492
    %5554 = vst [vmem:[#allocation5] sm:$0xff] %v5494
    %5555 = vst [vmem:[#allocation5 + $0x8] sm:$0xff] %v5495
    %5556 = vst [vmem:[#allocation5 + $0x10] sm:$0xff] %v5496
    %5557 = vst [vmem:[#allocation5 + $0x18] sm:$0xff] %v5497
    %5558 = vst [vmem:[#allocation5 + $0x20] sm:$0xff] %v5498
    %5559 = vst [vmem:[#allocation5 + $0x28] sm:$0xff] %v5499
    %5560 = vst [vmem:[#allocation5 + $0x30] sm:$0xff] %v5500
    %5561 = vst [vmem:[#allocation5 + $0x38] sm:$0xff] %v5501
    %5562 = vst [vmem:[#allocation5 + $0x40] sm:$0xff] %v5502
    %5563 = vst [vmem:[#allocation5 + $0x48] sm:$0xff] %v5503
    %5564 = vst [vmem:[#allocation5 + $0x50] sm:$0xff] %v5504
    %5565 = vst [vmem:[#allocation5 + $0x58] sm:$0xff] %v5505
    %5566 = vst [vmem:[#allocation5 + $0x60] sm:$0xff] %v5506
    %5567 = vst [vmem:[#allocation5 + $0x68] sm:$0xff] %v5507
    %5568 = vst [vmem:[#allocation5 + $0x70] sm:$0xff] %v5508
    %5569 = vst [vmem:[#allocation5 + $0x78] sm:$0xff] %v5509
    %5570 = vst [vmem:[#allocation5 + $0x80] sm:$0xff] %v5510
    %5571 = vst [vmem:[#allocation5 + $0x88] sm:$0xff] %v5511
    %5572 = vst [vmem:[#allocation5 + $0x90] sm:$0xff] %v5512
    %5573 = vst [vmem:[#allocation5 + $0x98] sm:$0xff] %v5513
    %5574 = vst [vmem:[#allocation5 + $0xa0] sm:$0xff] %v5514
    %5575 = vst [vmem:[#allocation5 + $0xa8] sm:$0xff] %v5515
    %5576 = vst [vmem:[#allocation5 + $0xb0] sm:$0xff] %v5516
    %5577 = vst [vmem:[#allocation5 + $0xb8] sm:$0xff] %v5517
    %5578 = vst [vmem:[#allocation5 + $0xc0] sm:$0xff] %v5518
    %5579 = vst [vmem:[#allocation5 + $0xc8] sm:$0xff] %v5519
    %5580 = vst [vmem:[#allocation5 + $0xd0] sm:$0xff] %v5520
    %5581 = vst [vmem:[#allocation5 + $0xd8] sm:$0xff] %v5521
    %5582 = vst [vmem:[#allocation5 + $0xe0] sm:$0xff] %v5522
    %5583 = vst [vmem:[#allocation5 + $0xe8] sm:$0xff] %v5523
    %v5584 = vld [vmem:[%s8] sm:$0x3]
    %v5586 = vlaneseq
    %v5587 = vshrl.u32 %v5586, 7
    %v5588 = vsub.s32 0, %v5587
    %v5589 = vrot.slane %v5584, %v5588
    %v5590 = vlaneseq
    %v5591 = vshrl.u32 %v5590, 7
    %v5592 = vsub.s32 1, %v5591
    %v5593 = vrot.slane %v5584, %v5592
    %v5596 = vmul.f32 %v5314, %v5589
    %v5597 = vmul.f32 %v5315, %v5593
    %v5598 = vmul.f32 %v5316, %v5589
    %v5599 = vmul.f32 %v5317, %v5593
    %v5600 = vmul.f32 %v5318, %v5589
    %v5601 = vmul.f32 %v5319, %v5593
    %v5602 = vmul.f32 %v5320, %v5589
    %v5603 = vmul.f32 %v5321, %v5593
    %v5604 = vmul.f32 %v5322, %v5589
    %v5605 = vmul.f32 %v5323, %v5593
    %v5606 = vmul.f32 %v5324, %v5589
    %v5607 = vmul.f32 %v5325, %v5593
    %v5608 = vmul.f32 %v5326, %v5589
    %v5609 = vmul.f32 %v5327, %v5593
    %v5610 = vmul.f32 %v5328, %v5589
    %v5611 = vmul.f32 %v5329, %v5593
    %v5612 = vmul.f32 %v5330, %v5589
    %v5613 = vmul.f32 %v5331, %v5593
    %v5614 = vmul.f32 %v5332, %v5589
    %v5615 = vmul.f32 %v5333, %v5593
    %v5616 = vmul.f32 %v5334, %v5589
    %v5617 = vmul.f32 %v5335, %v5593
    %v5618 = vmul.f32 %v5336, %v5589
    %v5619 = vmul.f32 %v5337, %v5593
    %v5620 = vmul.f32 %v5338, %v5589
    %v5621 = vmul.f32 %v5339, %v5593
    %v5622 = vmul.f32 %v5340, %v5589
    %v5623 = vmul.f32 %v5341, %v5593
    %v5624 = vmul.f32 %v5342, %v5589
    %v5625 = vmul.f32 %v5343, %v5593
    %v5626 = vmul.f32 %v5344, %v5589
    %v5627 = vmul.f32 %v5345, %v5593
    %v5628 = vmul.f32 %v5346, %v5589
    %v5629 = vmul.f32 %v5347, %v5593
    %v5630 = vmul.f32 %v5348, %v5589
    %v5631 = vmul.f32 %v5349, %v5593
    %v5632 = vmul.f32 %v5350, %v5589
    %v5633 = vmul.f32 %v5351, %v5593
    %v5634 = vmul.f32 %v5352, %v5589
    %v5635 = vmul.f32 %v5353, %v5593
    %v5636 = vmul.f32 %v5354, %v5589
    %v5637 = vmul.f32 %v5355, %v5593
    %v5638 = vmul.f32 %v5356, %v5589
    %v5639 = vmul.f32 %v5357, %v5593
    %v5640 = vmul.f32 %v5358, %v5589
    %v5641 = vmul.f32 %v5359, %v5593
    %v5642 = vmul.f32 %v5360, %v5589
    %v5643 = vmul.f32 %v5361, %v5593
    %v5644 = vmul.f32 %v5362, %v5589
    %v5645 = vmul.f32 %v5363, %v5593
    %v5646 = vmul.f32 %v5364, %v5589
    %v5647 = vmul.f32 %v5365, %v5593
    %v5648 = vmul.f32 %v5366, %v5589
    %v5649 = vmul.f32 %v5367, %v5593
    %v5650 = vmul.f32 %v5368, %v5589
    %v5651 = vmul.f32 %v5369, %v5593
    %v5652 = vmul.f32 %v5370, %v5589
    %v5653 = vmul.f32 %v5371, %v5593
    %v5654 = vmul.f32 %v5372, %v5589
    %v5655 = vmul.f32 %v5373, %v5593
    %v5656 = vadd.f32 %v5596, %v5597
    %5657 = vadd.xlane.f32.xlu0 %v5656
    %v5658 = vpop.xlane.xlu0 %5657
    %v5659 = vadd.f32 %v5598, %v5599
    %5660 = vadd.xlane.f32.xlu0 %v5659
    %v5661 = vpop.xlane.xlu0 %5660
    %v5662 = vadd.f32 %v5600, %v5601
    %5663 = vadd.xlane.f32.xlu0 %v5662
    %v5664 = vpop.xlane.xlu0 %5663
    %v5665 = vadd.f32 %v5602, %v5603
    %5666 = vadd.xlane.f32.xlu0 %v5665
    %v5667 = vpop.xlane.xlu0 %5666
    %v5668 = vadd.f32 %v5604, %v5605
    %5669 = vadd.xlane.f32.xlu0 %v5668
    %v5670 = vpop.xlane.xlu0 %5669
    %v5671 = vadd.f32 %v5606, %v5607
    %5672 = vadd.xlane.f32.xlu0 %v5671
    %v5673 = vpop.xlane.xlu0 %5672
    %v5674 = vadd.f32 %v5608, %v5609
    %5675 = vadd.xlane.f32.xlu0 %v5674
    %v5676 = vpop.xlane.xlu0 %5675
    %v5677 = vadd.f32 %v5610, %v5611
    %5678 = vadd.xlane.f32.xlu0 %v5677
    %v5679 = vpop.xlane.xlu0 %5678
    %v5680 = vadd.f32 %v5612, %v5613
    %5681 = vadd.xlane.f32.xlu0 %v5680
    %v5682 = vpop.xlane.xlu0 %5681
    %v5683 = vadd.f32 %v5614, %v5615
    %5684 = vadd.xlane.f32.xlu0 %v5683
    %v5685 = vpop.xlane.xlu0 %5684
    %v5686 = vadd.f32 %v5616, %v5617
    %5687 = vadd.xlane.f32.xlu0 %v5686
    %v5688 = vpop.xlane.xlu0 %5687
    %v5689 = vadd.f32 %v5618, %v5619
    %5690 = vadd.xlane.f32.xlu0 %v5689
    %v5691 = vpop.xlane.xlu0 %5690
    %v5692 = vadd.f32 %v5620, %v5621
    %5693 = vadd.xlane.f32.xlu0 %v5692
    %v5694 = vpop.xlane.xlu0 %5693
    %v5695 = vadd.f32 %v5622, %v5623
    %5696 = vadd.xlane.f32.xlu0 %v5695
    %v5697 = vpop.xlane.xlu0 %5696
    %v5698 = vadd.f32 %v5624, %v5625
    %5699 = vadd.xlane.f32.xlu0 %v5698
    %v5700 = vpop.xlane.xlu0 %5699
    %v5701 = vadd.f32 %v5626, %v5627
    %5702 = vadd.xlane.f32.xlu0 %v5701
    %v5703 = vpop.xlane.xlu0 %5702
    %v5704 = vadd.f32 %v5628, %v5629
    %5705 = vadd.xlane.f32.xlu0 %v5704
    %v5706 = vpop.xlane.xlu0 %5705
    %v5707 = vadd.f32 %v5630, %v5631
    %5708 = vadd.xlane.f32.xlu0 %v5707
    %v5709 = vpop.xlane.xlu0 %5708
    %v5710 = vadd.f32 %v5632, %v5633
    %5711 = vadd.xlane.f32.xlu0 %v5710
    %v5712 = vpop.xlane.xlu0 %5711
    %v5713 = vadd.f32 %v5634, %v5635
    %5714 = vadd.xlane.f32.xlu0 %v5713
    %v5715 = vpop.xlane.xlu0 %5714
    %v5716 = vadd.f32 %v5636, %v5637
    %5717 = vadd.xlane.f32.xlu0 %v5716
    %v5718 = vpop.xlane.xlu0 %5717
    %v5719 = vadd.f32 %v5638, %v5639
    %5720 = vadd.xlane.f32.xlu0 %v5719
    %v5721 = vpop.xlane.xlu0 %5720
    %v5722 = vadd.f32 %v5640, %v5641
    %5723 = vadd.xlane.f32.xlu0 %v5722
    %v5724 = vpop.xlane.xlu0 %5723
    %v5725 = vadd.f32 %v5642, %v5643
    %5726 = vadd.xlane.f32.xlu0 %v5725
    %v5727 = vpop.xlane.xlu0 %5726
    %v5728 = vadd.f32 %v5644, %v5645
    %5729 = vadd.xlane.f32.xlu0 %v5728
    %v5730 = vpop.xlane.xlu0 %5729
    %v5731 = vadd.f32 %v5646, %v5647
    %5732 = vadd.xlane.f32.xlu0 %v5731
    %v5733 = vpop.xlane.xlu0 %5732
    %v5734 = vadd.f32 %v5648, %v5649
    %5735 = vadd.xlane.f32.xlu0 %v5734
    %v5736 = vpop.xlane.xlu0 %5735
    %v5737 = vadd.f32 %v5650, %v5651
    %5738 = vadd.xlane.f32.xlu0 %v5737
    %v5739 = vpop.xlane.xlu0 %5738
    %v5740 = vadd.f32 %v5652, %v5653
    %5741 = vadd.xlane.f32.xlu0 %v5740
    %v5742 = vpop.xlane.xlu0 %5741
    %v5743 = vadd.f32 %v5654, %v5655
    %5744 = vadd.xlane.f32.xlu0 %v5743
    %v5745 = vpop.xlane.xlu0 %5744
    %vm5746 = vcmask 7168
    %5747 = vst.msk [vmem:[%s10] sm:$0xff] %vm5746, %v5658
    %5748 = vst.msk [vmem:[%s10 + $0x8] sm:$0xff] %vm5746, %v5661
    %5749 = vst.msk [vmem:[%s10 + $0x10] sm:$0xff] %vm5746, %v5664
    %5750 = vst.msk [vmem:[%s10 + $0x18] sm:$0xff] %vm5746, %v5667
    %5751 = vst.msk [vmem:[%s10 + $0x20] sm:$0xff] %vm5746, %v5670
    %5752 = vst.msk [vmem:[%s10 + $0x28] sm:$0xff] %vm5746, %v5673
    %5753 = vst.msk [vmem:[%s10 + $0x30] sm:$0xff] %vm5746, %v5676
    %5754 = vst.msk [vmem:[%s10 + $0x38] sm:$0xff] %vm5746, %v5679
    %5755 = vst.msk [vmem:[%s10 + $0x40] sm:$0xff] %vm5746, %v5682
    %5756 = vst.msk [vmem:[%s10 + $0x48] sm:$0xff] %vm5746, %v5685
    %5757 = vst.msk [vmem:[%s10 + $0x50] sm:$0xff] %vm5746, %v5688
    %5758 = vst.msk [vmem:[%s10 + $0x58] sm:$0xff] %vm5746, %v5691
    %5759 = vst.msk [vmem:[%s10 + $0x60] sm:$0xff] %vm5746, %v5694
    %5760 = vst.msk [vmem:[%s10 + $0x68] sm:$0xff] %vm5746, %v5697
    %5761 = vst.msk [vmem:[%s10 + $0x70] sm:$0xff] %vm5746, %v5700
    %5762 = vst.msk [vmem:[%s10 + $0x78] sm:$0xff] %vm5746, %v5703
    %5763 = vst.msk [vmem:[%s10 + $0x80] sm:$0xff] %vm5746, %v5706
    %5764 = vst.msk [vmem:[%s10 + $0x88] sm:$0xff] %vm5746, %v5709
    %5765 = vst.msk [vmem:[%s10 + $0x90] sm:$0xff] %vm5746, %v5712
    %5766 = vst.msk [vmem:[%s10 + $0x98] sm:$0xff] %vm5746, %v5715
    %5767 = vst.msk [vmem:[%s10 + $0xa0] sm:$0xff] %vm5746, %v5718
    %5768 = vst.msk [vmem:[%s10 + $0xa8] sm:$0xff] %vm5746, %v5721
    %5769 = vst.msk [vmem:[%s10 + $0xb0] sm:$0xff] %vm5746, %v5724
    %5770 = vst.msk [vmem:[%s10 + $0xb8] sm:$0xff] %vm5746, %v5727
    %5771 = vst.msk [vmem:[%s10 + $0xc0] sm:$0xff] %vm5746, %v5730
    %5772 = vst.msk [vmem:[%s10 + $0xc8] sm:$0xff] %vm5746, %v5733
    %5773 = vst.msk [vmem:[%s10 + $0xd0] sm:$0xff] %vm5746, %v5736
    %5774 = vst.msk [vmem:[%s10 + $0xd8] sm:$0xff] %vm5746, %v5739
    %5775 = vst.msk [vmem:[%s10 + $0xe0] sm:$0xff] %vm5746, %v5742
    %5776 = vst.msk [vmem:[%s10 + $0xe8] sm:$0xff] %vm5746, %v5745
    // Predicated region
    $region42: #{tpu_custom_call.1} parent=1 // pred_check
      _
    $region43: #{tpu_custom_call.1} parent=1 // pred_check_branch
      %5778 = sbr.rel (0) target = $region45
    $region44: #{tpu_custom_call.1} parent=1 // pred_region
      %s5780 = ssub.s32 3840, 3840
      %5781 = vsyncadd [#allocation4], %s5780
      %s5782 = sshll.u32 [#allocation5], 4
      %s5783 = int_to_ptr.vmem [resolvable:$true] %s5782
      %5788 = dma.vmem_to_hbm [thread:$0]  %s5783, 3840, %s9, [#allocation4], 128, 128, 8
    $region45: #{tpu_custom_call.1} parent=1 // pred_fallthru
      _
    // Predicated region
    $region46: #{tpu_custom_call.1} parent=1 // pred_check
      _
    $region47: #{tpu_custom_call.1} parent=1 // pred_check_branch
      %5790 = sbr.rel (0) target = $region49
    $region48: #{tpu_custom_call.1} parent=1 // pred_region
      _
    $region49: #{tpu_custom_call.1} parent=1 // pred_fallthru
      _
    // Predicated region
    $region50: #{tpu_custom_call.1} parent=1 // pred_check
      _
    $region51: #{tpu_custom_call.1} parent=1 // pred_check_branch
      %5792 = sbr.rel (0) target = $region53
    $region52: #{tpu_custom_call.1} parent=1 // pred_region
      %5793 = dma.done [#allocation4], 3840
    $region53: #{tpu_custom_call.1} parent=1 // pred_fallthru
      _
    // Predicated region
    $region54: #{tpu_custom_call.1} parent=1 // pred_check
      _
    $region55: #{tpu_custom_call.1} parent=1 // pred_check_branch
      %5795 = sbr.rel (0) target = $region57
    $region56: #{tpu_custom_call.1} parent=1 // pred_region
      _
    $region57: #{tpu_custom_call.1} parent=1 // pred_fallthru
      _
    %5796 = vsyncpa [#allocation3], 1
    %5797 = vsyncpa [#allocation4], 1

</llo_original>
